<compile_context>
chip_gen: v7x
topology: tpu7x:2x2x1
jax: 0.10.0
libtpu: 0.0.40
codegen_flags: <defaults>
</compile_context>

<pallas_src>
import functools
import math

import numpy as np
import jax
import jax.numpy as jnp
from jax.experimental import pallas as pl
from jax.experimental.pallas import tpu as pltpu


# ----------------------------------------------------------------------------
# e3nn-style irreps helpers (glue, numpy).  Irreps = list of (mul, l, parity).
# ----------------------------------------------------------------------------
_SUPPORTED_CG = {(0, 0, 0), (0, 1, 1), (1, 0, 1), (1, 1, 0)}


def _cg(l1, l2, lo):
    if (l1, l2, lo) == (0, 0, 0):
        return np.ones((1, 1, 1), np.float32)
    if (l1, l2, lo) == (0, 1, 1):
        return np.eye(3, dtype=np.float32).reshape(1, 3, 3)
    if (l1, l2, lo) == (1, 0, 1):
        return np.eye(3, dtype=np.float32).reshape(3, 1, 3)
    if (l1, l2, lo) == (1, 1, 0):
        return (np.eye(3, dtype=np.float32) / np.sqrt(3.0)).reshape(3, 3, 1)
    raise NotImplementedError((l1, l2, lo))


def irreps_dim(irreps):
    return sum(mul * (2 * l + 1) for mul, l, _ in irreps)


def _slices(irreps):
    out, off = [], 0
    for mul, l, _ in irreps:
        d = mul * (2 * l + 1)
        out.append((off, off + d))
        off += d
    return out


def build_fctp_structure(ir1, ir2, iro):
    """Dense structure tensor W[p, i, j, k] for a FullyConnectedTensorProduct:
       out[k] = sum_p w[p] * sum_{i,j} W[p,i,j,k] * x1[i] * x2[j]."""
    s1, s2, so = _slices(ir1), _slices(ir2), _slices(iro)
    D1, D2, Do = irreps_dim(ir1), irreps_dim(ir2), irreps_dim(iro)

    instrs = []
    for i1, (m1, l1, p1) in enumerate(ir1):
        for i2, (m2, l2, p2) in enumerate(ir2):
            for io, (mo, lo, po) in enumerate(iro):
                if p1 * p2 == po and abs(l1 - l2) <= lo <= l1 + l2 \
                        and (l1, l2, lo) in _SUPPORTED_CG:
                    instrs.append((i1, i2, io))

    fan = {io: 0 for io in range(len(iro))}
    for i1, i2, io in instrs:
        fan[io] += ir1[i1][0] * ir2[i2][0]

    P = sum(ir1[i1][0] * ir2[i2][0] * iro[io][0] for i1, i2, io in instrs)
    W = np.zeros((P, D1, D2, Do), np.float32)

    p_off = 0
    for i1, i2, io in instrs:
        m1, l1, _ = ir1[i1]
        m2, l2, _ = ir2[i2]
        mo, lo, _ = iro[io]
        d1, d2, do = 2 * l1 + 1, 2 * l2 + 1, 2 * lo + 1
        C = _cg(l1, l2, lo)
        alpha = 1.0 / math.sqrt(fan[io])
        for u in range(m1):
            for v in range(m2):
                for w in range(mo):
                    p = p_off + (u * m2 + v) * mo + w
                    a0 = s1[i1][0] + u * d1
                    b0 = s2[i2][0] + v * d2
                    c0 = so[io][0] + w * do
                    W[p, a0:a0 + d1, b0:b0 + d2, c0:c0 + do] = alpha * C
        p_off += m1 * m2 * mo
    return W, P


def init_relaxed_weights(irreps):
    """ones for 0e blocks, zeros otherwise (matches the module's __init__)."""
    parts = []
    for mul, l, p in irreps:
        d = mul * (2 * l + 1)
        parts.append(np.ones(d, np.float32) if (l == 0 and p == 1)
                     else np.zeros(d, np.float32))
    return np.concatenate(parts)


# ----------------------------------------------------------------------------
# Pallas kernel: per-edge-tile FC -> weighted TP -> one-hot scatter-add.
# ----------------------------------------------------------------------------
def _conv_kernel(xs_ref, meta_ref, w1_ref, w2e_ref, c_ref, out_ref, acc_ref, *,
                 n_nodes, d_scal, d_edge, d_out, p, w_stop):
    t = pl.program_id(0)
    nt = pl.num_programs(0)

    @pl.when(t == 0)
    def _():
        acc_ref[...] = jnp.zeros_like(acc_ref)
        out_ref[...] = jnp.zeros_like(out_ref)

    meta = meta_ref[...]                              # [TE, 1+d_scal+d_edge] f32
    dst = meta[:, 0:1].astype(jnp.int32)              # [TE, 1] (sentinel n_nodes for padding)
    es = meta[:, 1:1 + d_scal]                        # [TE, d_scal]
    ea = meta[:, 1 + d_scal:1 + d_scal + d_edge]      # [TE, d_edge]
    x = xs_ref[...]                                   # [TE, Din] gathered node feats
    te_sz = x.shape[0]

    # FC(edge_scalars) layer 1: contraction depth d_scal (==1 here) -> VPU broadcast
    if d_scal == 1:
        h = jnp.maximum(es * w1_ref[...], 0.0)        # [TE,1]*[1,H] -> [TE,H]
    else:
        h = jnp.maximum(jnp.dot(es, w1_ref[...],
                                preferred_element_type=jnp.float32), 0.0)
    # FC layer 2 against the Dout-expanded weight: tpw_exp[e, p*Dout+k] == tpw[e, p]
    # (lane-dense [TE, P*Dout] produced directly by the MXU, no in-kernel repeat).
    tpw_exp = jnp.dot(h, w2e_ref[...], preferred_element_type=jnp.float32)

    # Weighted tensor product.  The relaxed-TP map and 1/sqrt(num_neighbors) are
    # already folded into c_ref:  xy[e, j*Din + i] = edge_attr[e, j] * x[e, i].
    xy = jnp.concatenate([ea[:, j:j + 1] * x for j in range(d_edge)], axis=1)
    t_mat = jnp.dot(xy.astype(jnp.bfloat16), c_ref[...],
                    preferred_element_type=jnp.float32)        # [TE, P*Dout] f32 acc

    # Contract over the P tensor-product paths: elementwise multiply with the
    # expanded weights, then pairwise-fold stride-Dout lane groups.  Per tile we
    # only fold while the slice boundaries stay multiples of 128 lanes (pure
    # vreg-aligned VPU adds, no lane shifts); the sub-128 tail is deferred to
    # the tiny node accumulator after the last tile.
    u = tpw_exp * t_mat
    width = p * d_out
    while width > w_stop:
        half = width // 2
        u = u[:, :half] + u[:, half:width]
        width = half                                           # [TE, w_stop]

    # scatter-add over edge_dst via one-hot matmul (contraction depth = TE).
    # Accumulate into a lane-dense [N, w_stop] scratch (unmasked stores / adds).
    # TODO(synk): for non-toy graphs (N >= 1e4) replace with sort-by-dst +
    # node-tiled accumulation; the dense one-hot is O(TE*N) and keeps [N,w_stop]
    # resident, fine only at small N.
    node_iota = jax.lax.broadcasted_iota(jnp.int32, (te_sz, n_nodes), 1)
    onehot = (dst == node_iota).astype(jnp.float32)            # padded rows: all-zero
    acc_ref[...] += jax.lax.dot_general(
        onehot, u, (((0,), (0,)), ((), ())),
        preferred_element_type=jnp.float32)

    @pl.when(t == nt - 1)
    def _():
        # Final sub-128-lane folds, done once on the tiny [N, w_stop] accumulator,
        # then a single masked [N, Dout] output store.
        v = acc_ref[...]
        w = w_stop
        while w > d_out:
            half = w // 2
            v = v[:, :half] + v[:, half:w]
            w = half
        out_ref[...] = v


def relaxed_convolution(node_input, edge_src, edge_dst, edge_attr, edge_scalars,
                        fc_w1, fc_w2_exp, cflat_bf16, *, p_in, d_out, te=256):
    n_nodes, d_in = node_input.shape
    n_edges = edge_src.shape[0]
    d_edge = edge_attr.shape[1]
    d_scal = edge_scalars.shape[1]
    h_fc = fc_w1.shape[1]
    assert p_in & (p_in - 1) == 0, "pairwise lane-fold needs P to be a power of two"

    # Per-tile fold stops at the smallest multiple-of-d_out width >= 128 (or the
    # full width, if smaller); the remaining folds run once on the accumulator.
    w_stop = d_out
    while w_stop < 128 and w_stop * 2 <= p_in * d_out:
        w_stop *= 2

    # TODO(synk): the edge_src gather stays wrapper-side (one extra HBM round trip
    # of [E, d_in]); an in-kernel DMA gather would remove it.
    x_src = jnp.take(node_input, edge_src, axis=0)

    # Pad edges to a tile multiple; padded rows get dst == n_nodes (sentinel) so
    # their one-hot row is all zeros and they contribute nothing.
    e_pad = pl.cdiv(n_edges, te) * te
    pad = e_pad - n_edges
    if pad:
        x_src = jnp.pad(x_src, ((0, pad), (0, 0)))
        edge_scalars = jnp.pad(edge_scalars, ((0, pad), (0, 0)))
        edge_attr = jnp.pad(edge_attr, ((0, pad), (0, 0)))
        edge_dst = jnp.pad(edge_dst, ((0, pad),), constant_values=n_nodes)

    # Merge the narrow per-edge streams into one array: [dst | scalars | attr].
    meta = jnp.concatenate([edge_dst.astype(jnp.float32)[:, None],
                            edge_scalars, edge_attr], axis=1)
    d_meta = 1 + d_scal + d_edge

    kernel = functools.partial(_conv_kernel, n_nodes=n_nodes, d_scal=d_scal,
                               d_edge=d_edge, d_out=d_out, p=p_in, w_stop=w_stop)

    return pl.pallas_call(
        kernel,
        out_shape=jax.ShapeDtypeStruct((n_nodes, d_out), jnp.float32),
        grid=(e_pad // te,),
        in_specs=[
            pl.BlockSpec((te, d_in), lambda t: (t, 0)),                  # gathered node feats
            pl.BlockSpec((te, d_meta), lambda t: (t, 0)),                # [dst|scalars|attr]
            pl.BlockSpec((d_scal, h_fc), lambda t: (0, 0)),              # fc layer 1
            pl.BlockSpec((h_fc, p_in * d_out), lambda t: (0, 0)),        # fc layer 2 (Dout-expanded)
            pl.BlockSpec((d_edge * d_in, p_in * d_out), lambda t: (0, 0)),  # folded structure (bf16)
        ],
        out_specs=pl.BlockSpec((n_nodes, d_out), lambda t: (0, 0)),
        scratch_shapes=[pltpu.VMEM((n_nodes, w_stop), jnp.float32)],     # lane-dense node accumulator
        compiler_params=pltpu.CompilerParams(
            dimension_semantics=("arbitrary",),          # resident accumulator across edge tiles
            vmem_limit_bytes=32 * 1024 * 1024),
        # TODO(synk): v7x 2-TensorCore edge split (per-core partial [N,*] slabs)
        # not implemented; single-core 'arbitrary' grid is used on all chips.
    )(x_src, meta, fc_w1, fc_w2_exp, cflat_bf16)


# ----------------------------------------------------------------------------
# Pure-JAX reference (same math, same folded/bf16 constants) for correctness.
# ----------------------------------------------------------------------------
def reference(node_input, edge_src, edge_dst, edge_attr, edge_scalars,
              fc_w1, fc_w2, cflat_bf16, *, p_in, d_out):
    n_nodes, d_in = node_input.shape
    e = edge_src.shape[0]
    d_edge = edge_attr.shape[1]
    h = jnp.maximum(edge_scalars @ fc_w1, 0.0)
    tpw = h @ fc_w2                                                  # [E, P]
    xs = node_input[edge_src]                                        # [E, Din]
    xy = (edge_attr[:, :, None] * xs[:, None, :]).reshape(e, d_edge * d_in)
    T = jnp.dot(xy.astype(jnp.bfloat16), cflat_bf16,
                preferred_element_type=jnp.float32).reshape(e, p_in, d_out)
    ef = jnp.sum(tpw[:, :, None] * T, axis=1)
    # 1/sqrt(num_neighbors) is already folded into cflat_bf16.
    return jnp.zeros((n_nodes, d_out), jnp.float32).at[edge_dst].add(ef)


# ----------------------------------------------------------------------------
if __name__ == "__main__":
    # Concrete irreps configuration (relaxed=True branch):
    #   irreps_in  = "4x0e + 4x1o"  (dim 16)
    #   irreps_edge= "0e + 1o"      (dim 4, SH up to l=1)
    #   irreps_out = "4x0e + 4x1o"  (dim 16)
    #   irreps_relaxed = irreps_inter = "0e + 1o"
    irreps_in = [(4, 0, 1), (4, 1, -1)]
    irreps_edge = [(1, 0, 1), (1, 1, -1)]
    irreps_out = [(4, 0, 1), (4, 1, -1)]
    irreps_relaxed = [(1, 0, 1), (1, 1, -1)]

    N_NODES, E, TE = 8, 512, 256
    FC_NEURONS, FC_EDGE_DIM = 16, 1
    NUM_NEIGHBORS = E / N_NODES

    d_in = irreps_dim(irreps_in)          # 16
    d_edge = irreps_dim(irreps_edge)      # 4
    d_out = irreps_dim(irreps_out)        # 16
    d_inter = irreps_dim(irreps_relaxed)  # 4

    # --- deterministic parameters --------------------------------------------
    W_in, P_in = build_fctp_structure(irreps_in, irreps_relaxed, irreps_out)    # P_in = 64
    W_rel, P_rel = build_fctp_structure(irreps_relaxed, irreps_edge, irreps_relaxed)

    key = jax.random.PRNGKey(0)
    k = jax.random.split(key, 8)

    rw = jnp.asarray(init_relaxed_weights(irreps_relaxed))                 # [d_inter]
    v_rel = jax.random.normal(k[0], (P_rel,), jnp.float32)                 # shared TP weights
    # relaxed_edge_tp(relaxed_weights, edge_attr) with static relaxed_weights
    # collapses exactly to a linear map  edge_attr -> inter.
    M2 = jnp.einsum("q,qabm,a->bm", v_rel, jnp.asarray(W_rel), rw)         # [d_edge, d_inter]

    fc_w1 = (jax.random.normal(k[1], (FC_EDGE_DIM, FC_NEURONS), jnp.float32)
             / math.sqrt(FC_EDGE_DIM))
    fc_w2 = (jax.random.normal(k[2], (FC_NEURONS, P_in), jnp.float32)
             / math.sqrt(FC_NEURONS))

    # Exact build-time constant folds:
    #   * relaxed-TP map M2 composed into the structure tensor (everything linear)
    #   * 1/sqrt(num_neighbors) scatter normalization
    #   * bf16 cast of the MXU structure operand (f32 accumulation in the kernel)
    W_fold = jnp.einsum("pijk,ej->piek", jnp.asarray(W_in), M2)            # [P,Din,Dedge,Dout]
    Cflat = (W_fold.transpose(2, 1, 0, 3).reshape(d_edge * d_in, P_in * d_out)
             / math.sqrt(NUM_NEIGHBORS)).astype(jnp.bfloat16)
    fc_w2_exp = jnp.repeat(fc_w2, d_out, axis=1)                           # [H, P*Dout]

    # --- deterministic inputs -------------------------------------------------
    node_input = jax.random.normal(k[3], (N_NODES, d_in), jnp.float32)
    edge_src = jax.random.randint(k[4], (E,), 0, N_NODES, dtype=jnp.int32)
    edge_dst = jax.random.randint(k[5], (E,), 0, N_NODES, dtype=jnp.int32)
    vec = jax.random.normal(k[6], (E, 3), jnp.float32)
    unit = vec / jnp.linalg.norm(vec, axis=1, keepdims=True)
    edge_attr = jnp.concatenate(
        [jnp.ones((E, 1), jnp.float32), math.sqrt(3.0) * unit], axis=1)    # SH l<=1
    edge_scalars = jax.random.normal(k[7], (E, FC_EDGE_DIM), jnp.float32)

    # --- run ------------------------------------------------------------------
    out = relaxed_convolution(node_input, edge_src, edge_dst, edge_attr, edge_scalars,
                              fc_w1, fc_w2_exp, Cflat,
                              p_in=P_in, d_out=d_out, te=TE)
    out = jax.block_until_ready(out)

    ref = reference(node_input, edge_src, edge_dst, edge_attr, edge_scalars,
                    fc_w1, fc_w2, Cflat, p_in=P_in, d_out=d_out)
    ref = jax.block_until_ready(ref)

    assert out.shape == (N_NODES, d_out)
    assert np.allclose(np.asarray(out), np.asarray(ref), rtol=1e-3, atol=1e-3), \
        "Pallas kernel mismatch vs JAX reference"
    print("KERNEL_OK")
</pallas_src>

<mosaic_0001>
module attributes {stable_mosaic.version = 11 : i64} {
  func.func @_conv_kernel(%arg0: i32, %arg1: memref<256x16xf32, #tpu.memory_space<vmem>>, %arg2: memref<256x6xf32, #tpu.memory_space<vmem>>, %arg3: memref<1x16xf32, #tpu.memory_space<vmem>>, %arg4: memref<16x1024xf32, #tpu.memory_space<vmem>>, %arg5: memref<64x1024xbf16, #tpu.memory_space<vmem>>, %arg6: memref<8x16xf32, #tpu.memory_space<vmem>>, %arg7: memref<8x128xf32, #tpu.memory_space<vmem>>) attributes {dimension_semantics = [#tpu.dimension_semantics<arbitrary>], iteration_bounds = array<i64: 2>, scalar_prefetch = 0 : i64, scratch_operands = 1 : i64, tpu.core_type = #tpu.core_type<tc>, window_params = [{transform_indices = @transform_0, window_bounds = array<i64: 256, 16>}, {transform_indices = @transform_1, window_bounds = array<i64: 256, 6>}, {pipeline_mode = #tpu.pipeline_mode<synchronous>, transform_indices = @transform_2, window_bounds = array<i64: 1, 16>}, {pipeline_mode = #tpu.pipeline_mode<synchronous>, transform_indices = @transform_3, window_bounds = array<i64: 16, 1024>}, {pipeline_mode = #tpu.pipeline_mode<synchronous>, transform_indices = @transform_4, window_bounds = array<i64: 64, 1024>}, {pipeline_mode = #tpu.pipeline_mode<synchronous>, transform_indices = @transform_5, window_bounds = array<i64: 8, 16>}]} {
    %c0_i32 = arith.constant 0 : i32
    %0 = arith.cmpi eq, %arg0, %c0_i32 : i32
    %1 = arith.extui %0 : i1 to i32
    %c0_i32_0 = arith.constant 0 : i32
    %2 = arith.cmpi ne, %1, %c0_i32_0 : i32
    scf.if %2 {
      %cst_18 = arith.constant 0.000000e+00 : f32
      %55 = vector.broadcast %cst_18 : f32 to vector<8x128xf32>
      %c0_19 = arith.constant 0 : index
      %c0_20 = arith.constant 0 : index
      %56 = vector.load %arg7[%c0_19, %c0_20] : memref<8x128xf32, #tpu.memory_space<vmem>>, vector<8x128xf32>
      tpu.vector_store %arg7[%c0_19, %c0_20], %55 {strides = array<i32>} : memref<8x128xf32, #tpu.memory_space<vmem>>, vector<8x128xf32>,
      %cst_21 = arith.constant 0.000000e+00 : f32
      %57 = vector.broadcast %cst_21 : f32 to vector<8x16xf32>
      %c0_22 = arith.constant 0 : index
      %c0_23 = arith.constant 0 : index
      %58 = vector.load %arg6[%c0_22, %c0_23] : memref<8x16xf32, #tpu.memory_space<vmem>>, vector<8x16xf32>
      tpu.vector_store %arg6[%c0_22, %c0_23], %57 {strides = array<i32>} : memref<8x16xf32, #tpu.memory_space<vmem>>, vector<8x16xf32>,
    } else {
    }
    %c0 = arith.constant 0 : index
    %c0_1 = arith.constant 0 : index
    %3 = vector.load %arg2[%c0, %c0_1] : memref<256x6xf32, #tpu.memory_space<vmem>>, vector<256x6xf32>
    %4 = vector.extract_strided_slice %3 {offsets = [0, 0], sizes = [256, 1], strides = [1, 1]} : vector<256x6xf32> to vector<256x1xf32>
    %5 = arith.fptosi %4 : vector<256x1xf32> to vector<256x1xi32>
    %6 = vector.extract_strided_slice %3 {offsets = [0, 1], sizes = [256, 1], strides = [1, 1]} : vector<256x6xf32> to vector<256x1xf32>
    %7 = vector.extract_strided_slice %3 {offsets = [0, 2], sizes = [256, 4], strides = [1, 1]} : vector<256x6xf32> to vector<256x4xf32>
    %c0_2 = arith.constant 0 : index
    %c0_3 = arith.constant 0 : index
    %8 = vector.load %arg1[%c0_2, %c0_3] : memref<256x16xf32, #tpu.memory_space<vmem>>, vector<256x16xf32>
    %c0_4 = arith.constant 0 : index
    %c0_5 = arith.constant 0 : index
    %9 = vector.load %arg3[%c0_4, %c0_5] : memref<1x16xf32, #tpu.memory_space<vmem>>, vector<1x16xf32>
    %10 = vector.broadcast %6 : vector<256x1xf32> to vector<256x16xf32>
    %11 = vector.broadcast %9 : vector<1x16xf32> to vector<256x16xf32>
    %12 = arith.mulf %10, %11 : vector<256x16xf32>
    %cst = arith.constant 0.000000e+00 : f32
    %13 = vector.broadcast %cst : f32 to vector<256x16xf32>
    %14 = arith.maximumf %12, %13 : vector<256x16xf32>
    %c0_6 = arith.constant 0 : index
    %c0_7 = arith.constant 0 : index
    %15 = vector.load %arg4[%c0_6, %c0_7] : memref<16x1024xf32, #tpu.memory_space<vmem>>, vector<16x1024xf32>
    %cst_8 = arith.constant dense<0.000000e+00> : vector<256x1024xf32>
    %16 = tpu.matmul %14, %15, %cst_8 {dimension_numbers = #tpu.dot_dimension_numbers<[1], [0], [0], [1], [0, 0, 1, 1], [], []>} : vector<256x16xf32>, vector<16x1024xf32>, vector<256x1024xf32> -> vector<256x1024xf32>
    %17 = vector.extract_strided_slice %7 {offsets = [0, 0], sizes = [256, 1], strides = [1, 1]} : vector<256x4xf32> to vector<256x1xf32>
    %18 = vector.broadcast %17 : vector<256x1xf32> to vector<256x16xf32>
    %19 = arith.mulf %18, %8 : vector<256x16xf32>
    %20 = vector.extract_strided_slice %7 {offsets = [0, 1], sizes = [256, 1], strides = [1, 1]} : vector<256x4xf32> to vector<256x1xf32>
    %21 = vector.broadcast %20 : vector<256x1xf32> to vector<256x16xf32>
    %22 = arith.mulf %21, %8 : vector<256x16xf32>
    %23 = vector.extract_strided_slice %7 {offsets = [0, 2], sizes = [256, 1], strides = [1, 1]} : vector<256x4xf32> to vector<256x1xf32>
    %24 = vector.broadcast %23 : vector<256x1xf32> to vector<256x16xf32>
    %25 = arith.mulf %24, %8 : vector<256x16xf32>
    %26 = vector.extract_strided_slice %7 {offsets = [0, 3], sizes = [256, 1], strides = [1, 1]} : vector<256x4xf32> to vector<256x1xf32>
    %27 = vector.broadcast %26 : vector<256x1xf32> to vector<256x16xf32>
    %28 = arith.mulf %27, %8 : vector<256x16xf32>
    %29 = tpu.concatenate %19, %22, %25, %28 in 1 : vector<256x16xf32>, vector<256x16xf32>, vector<256x16xf32>, vector<256x16xf32> -> vector<256x64xf32>
    %30 = arith.truncf %29 : vector<256x64xf32> to vector<256x64xbf16>
    %c0_9 = arith.constant 0 : index
    %c0_10 = arith.constant 0 : index
    %31 = vector.load %arg5[%c0_9, %c0_10] : memref<64x1024xbf16, #tpu.memory_space<vmem>>, vector<64x1024xbf16>
    %cst_11 = arith.constant dense<0.000000e+00> : vector<256x1024xf32>
    %32 = tpu.matmul %30, %31, %cst_11 {dimension_numbers = #tpu.dot_dimension_numbers<[1], [0], [0], [1], [0, 0, 1, 1], [], []>} : vector<256x64xbf16>, vector<64x1024xbf16>, vector<256x1024xf32> -> vector<256x1024xf32>
    %33 = arith.mulf %16, %32 : vector<256x1024xf32>
    %34 = vector.extract_strided_slice %33 {offsets = [0, 0], sizes = [256, 512], strides = [1, 1]} : vector<256x1024xf32> to vector<256x512xf32>
    %35 = vector.extract_strided_slice %33 {offsets = [0, 512], sizes = [256, 512], strides = [1, 1]} : vector<256x1024xf32> to vector<256x512xf32>
    %36 = arith.addf %34, %35 : vector<256x512xf32>
    %37 = vector.extract_strided_slice %36 {offsets = [0, 0], sizes = [256, 256], strides = [1, 1]} : vector<256x512xf32> to vector<256x256xf32>
    %38 = vector.extract_strided_slice %36 {offsets = [0, 256], sizes = [256, 256], strides = [1, 1]} : vector<256x512xf32> to vector<256x256xf32>
    %39 = arith.addf %37, %38 : vector<256x256xf32>
    %40 = vector.extract_strided_slice %39 {offsets = [0, 0], sizes = [256, 128], strides = [1, 1]} : vector<256x256xf32> to vector<256x128xf32>
    %41 = vector.extract_strided_slice %39 {offsets = [0, 128], sizes = [256, 128], strides = [1, 1]} : vector<256x256xf32> to vector<256x128xf32>
    %42 = arith.addf %40, %41 : vector<256x128xf32>
    %43 = tpu.iota {dimensions = array<i32: 1>} : vector<256x8xi32>
    %44 = vector.broadcast %5 : vector<256x1xi32> to vector<256x8xi32>
    %45 = arith.cmpi eq, %44, %43 : vector<256x8xi32>
    %46 = arith.extui %45 : vector<256x8xi1> to vector<256x8xi32>
    %47 = arith.sitofp %46 : vector<256x8xi32> to vector<256x8xf32>
    %c0_12 = arith.constant 0 : index
    %c0_13 = arith.constant 0 : index
    %48 = vector.load %arg7[%c0_12, %c0_13] : memref<8x128xf32, #tpu.memory_space<vmem>>, vector<8x128xf32>
    %cst_14 = arith.constant dense<0.000000e+00> : vector<8x128xf32>
    %49 = tpu.matmul %47, %42, %cst_14 {dimension_numbers = #tpu.dot_dimension_numbers<[0], [0], [1], [1], [0, 1, 1, 1], [], []>} : vector<256x8xf32>, vector<256x128xf32>, vector<8x128xf32> -> vector<8x128xf32>
    %50 = arith.addf %48, %49 : vector<8x128xf32>
    %c0_15 = arith.constant 0 : index
    %c0_16 = arith.constant 0 : index
    %51 = vector.load %arg7[%c0_15, %c0_16] : memref<8x128xf32, #tpu.memory_space<vmem>>, vector<8x128xf32>
    tpu.vector_store %arg7[%c0_15, %c0_16], %50 {strides = array<i32>} : memref<8x128xf32, #tpu.memory_space<vmem>>, vector<8x128xf32>,
    %c1_i32 = arith.constant 1 : i32
    %52 = arith.cmpi eq, %arg0, %c1_i32 : i32
    %53 = arith.extui %52 : i1 to i32
    %c0_i32_17 = arith.constant 0 : i32
    %54 = arith.cmpi ne, %53, %c0_i32_17 : i32
    scf.if %54 {
      %c0_18 = arith.constant 0 : index
      %c0_19 = arith.constant 0 : index
      %55 = vector.load %arg7[%c0_18, %c0_19] : memref<8x128xf32, #tpu.memory_space<vmem>>, vector<8x128xf32>
      %56 = vector.extract_strided_slice %55 {offsets = [0, 0], sizes = [8, 64], strides = [1, 1]} : vector<8x128xf32> to vector<8x64xf32>
      %57 = vector.extract_strided_slice %55 {offsets = [0, 64], sizes = [8, 64], strides = [1, 1]} : vector<8x128xf32> to vector<8x64xf32>
      %58 = arith.addf %56, %57 : vector<8x64xf32>
      %59 = vector.extract_strided_slice %58 {offsets = [0, 0], sizes = [8, 32], strides = [1, 1]} : vector<8x64xf32> to vector<8x32xf32>
      %60 = vector.extract_strided_slice %58 {offsets = [0, 32], sizes = [8, 32], strides = [1, 1]} : vector<8x64xf32> to vector<8x32xf32>
      %61 = arith.addf %59, %60 : vector<8x32xf32>
      %62 = vector.extract_strided_slice %61 {offsets = [0, 0], sizes = [8, 16], strides = [1, 1]} : vector<8x32xf32> to vector<8x16xf32>
      %63 = vector.extract_strided_slice %61 {offsets = [0, 16], sizes = [8, 16], strides = [1, 1]} : vector<8x32xf32> to vector<8x16xf32>
      %64 = arith.addf %62, %63 : vector<8x16xf32>
      %c0_20 = arith.constant 0 : index
      %c0_21 = arith.constant 0 : index
      %65 = vector.load %arg6[%c0_20, %c0_21] : memref<8x16xf32, #tpu.memory_space<vmem>>, vector<8x16xf32>
      tpu.vector_store %arg6[%c0_20, %c0_21], %64 {strides = array<i32>} : memref<8x16xf32, #tpu.memory_space<vmem>>, vector<8x16xf32>,
    } else {
    }
    return
  }
  func.func @transform_0(%arg0: i32) -> (i32, i32) {
    %c0_i32 = arith.constant 0 : i32
    %c0_i32_0 = arith.constant 0 : i32
    return %arg0, %c0_i32 : i32, i32
  }
  func.func @transform_1(%arg0: i32) -> (i32, i32) {
    %c0_i32 = arith.constant 0 : i32
    %c0_i32_0 = arith.constant 0 : i32
    return %arg0, %c0_i32 : i32, i32
  }
  func.func @transform_2(%arg0: i32) -> (i32, i32) {
    %c0_i32 = arith.constant 0 : i32
    %c0_i32_0 = arith.constant 0 : i32
    %c0_i32_1 = arith.constant 0 : i32
    return %c0_i32, %c0_i32_0 : i32, i32
  }
  func.func @transform_3(%arg0: i32) -> (i32, i32) {
    %c0_i32 = arith.constant 0 : i32
    %c0_i32_0 = arith.constant 0 : i32
    %c0_i32_1 = arith.constant 0 : i32
    return %c0_i32, %c0_i32_0 : i32, i32
  }
  func.func @transform_4(%arg0: i32) -> (i32, i32) {
    %c0_i32 = arith.constant 0 : i32
    %c0_i32_0 = arith.constant 0 : i32
    %c0_i32_1 = arith.constant 0 : i32
    return %c0_i32, %c0_i32_0 : i32, i32
  }
  func.func @transform_5(%arg0: i32) -> (i32, i32) {
    %c0_i32 = arith.constant 0 : i32
    %c0_i32_0 = arith.constant 0 : i32
    %c0_i32_1 = arith.constant 0 : i32
    return %c0_i32, %c0_i32_0 : i32, i32
  }
}

</mosaic_0001>

<llo_original>
// kernel: tpu_custom_call.1
$region0: #{tpu_custom_call.1}
  #allocation0 [shape = 'u32[]', space=smem, size = 0x4, offset = 0x4, fixed_abs, tag = 'smem constant byte address 0x4 - core index']
  #allocation1 [shape = 'u32[144,128]{1,0:T(1,128)}', space=vmem, size = 0x12000, scoped, tag = 'internal scratch']
  #allocation2 [shape = 'f32[8,128]{1,0:T(8,128)}', space=vmem, size = 0x1000, scoped, tag = 'scratch operand']
  %s0 = inlined_call_operand.vmem [shape: f32[512,16], index: 0, kind: input, shape index: {}]
  %s1 = inlined_call_operand.vmem [shape: f32[512,6], index: 1, kind: input, shape index: {}]
  %s2 = inlined_call_operand.vmem [shape: f32[1,16], index: 2, kind: input, shape index: {}]
  %s3 = inlined_call_operand.vmem [shape: f32[16,1024], index: 3, kind: input, shape index: {}]
  %s4 = inlined_call_operand.vmem [shape: bf16[64,1024], index: 4, kind: input, shape index: {}]
  %s5 = inlined_call_operand.hbm [shape: f32[8,16], index: 5, kind: output, shape index: {}]
  %s6 = sld [smem:[#allocation0]]
  $region61: #{tpu_custom_call.1} parent=0
    _
  %s8 = ssub.s32 1, %s6
  %s9 = scalar_select 0, %s8, %s6
  $region1: #{tpu_custom_call.1} parent=0
    #allocation3 [shape = 'u8[4096]{0}', space=vmem, size = 0x1000, scoped, tag = 'output window, operand 0, single buffered']
    #allocation4 [shape = 's32[2]{0}', space=sflag, size = 0x8, scoped, tag = 'scoped memory for tpu_custom_call.1']
    %10 = vsyncpa [#allocation4], 0
    loop: start=0, step=1, limit=4
    $region2: #{tpu_custom_call.1} parent=1 // loop_pre_header
      _
    $region3: #{tpu_custom_call.1} parent=1 // loop_header
      %s12 = sphi 0, %s16
      %p13 = scmp.ge.s32.totalorder %s12, 4
      %s22 = sphi 0, %s24
      %s25 = sphi 0, %s22
      %s26 = sphi 0, %s25
      %s42 = sphi 0, %s26
      %s48 = sphi 0, %s50
      %s51 = sphi 0, %s48
      %s52 = sphi 0, %s51
      %s68 = sphi 0, %s52
      %s72 = sphi 0, %s72
      %s74 = sphi 0, %s72
      %s75 = sphi 0, %s74
      %s89 = sphi 0, %s75
      %s93 = sphi 0, %s93
      %s95 = sphi 0, %s93
      %s96 = sphi 0, %s95
      %s110 = sphi 0, %s96
      %s114 = sphi 0, %s114
      %s116 = sphi 0, %s114
      %s117 = sphi 0, %s116
      %s131 = sphi 0, %s117
      %s135 = sphi 0, %s135
      %s137 = sphi 0, %s135
      %s138 = sphi 0, %s137
      %s152 = sphi 0, %s138
    $region4: #{tpu_custom_call.1} parent=1 // loop_header_branch
      %15 = sbr.rel (%p13) target = $region8
    $region5: #{tpu_custom_call.1} parent=1 // loop_body
      %s17 = ssub.s32 %s12, 1
      %s18 = ssub.s32 %s12, 2
      %s19 = sadd.s32 %s12, 1
      %s20 = ssub.s32 %s12, %s19
      %p21 = scmp.eq.s32.totalorder %s20, 0
      %s23 = sadd.s32 %s22, 1
      %s24 = scalar_select %p21, %s22, %s23
      %p27 = pneg %p21
      %p28 = scmp.eq.s32.totalorder %s12, 1
      %p29 = por %p27, %p28
      %p30 = scmp.ne.s32.totalorder %s22, %s25
      %p31 = scmp.eq.s32.totalorder %s12, 0
      %p32 = por %p30, %p31
      %p33 = scmp.ne.s32.totalorder %s22, %s25
      %p34 = scmp.eq.s32.totalorder %s17, 1
      %p35 = por %p33, %p34
      %p36 = scmp.ne.s32.totalorder %s25, %s26
      %p37 = scmp.eq.s32.totalorder %s17, 0
      %p38 = por %p36, %p37
      %p39 = scmp.ne.s32.totalorder %s25, %s26
      %p40 = scmp.eq.s32.totalorder %s18, 1
      %p41 = por %p39, %p40
      %p43 = scmp.ne.s32.totalorder %s26, %s42
      %p44 = scmp.eq.s32.totalorder %s18, 0
      %p45 = por %p43, %p44
      %s46 = ssub.s32 %s12, %s19
      %p47 = scmp.eq.s32.totalorder %s46, 0
      %s49 = sadd.s32 %s48, 1
      %s50 = scalar_select %p47, %s48, %s49
      %p53 = pneg %p47
      %p54 = scmp.eq.s32.totalorder %s12, 1
      %p55 = por %p53, %p54
      %p56 = scmp.ne.s32.totalorder %s48, %s51
      %p57 = scmp.eq.s32.totalorder %s12, 0
      %p58 = por %p56, %p57
      %p59 = scmp.ne.s32.totalorder %s48, %s51
      %p60 = scmp.eq.s32.totalorder %s17, 1
      %p61 = por %p59, %p60
      %p62 = scmp.ne.s32.totalorder %s51, %s52
      %p63 = scmp.eq.s32.totalorder %s17, 0
      %p64 = por %p62, %p63
      %p65 = scmp.ne.s32.totalorder %s51, %s52
      %p66 = scmp.eq.s32.totalorder %s18, 1
      %p67 = por %p65, %p66
      %p69 = scmp.ne.s32.totalorder %s52, %s68
      %p70 = scmp.eq.s32.totalorder %s18, 0
      %p71 = por %p69, %p70
      %s73 = sadd.s32 %s72, 1
      %p76 = scmp.eq.s32.totalorder %s12, 1
      %p77 = scmp.ne.s32.totalorder %s72, %s74
      %p78 = scmp.eq.s32.totalorder %s12, 0
      %p79 = por %p77, %p78
      %p80 = scmp.ne.s32.totalorder %s72, %s74
      %p81 = scmp.eq.s32.totalorder %s17, 1
      %p82 = por %p80, %p81
      %p83 = scmp.ne.s32.totalorder %s74, %s75
      %p84 = scmp.eq.s32.totalorder %s17, 0
      %p85 = por %p83, %p84
      %p86 = scmp.ne.s32.totalorder %s74, %s75
      %p87 = scmp.eq.s32.totalorder %s18, 1
      %p88 = por %p86, %p87
      %p90 = scmp.ne.s32.totalorder %s75, %s89
      %p91 = scmp.eq.s32.totalorder %s18, 0
      %p92 = por %p90, %p91
      %s94 = sadd.s32 %s93, 1
      %p97 = scmp.eq.s32.totalorder %s12, 1
      %p98 = scmp.ne.s32.totalorder %s93, %s95
      %p99 = scmp.eq.s32.totalorder %s12, 0
      %p100 = por %p98, %p99
      %p101 = scmp.ne.s32.totalorder %s93, %s95
      %p102 = scmp.eq.s32.totalorder %s17, 1
      %p103 = por %p101, %p102
      %p104 = scmp.ne.s32.totalorder %s95, %s96
      %p105 = scmp.eq.s32.totalorder %s17, 0
      %p106 = por %p104, %p105
      %p107 = scmp.ne.s32.totalorder %s95, %s96
      %p108 = scmp.eq.s32.totalorder %s18, 1
      %p109 = por %p107, %p108
      %p111 = scmp.ne.s32.totalorder %s96, %s110
      %p112 = scmp.eq.s32.totalorder %s18, 0
      %p113 = por %p111, %p112
      %s115 = sadd.s32 %s114, 1
      %p118 = scmp.eq.s32.totalorder %s12, 1
      %p119 = scmp.ne.s32.totalorder %s114, %s116
      %p120 = scmp.eq.s32.totalorder %s12, 0
      %p121 = por %p119, %p120
      %p122 = scmp.ne.s32.totalorder %s114, %s116
      %p123 = scmp.eq.s32.totalorder %s17, 1
      %p124 = por %p122, %p123
      %p125 = scmp.ne.s32.totalorder %s116, %s117
      %p126 = scmp.eq.s32.totalorder %s17, 0
      %p127 = por %p125, %p126
      %p128 = scmp.ne.s32.totalorder %s116, %s117
      %p129 = scmp.eq.s32.totalorder %s18, 1
      %p130 = por %p128, %p129
      %p132 = scmp.ne.s32.totalorder %s117, %s131
      %p133 = scmp.eq.s32.totalorder %s18, 0
      %p134 = por %p132, %p133
      %s136 = sadd.s32 %s135, 1
      %p139 = scmp.eq.s32.totalorder %s12, 1
      %p140 = scmp.ne.s32.totalorder %s135, %s137
      %p141 = scmp.eq.s32.totalorder %s12, 0
      %p142 = por %p140, %p141
      %p143 = scmp.ne.s32.totalorder %s135, %s137
      %p144 = scmp.eq.s32.totalorder %s17, 1
      %p145 = por %p143, %p144
      %p146 = scmp.ne.s32.totalorder %s137, %s138
      %p147 = scmp.eq.s32.totalorder %s17, 0
      %p148 = por %p146, %p147
      %p149 = scmp.ne.s32.totalorder %s137, %s138
      %p150 = scmp.eq.s32.totalorder %s18, 1
      %p151 = por %p149, %p150
      %p153 = scmp.ne.s32.totalorder %s138, %s152
      %p154 = scmp.eq.s32.totalorder %s18, 0
      %p155 = por %p153, %p154
      %p156 = scmp.le.s32.totalorder 1, %s12
      %p157 = scmp.lt.s32.totalorder %s12, 3
      %p158 = pnand %p156, %p157
      %p159 = pneg %p158
      // Predicated region
      $region9: #{tpu_custom_call.1} parent=5 // pred_check
        _
      $region10: #{tpu_custom_call.1} parent=5 // pred_check_branch
        %161 = sbr.rel (%p158) target = $region12
      $region11: #{tpu_custom_call.1} parent=5 // pred_region
        %s162 = ssub.s32 %s12, 1
        // Predicated region
        $region13: #{tpu_custom_call.1} parent=11 // pred_check
          %p163 = pneg %p85
        $region14: #{tpu_custom_call.1} parent=11 // pred_check_branch
          %165 = sbr.rel (%p163) target = $region16
        $region15: #{tpu_custom_call.1} parent=11 // pred_region
          _
        $region16: #{tpu_custom_call.1} parent=11 // pred_fallthru
          _
        // Predicated region
        $region17: #{tpu_custom_call.1} parent=11 // pred_check
          %p166 = pneg %p106
        $region18: #{tpu_custom_call.1} parent=11 // pred_check_branch
          %168 = sbr.rel (%p166) target = $region20
        $region19: #{tpu_custom_call.1} parent=11 // pred_region
          _
        $region20: #{tpu_custom_call.1} parent=11 // pred_fallthru
          _
        // Predicated region
        $region21: #{tpu_custom_call.1} parent=11 // pred_check
          %p169 = pneg %p127
        $region22: #{tpu_custom_call.1} parent=11 // pred_check_branch
          %171 = sbr.rel (%p169) target = $region24
        $region23: #{tpu_custom_call.1} parent=11 // pred_region
          _
        $region24: #{tpu_custom_call.1} parent=11 // pred_fallthru
          _
      $region12: #{tpu_custom_call.1} parent=5 // pred_fallthru
        _
      %p172 = scmp.lt.s32.totalorder %s12, 2
      // Predicated region
      $region25: #{tpu_custom_call.1} parent=5 // pred_check
        %p173 = pneg %p172
      $region26: #{tpu_custom_call.1} parent=5 // pred_check_branch
        %175 = sbr.rel (%p173) target = $region28
      $region27: #{tpu_custom_call.1} parent=5 // pred_region
        // Predicated region
        $region29: #{tpu_custom_call.1} parent=27 // pred_check
          %p176 = pneg %p32
        $region30: #{tpu_custom_call.1} parent=27 // pred_check_branch
          %178 = sbr.rel (%p176) target = $region32
        $region31: #{tpu_custom_call.1} parent=27 // pred_region
          %s179 = smul.u32 32, %s12
          %p180 = scmp.lt.s32.totalorder %s179, 63
          %s181 = scalar_select %p180, %s179, 63
          %s182 = smul.addr %s181, 8
          %s183 = scalar_lea.vmem %s0, %s182
          %s184 = smul.u32 32, %s12
        $region32: #{tpu_custom_call.1} parent=27 // pred_fallthru
          _
        // Predicated region
        $region33: #{tpu_custom_call.1} parent=27 // pred_check
          %p185 = pneg %p58
        $region34: #{tpu_custom_call.1} parent=27 // pred_check_branch
          %187 = sbr.rel (%p185) target = $region36
        $region35: #{tpu_custom_call.1} parent=27 // pred_region
          %s188 = smul.u32 32, %s12
          %p189 = scmp.lt.s32.totalorder %s188, 63
          %s190 = scalar_select %p189, %s188, 63
          %s191 = smul.addr %s190, 8
          %s192 = scalar_lea.vmem %s1, %s191
          %s193 = smul.u32 32, %s12
        $region36: #{tpu_custom_call.1} parent=27 // pred_fallthru
          _
      $region28: #{tpu_custom_call.1} parent=5 // pred_fallthru
        _
      %p194 = scmp.le.s32.totalorder 1, %s12
      %p195 = scmp.lt.s32.totalorder %s12, 3
      %p196 = pnand %p194, %p195
      %p197 = pneg %p196
      // Predicated region
      $region37: #{tpu_custom_call.1} parent=5 // pred_check
        _
      $region38: #{tpu_custom_call.1} parent=5 // pred_check_branch
        %199 = sbr.rel (%p196) target = $region40
      $region39: #{tpu_custom_call.1} parent=5 // pred_region
        %s200 = ssub.s32 %s12, 1
        %s201 = smul.u32 32, %s17
        %p202 = scmp.lt.s32.totalorder %s201, 63
        %s203 = scalar_select %p202, %s201, 63
        %s204 = smul.addr %s203, 8
        %s205 = scalar_lea.vmem %s0, %s204
        %p206 = pneg %p38
        %p207 = pneg %p35
        %s208 = smul.u32 32, %s17
        %p209 = scmp.lt.s32.totalorder %s208, 63
        %s210 = scalar_select %p209, %s208, 63
        %s211 = smul.addr %s210, 8
        %s212 = scalar_lea.vmem %s1, %s211
        %p213 = pneg %p64
        %p214 = pneg %p61
        %p215 = pneg %p85
        %p216 = pneg %p82
        %p217 = pneg %p106
        %p218 = pneg %p103
        %p219 = pneg %p127
        %p220 = pneg %p124
        %p221 = pneg %p148
        %p222 = pneg %p145
        %s223 = smul.u32 32, %s17
        %p224 = scmp.lt.s32.totalorder %s223, 63
        %s225 = scalar_select %p224, %s223, 63
        %s226 = smul.addr %s225, 8
        %s227 = scalar_lea.vmem %s0, %s226
        %s228 = smul.u32 32, %s17
        %s229 = smul.u32 32, %s17
        %p230 = scmp.lt.s32.totalorder %s229, 63
        %s231 = scalar_select %p230, %s229, 63
        %s232 = smul.addr %s231, 8
        %s233 = scalar_lea.vmem %s1, %s232
        %s234 = smul.u32 32, %s17
        %p236 = scmp.eq.s32.totalorder %s17, 0
        // Predicated region
        $region41: #{tpu_custom_call.1} parent=39 // pred_check
          %p237 = pneg %p236
        $region42: #{tpu_custom_call.1} parent=39 // pred_check_branch
          %239 = sbr.rel (%p237) target = $region44
        $region43: #{tpu_custom_call.1} parent=39 // pred_region
          %240 = vst [vmem:[#allocation2] sm:$0xff] 0.0
          %vm241 = vcmask 130048
          %242 = vst.msk [vmem:[#allocation3] sm:$0xff] %vm241, 0.0
        $region44: #{tpu_custom_call.1} parent=39 // pred_fallthru
          _
        %v243 = vld [vmem:[%s233] sm:$0xff]
        %v244 = vld [vmem:[%s233 + $0x8] sm:$0xff]
        %v245 = vld [vmem:[%s233 + $0x10] sm:$0xff]
        %v246 = vld [vmem:[%s233 + $0x18] sm:$0xff]
        %v247 = vld [vmem:[%s233 + $0x20] sm:$0xff]
        %v248 = vld [vmem:[%s233 + $0x28] sm:$0xff]
        %v249 = vld [vmem:[%s233 + $0x30] sm:$0xff]
        %v250 = vld [vmem:[%s233 + $0x38] sm:$0xff]
        %v251 = vld [vmem:[%s233 + $0x40] sm:$0xff]
        %v252 = vld [vmem:[%s233 + $0x48] sm:$0xff]
        %v253 = vld [vmem:[%s233 + $0x50] sm:$0xff]
        %v254 = vld [vmem:[%s233 + $0x58] sm:$0xff]
        %v255 = vld [vmem:[%s233 + $0x60] sm:$0xff]
        %v256 = vld [vmem:[%s233 + $0x68] sm:$0xff]
        %v257 = vld [vmem:[%s233 + $0x70] sm:$0xff]
        %v258 = vld [vmem:[%s233 + $0x78] sm:$0xff]
        %v259 = vld [vmem:[%s233 + $0x80] sm:$0xff]
        %v260 = vld [vmem:[%s233 + $0x88] sm:$0xff]
        %v261 = vld [vmem:[%s233 + $0x90] sm:$0xff]
        %v262 = vld [vmem:[%s233 + $0x98] sm:$0xff]
        %v263 = vld [vmem:[%s233 + $0xa0] sm:$0xff]
        %v264 = vld [vmem:[%s233 + $0xa8] sm:$0xff]
        %v265 = vld [vmem:[%s233 + $0xb0] sm:$0xff]
        %v266 = vld [vmem:[%s233 + $0xb8] sm:$0xff]
        %v267 = vld [vmem:[%s233 + $0xc0] sm:$0xff]
        %v268 = vld [vmem:[%s233 + $0xc8] sm:$0xff]
        %v269 = vld [vmem:[%s233 + $0xd0] sm:$0xff]
        %v270 = vld [vmem:[%s233 + $0xd8] sm:$0xff]
        %v271 = vld [vmem:[%s233 + $0xe0] sm:$0xff]
        %v272 = vld [vmem:[%s233 + $0xe8] sm:$0xff]
        %v273 = vld [vmem:[%s233 + $0xf0] sm:$0xff]
        %v274 = vld [vmem:[%s233 + $0xf8] sm:$0xff]
        %v275 = vcvt.f32.s32.to.zero.pseudo %v243
        %v276 = vcvt.f32.s32.to.zero.pseudo %v244
        %v277 = vcvt.f32.s32.to.zero.pseudo %v245
        %v278 = vcvt.f32.s32.to.zero.pseudo %v246
        %v279 = vcvt.f32.s32.to.zero.pseudo %v247
        %v280 = vcvt.f32.s32.to.zero.pseudo %v248
        %v281 = vcvt.f32.s32.to.zero.pseudo %v249
        %v282 = vcvt.f32.s32.to.zero.pseudo %v250
        %v283 = vcvt.f32.s32.to.zero.pseudo %v251
        %v284 = vcvt.f32.s32.to.zero.pseudo %v252
        %v285 = vcvt.f32.s32.to.zero.pseudo %v253
        %v286 = vcvt.f32.s32.to.zero.pseudo %v254
        %v287 = vcvt.f32.s32.to.zero.pseudo %v255
        %v288 = vcvt.f32.s32.to.zero.pseudo %v256
        %v289 = vcvt.f32.s32.to.zero.pseudo %v257
        %v290 = vcvt.f32.s32.to.zero.pseudo %v258
        %v291 = vcvt.f32.s32.to.zero.pseudo %v259
        %v292 = vcvt.f32.s32.to.zero.pseudo %v260
        %v293 = vcvt.f32.s32.to.zero.pseudo %v261
        %v294 = vcvt.f32.s32.to.zero.pseudo %v262
        %v295 = vcvt.f32.s32.to.zero.pseudo %v263
        %v296 = vcvt.f32.s32.to.zero.pseudo %v264
        %v297 = vcvt.f32.s32.to.zero.pseudo %v265
        %v298 = vcvt.f32.s32.to.zero.pseudo %v266
        %v299 = vcvt.f32.s32.to.zero.pseudo %v267
        %v300 = vcvt.f32.s32.to.zero.pseudo %v268
        %v301 = vcvt.f32.s32.to.zero.pseudo %v269
        %v302 = vcvt.f32.s32.to.zero.pseudo %v270
        %v303 = vcvt.f32.s32.to.zero.pseudo %v271
        %v304 = vcvt.f32.s32.to.zero.pseudo %v272
        %v305 = vcvt.f32.s32.to.zero.pseudo %v273
        %v306 = vcvt.f32.s32.to.zero.pseudo %v274
        %v307 = vld [vmem:[%s227] sm:$0xff]
        %v308 = vld [vmem:[%s227 + $0x8] sm:$0xff]
        %v309 = vld [vmem:[%s227 + $0x10] sm:$0xff]
        %v310 = vld [vmem:[%s227 + $0x18] sm:$0xff]
        %v311 = vld [vmem:[%s227 + $0x20] sm:$0xff]
        %v312 = vld [vmem:[%s227 + $0x28] sm:$0xff]
        %v313 = vld [vmem:[%s227 + $0x30] sm:$0xff]
        %v314 = vld [vmem:[%s227 + $0x38] sm:$0xff]
        %v315 = vld [vmem:[%s227 + $0x40] sm:$0xff]
        %v316 = vld [vmem:[%s227 + $0x48] sm:$0xff]
        %v317 = vld [vmem:[%s227 + $0x50] sm:$0xff]
        %v318 = vld [vmem:[%s227 + $0x58] sm:$0xff]
        %v319 = vld [vmem:[%s227 + $0x60] sm:$0xff]
        %v320 = vld [vmem:[%s227 + $0x68] sm:$0xff]
        %v321 = vld [vmem:[%s227 + $0x70] sm:$0xff]
        %v322 = vld [vmem:[%s227 + $0x78] sm:$0xff]
        %v323 = vld [vmem:[%s227 + $0x80] sm:$0xff]
        %v324 = vld [vmem:[%s227 + $0x88] sm:$0xff]
        %v325 = vld [vmem:[%s227 + $0x90] sm:$0xff]
        %v326 = vld [vmem:[%s227 + $0x98] sm:$0xff]
        %v327 = vld [vmem:[%s227 + $0xa0] sm:$0xff]
        %v328 = vld [vmem:[%s227 + $0xa8] sm:$0xff]
        %v329 = vld [vmem:[%s227 + $0xb0] sm:$0xff]
        %v330 = vld [vmem:[%s227 + $0xb8] sm:$0xff]
        %v331 = vld [vmem:[%s227 + $0xc0] sm:$0xff]
        %v332 = vld [vmem:[%s227 + $0xc8] sm:$0xff]
        %v333 = vld [vmem:[%s227 + $0xd0] sm:$0xff]
        %v334 = vld [vmem:[%s227 + $0xd8] sm:$0xff]
        %v335 = vld [vmem:[%s227 + $0xe0] sm:$0xff]
        %v336 = vld [vmem:[%s227 + $0xe8] sm:$0xff]
        %v337 = vld [vmem:[%s227 + $0xf0] sm:$0xff]
        %v338 = vld [vmem:[%s227 + $0xf8] sm:$0xff]
        %v339 = vld [vmem:[%s2] sm:$0x1]
        %341 = vset.pattern.permute.xlu0 1
        %342 = vperm.xlu0 %341, %v243
        %v343 = vpop.permute.xlu0 %342
        %346 = vset.pattern.permute.xlu0 1
        %347 = vperm.xlu0 %346, %v244
        %v348 = vpop.permute.xlu0 %347
        %351 = vset.pattern.permute.xlu0 1
        %352 = vperm.xlu0 %351, %v245
        %v353 = vpop.permute.xlu0 %352
        %356 = vset.pattern.permute.xlu0 1
        %357 = vperm.xlu0 %356, %v246
        %v358 = vpop.permute.xlu0 %357
        %361 = vset.pattern.permute.xlu0 1
        %362 = vperm.xlu0 %361, %v247
        %v363 = vpop.permute.xlu0 %362
        %366 = vset.pattern.permute.xlu0 1
        %367 = vperm.xlu0 %366, %v248
        %v368 = vpop.permute.xlu0 %367
        %371 = vset.pattern.permute.xlu0 1
        %372 = vperm.xlu0 %371, %v249
        %v373 = vpop.permute.xlu0 %372
        %376 = vset.pattern.permute.xlu0 1
        %377 = vperm.xlu0 %376, %v250
        %v378 = vpop.permute.xlu0 %377
        %381 = vset.pattern.permute.xlu0 1
        %382 = vperm.xlu0 %381, %v251
        %v383 = vpop.permute.xlu0 %382
        %386 = vset.pattern.permute.xlu0 1
        %387 = vperm.xlu0 %386, %v252
        %v388 = vpop.permute.xlu0 %387
        %391 = vset.pattern.permute.xlu0 1
        %392 = vperm.xlu0 %391, %v253
        %v393 = vpop.permute.xlu0 %392
        %396 = vset.pattern.permute.xlu0 1
        %397 = vperm.xlu0 %396, %v254
        %v398 = vpop.permute.xlu0 %397
        %401 = vset.pattern.permute.xlu0 1
        %402 = vperm.xlu0 %401, %v255
        %v403 = vpop.permute.xlu0 %402
        %406 = vset.pattern.permute.xlu0 1
        %407 = vperm.xlu0 %406, %v256
        %v408 = vpop.permute.xlu0 %407
        %411 = vset.pattern.permute.xlu0 1
        %412 = vperm.xlu0 %411, %v257
        %v413 = vpop.permute.xlu0 %412
        %416 = vset.pattern.permute.xlu0 1
        %417 = vperm.xlu0 %416, %v258
        %v418 = vpop.permute.xlu0 %417
        %421 = vset.pattern.permute.xlu0 1
        %422 = vperm.xlu0 %421, %v259
        %v423 = vpop.permute.xlu0 %422
        %426 = vset.pattern.permute.xlu0 1
        %427 = vperm.xlu0 %426, %v260
        %v428 = vpop.permute.xlu0 %427
        %431 = vset.pattern.permute.xlu0 1
        %432 = vperm.xlu0 %431, %v261
        %v433 = vpop.permute.xlu0 %432
        %436 = vset.pattern.permute.xlu0 1
        %437 = vperm.xlu0 %436, %v262
        %v438 = vpop.permute.xlu0 %437
        %441 = vset.pattern.permute.xlu0 1
        %442 = vperm.xlu0 %441, %v263
        %v443 = vpop.permute.xlu0 %442
        %446 = vset.pattern.permute.xlu0 1
        %447 = vperm.xlu0 %446, %v264
        %v448 = vpop.permute.xlu0 %447
        %451 = vset.pattern.permute.xlu0 1
        %452 = vperm.xlu0 %451, %v265
        %v453 = vpop.permute.xlu0 %452
        %456 = vset.pattern.permute.xlu0 1
        %457 = vperm.xlu0 %456, %v266
        %v458 = vpop.permute.xlu0 %457
        %461 = vset.pattern.permute.xlu0 1
        %462 = vperm.xlu0 %461, %v267
        %v463 = vpop.permute.xlu0 %462
        %466 = vset.pattern.permute.xlu0 1
        %467 = vperm.xlu0 %466, %v268
        %v468 = vpop.permute.xlu0 %467
        %471 = vset.pattern.permute.xlu0 1
        %472 = vperm.xlu0 %471, %v269
        %v473 = vpop.permute.xlu0 %472
        %476 = vset.pattern.permute.xlu0 1
        %477 = vperm.xlu0 %476, %v270
        %v478 = vpop.permute.xlu0 %477
        %481 = vset.pattern.permute.xlu0 1
        %482 = vperm.xlu0 %481, %v271
        %v483 = vpop.permute.xlu0 %482
        %486 = vset.pattern.permute.xlu0 1
        %487 = vperm.xlu0 %486, %v272
        %v488 = vpop.permute.xlu0 %487
        %491 = vset.pattern.permute.xlu0 1
        %492 = vperm.xlu0 %491, %v273
        %v493 = vpop.permute.xlu0 %492
        %496 = vset.pattern.permute.xlu0 1
        %497 = vperm.xlu0 %496, %v274
        %v498 = vpop.permute.xlu0 %497
        %v501 = vlaneseq
        %v502 = vshrl.u32 %v501, 7
        %v503 = vsub.s32 0, %v502
        %v504 = vrot.slane %v339, %v503
        %v506 = vmul.f32 %v343, %v504
        %v507 = vmul.f32 %v348, %v504
        %v508 = vmul.f32 %v353, %v504
        %v509 = vmul.f32 %v358, %v504
        %v510 = vmul.f32 %v363, %v504
        %v511 = vmul.f32 %v368, %v504
        %v512 = vmul.f32 %v373, %v504
        %v513 = vmul.f32 %v378, %v504
        %v514 = vmul.f32 %v383, %v504
        %v515 = vmul.f32 %v388, %v504
        %v516 = vmul.f32 %v393, %v504
        %v517 = vmul.f32 %v398, %v504
        %v518 = vmul.f32 %v403, %v504
        %v519 = vmul.f32 %v408, %v504
        %v520 = vmul.f32 %v413, %v504
        %v521 = vmul.f32 %v418, %v504
        %v522 = vmul.f32 %v423, %v504
        %v523 = vmul.f32 %v428, %v504
        %v524 = vmul.f32 %v433, %v504
        %v525 = vmul.f32 %v438, %v504
        %v526 = vmul.f32 %v443, %v504
        %v527 = vmul.f32 %v448, %v504
        %v528 = vmul.f32 %v453, %v504
        %v529 = vmul.f32 %v458, %v504
        %v530 = vmul.f32 %v463, %v504
        %v531 = vmul.f32 %v468, %v504
        %v532 = vmul.f32 %v473, %v504
        %v533 = vmul.f32 %v478, %v504
        %v534 = vmul.f32 %v483, %v504
        %v535 = vmul.f32 %v488, %v504
        %v536 = vmul.f32 %v493, %v504
        %v537 = vmul.f32 %v498, %v504
        %v538 = vmax.f32 %v506, 0.0
        %v539 = vmax.f32 %v507, 0.0
        %v540 = vmax.f32 %v508, 0.0
        %v541 = vmax.f32 %v509, 0.0
        %v542 = vmax.f32 %v510, 0.0
        %v543 = vmax.f32 %v511, 0.0
        %v544 = vmax.f32 %v512, 0.0
        %v545 = vmax.f32 %v513, 0.0
        %v546 = vmax.f32 %v514, 0.0
        %v547 = vmax.f32 %v515, 0.0
        %v548 = vmax.f32 %v516, 0.0
        %v549 = vmax.f32 %v517, 0.0
        %v550 = vmax.f32 %v518, 0.0
        %v551 = vmax.f32 %v519, 0.0
        %v552 = vmax.f32 %v520, 0.0
        %v553 = vmax.f32 %v521, 0.0
        %v554 = vmax.f32 %v522, 0.0
        %v555 = vmax.f32 %v523, 0.0
        %v556 = vmax.f32 %v524, 0.0
        %v557 = vmax.f32 %v525, 0.0
        %v558 = vmax.f32 %v526, 0.0
        %v559 = vmax.f32 %v527, 0.0
        %v560 = vmax.f32 %v528, 0.0
        %v561 = vmax.f32 %v529, 0.0
        %v562 = vmax.f32 %v530, 0.0
        %v563 = vmax.f32 %v531, 0.0
        %v564 = vmax.f32 %v532, 0.0
        %v565 = vmax.f32 %v533, 0.0
        %v566 = vmax.f32 %v534, 0.0
        %v567 = vmax.f32 %v535, 0.0
        %v568 = vmax.f32 %v536, 0.0
        %v569 = vmax.f32 %v537, 0.0
        %v570 = vld [vmem:[%s3] sm:$0xff]
        %v571 = vld [vmem:[%s3 + $0x8] sm:$0xff]
        %v572 = vld [vmem:[%s3 + $0x10] sm:$0xff]
        %v573 = vld [vmem:[%s3 + $0x18] sm:$0xff]
        %v574 = vld [vmem:[%s3 + $0x20] sm:$0xff]
        %v575 = vld [vmem:[%s3 + $0x28] sm:$0xff]
        %v576 = vld [vmem:[%s3 + $0x30] sm:$0xff]
        %v577 = vld [vmem:[%s3 + $0x38] sm:$0xff]
        %v578 = vld [vmem:[%s3 + $0x40] sm:$0xff]
        %v579 = vld [vmem:[%s3 + $0x48] sm:$0xff]
        %v580 = vld [vmem:[%s3 + $0x50] sm:$0xff]
        %v581 = vld [vmem:[%s3 + $0x58] sm:$0xff]
        %v582 = vld [vmem:[%s3 + $0x60] sm:$0xff]
        %v583 = vld [vmem:[%s3 + $0x68] sm:$0xff]
        %v584 = vld [vmem:[%s3 + $0x70] sm:$0xff]
        %v585 = vld [vmem:[%s3 + $0x78] sm:$0xff]
        %vm586 = vcmask 130048
        %v588 = vsel %vm586, %v538, 0
        %v591 = vsel %vm586, %v539, 0
        %v594 = vsel %vm586, %v540, 0
        %v597 = vsel %vm586, %v541, 0
        %v600 = vsel %vm586, %v542, 0
        %v603 = vsel %vm586, %v543, 0
        %v606 = vsel %vm586, %v544, 0
        %v609 = vsel %vm586, %v545, 0
        %v612 = vsel %vm586, %v546, 0
        %v615 = vsel %vm586, %v547, 0
        %v618 = vsel %vm586, %v548, 0
        %v621 = vsel %vm586, %v549, 0
        %v624 = vsel %vm586, %v550, 0
        %v627 = vsel %vm586, %v551, 0
        %v630 = vsel %vm586, %v552, 0
        %v633 = vsel %vm586, %v553, 0
        %v636 = vsel %vm586, %v554, 0
        %v639 = vsel %vm586, %v555, 0
        %v642 = vsel %vm586, %v556, 0
        %v645 = vsel %vm586, %v557, 0
        %v648 = vsel %vm586, %v558, 0
        %v651 = vsel %vm586, %v559, 0
        %v654 = vsel %vm586, %v560, 0
        %v657 = vsel %vm586, %v561, 0
        %v660 = vsel %vm586, %v562, 0
        %v663 = vsel %vm586, %v563, 0
        %v666 = vsel %vm586, %v564, 0
        %v669 = vsel %vm586, %v565, 0
        %v672 = vsel %vm586, %v566, 0
        %v675 = vsel %vm586, %v567, 0
        %v678 = vsel %vm586, %v568, 0
        %v681 = vsel %vm586, %v569, 0
        %683 = vmatprep.subr.mxu0 %v571
        %684 = vmatpush1.msra.mxu0 %v570
        %685 = vmatprep.subr.mxu0 %v579
        %686 = vmatpush1.msra.mxu0 %v578
        %687 = vmatprep.subr.mxu0 0.0
        %688 = vmatpush1.msra.mxu0 0.0
        %689 = vmatprep.subr.mxu0 0.0
        %690 = vmatpush1.msra.mxu0 0.0
        %691 = vmatprep.subr.mxu0 0.0
        %692 = vmatpush1.msra.mxu0 0.0
        %693 = vmatprep.subr.mxu0 0.0
        %694 = vmatpush1.msra.mxu0 0.0
        %695 = vmatprep.subr.mxu0 0.0
        %696 = vmatpush1.msra.mxu0 0.0
        %697 = vmatprep.subr.mxu0 0.0
        %698 = vmatpush1.msra.mxu0 0.0
        %699 = vmatprep.subr.mxu0 0.0
        %700 = vmatpush1.msra.mxu0 0.0
        %701 = vmatprep.subr.mxu0 0.0
        %702 = vmatpush1.msra.mxu0 0.0
        %703 = vmatprep.subr.mxu0 0.0
        %704 = vmatpush1.msra.mxu0 0.0
        %705 = vmatprep.subr.mxu0 0.0
        %706 = vmatpush1.msra.mxu0 0.0
        %707 = vmatprep.subr.mxu0 0.0
        %708 = vmatpush1.msra.mxu0 0.0
        %709 = vmatprep.subr.mxu0 0.0
        %710 = vmatpush1.msra.mxu0 0.0
        %711 = vmatprep.subr.mxu0 0.0
        %712 = vmatpush1.msra.mxu0 0.0
        %713 = vmatprep.subr.mxu0 0.0
        %714 = vmatpush1.msra.mxu0 0.0
        %715 = vmatprep.subr.mxu0 0.0
        %716 = vmatpush1.msra.mxu0 0.0
        %717 = vmatprep.subr.mxu0 0.0
        %718 = vmatpush1.msra.mxu0 0.0
        %719 = vmatprep.subr.mxu0 0.0
        %720 = vmatpush1.msra.mxu0 0.0
        %721 = vmatprep.subr.mxu0 0.0
        %722 = vmatpush1.msra.mxu0 0.0
        %723 = vmatprep.subr.mxu0 0.0
        %724 = vmatpush1.msra.mxu0 0.0
        %725 = vmatprep.subr.mxu0 0.0
        %726 = vmatpush1.msra.mxu0 0.0
        %727 = vmatprep.subr.mxu0 0.0
        %728 = vmatpush1.msra.mxu0 0.0
        %729 = vmatprep.subr.mxu0 0.0
        %730 = vmatpush1.msra.mxu0 0.0
        %731 = vmatprep.subr.mxu0 0.0
        %732 = vmatpush1.msra.mxu0 0.0
        %733 = vmatprep.subr.mxu0 0.0
        %734 = vmatpush1.msra.mxu0 0.0
        %735 = vmatprep.subr.mxu0 0.0
        %736 = vmatpush1.msra.mxu0 0.0
        %737 = vmatprep.subr.mxu0 0.0
        %738 = vmatpush1.msra.mxu0 0.0
        %739 = vmatprep.subr.mxu0 0.0
        %740 = vmatpush1.msra.mxu0 0.0
        %741 = vmatprep.subr.mxu0 0.0
        %742 = vmatpush1.msra.mxu0 0.0
        %743 = vmatprep.subr.mxu0 0.0
        %744 = vmatpush1.msra.mxu0 0.0
        %745 = vmatprep.subr.mxu0 0.0
        %746 = vmatpush1.msra.mxu0 0.0
        %747 = vmatprep.mubr.f32.mxu0 0.0
        %748 = vmatmul.mubr.f32.gmra.mrb[0].mxu0 %v588
        %v749 = vpop.f32.mrb[0].mxu0
        %v750 = vadd.f32 0.0, %v749
        %v751 = vpop.f32.mrb[0].mxu0
        %v752 = vadd.f32 0.0, %v751
        %753 = vmatprep.mubr.f32.mxu0 0.0
        %754 = vmatmul.mubr.f32.gmra.mrb[0].mxu0 %v591
        %v755 = vpop.f32.mrb[0].mxu0
        %v756 = vadd.f32 0.0, %v755
        %v757 = vpop.f32.mrb[0].mxu0
        %v758 = vadd.f32 0.0, %v757
        %759 = vmatprep.mubr.f32.mxu0 0.0
        %760 = vmatmul.mubr.f32.gmra.mrb[0].mxu0 %v594
        %v761 = vpop.f32.mrb[0].mxu0
        %v762 = vadd.f32 0.0, %v761
        %v763 = vpop.f32.mrb[0].mxu0
        %v764 = vadd.f32 0.0, %v763
        %765 = vmatprep.mubr.f32.mxu0 0.0
        %766 = vmatmul.mubr.f32.gmra.mrb[0].mxu0 %v597
        %v767 = vpop.f32.mrb[0].mxu0
        %v768 = vadd.f32 0.0, %v767
        %v769 = vpop.f32.mrb[0].mxu0
        %v770 = vadd.f32 0.0, %v769
        %771 = vmatprep.mubr.f32.mxu0 0.0
        %772 = vmatmul.mubr.f32.gmra.mrb[0].mxu0 %v600
        %v773 = vpop.f32.mrb[0].mxu0
        %v774 = vadd.f32 0.0, %v773
        %v775 = vpop.f32.mrb[0].mxu0
        %v776 = vadd.f32 0.0, %v775
        %777 = vmatprep.mubr.f32.mxu0 0.0
        %778 = vmatmul.mubr.f32.gmra.mrb[0].mxu0 %v603
        %v779 = vpop.f32.mrb[0].mxu0
        %v780 = vadd.f32 0.0, %v779
        %v781 = vpop.f32.mrb[0].mxu0
        %v782 = vadd.f32 0.0, %v781
        %783 = vmatprep.mubr.f32.mxu0 0.0
        %784 = vmatmul.mubr.f32.gmra.mrb[0].mxu0 %v606
        %v785 = vpop.f32.mrb[0].mxu0
        %v786 = vadd.f32 0.0, %v785
        %v787 = vpop.f32.mrb[0].mxu0
        %v788 = vadd.f32 0.0, %v787
        %789 = vmatprep.mubr.f32.mxu0 0.0
        %790 = vmatmul.mubr.f32.gmra.mrb[0].mxu0 %v609
        %v791 = vpop.f32.mrb[0].mxu0
        %v792 = vadd.f32 0.0, %v791
        %v793 = vpop.f32.mrb[0].mxu0
        %v794 = vadd.f32 0.0, %v793
        %795 = vmatprep.mubr.f32.mxu0 0.0
        %796 = vmatmul.mubr.f32.gmra.mrb[0].mxu0 %v612
        %v797 = vpop.f32.mrb[0].mxu0
        %v798 = vadd.f32 0.0, %v797
        %v799 = vpop.f32.mrb[0].mxu0
        %v800 = vadd.f32 0.0, %v799
        %801 = vmatprep.mubr.f32.mxu0 0.0
        %802 = vmatmul.mubr.f32.gmra.mrb[0].mxu0 %v615
        %v803 = vpop.f32.mrb[0].mxu0
        %v804 = vadd.f32 0.0, %v803
        %v805 = vpop.f32.mrb[0].mxu0
        %v806 = vadd.f32 0.0, %v805
        %807 = vmatprep.mubr.f32.mxu0 0.0
        %808 = vmatmul.mubr.f32.gmra.mrb[0].mxu0 %v618
        %v809 = vpop.f32.mrb[0].mxu0
        %v810 = vadd.f32 0.0, %v809
        %v811 = vpop.f32.mrb[0].mxu0
        %v812 = vadd.f32 0.0, %v811
        %813 = vmatprep.mubr.f32.mxu0 0.0
        %814 = vmatmul.mubr.f32.gmra.mrb[0].mxu0 %v621
        %v815 = vpop.f32.mrb[0].mxu0
        %v816 = vadd.f32 0.0, %v815
        %v817 = vpop.f32.mrb[0].mxu0
        %v818 = vadd.f32 0.0, %v817
        %819 = vmatprep.mubr.f32.mxu0 0.0
        %820 = vmatmul.mubr.f32.gmra.mrb[0].mxu0 %v624
        %v821 = vpop.f32.mrb[0].mxu0
        %v822 = vadd.f32 0.0, %v821
        %v823 = vpop.f32.mrb[0].mxu0
        %v824 = vadd.f32 0.0, %v823
        %825 = vmatprep.mubr.f32.mxu0 0.0
        %826 = vmatmul.mubr.f32.gmra.mrb[0].mxu0 %v627
        %v827 = vpop.f32.mrb[0].mxu0
        %v828 = vadd.f32 0.0, %v827
        %v829 = vpop.f32.mrb[0].mxu0
        %v830 = vadd.f32 0.0, %v829
        %831 = vmatprep.mubr.f32.mxu0 0.0
        %832 = vmatmul.mubr.f32.gmra.mrb[0].mxu0 %v630
        %v833 = vpop.f32.mrb[0].mxu0
        %v834 = vadd.f32 0.0, %v833
        %v835 = vpop.f32.mrb[0].mxu0
        %v836 = vadd.f32 0.0, %v835
        %837 = vmatprep.mubr.f32.mxu0 0.0
        %838 = vmatmul.mubr.f32.gmra.mrb[0].mxu0 %v633
        %v839 = vpop.f32.mrb[0].mxu0
        %v840 = vadd.f32 0.0, %v839
        %v841 = vpop.f32.mrb[0].mxu0
        %v842 = vadd.f32 0.0, %v841
        %843 = vmatprep.mubr.f32.mxu0 0.0
        %844 = vmatmul.mubr.f32.gmra.mrb[0].mxu0 %v636
        %v845 = vpop.f32.mrb[0].mxu0
        %v846 = vadd.f32 0.0, %v845
        %v847 = vpop.f32.mrb[0].mxu0
        %v848 = vadd.f32 0.0, %v847
        %849 = vmatprep.mubr.f32.mxu0 0.0
        %850 = vmatmul.mubr.f32.gmra.mrb[0].mxu0 %v639
        %v851 = vpop.f32.mrb[0].mxu0
        %v852 = vadd.f32 0.0, %v851
        %v853 = vpop.f32.mrb[0].mxu0
        %v854 = vadd.f32 0.0, %v853
        %855 = vmatprep.mubr.f32.mxu0 0.0
        %856 = vmatmul.mubr.f32.gmra.mrb[0].mxu0 %v642
        %v857 = vpop.f32.mrb[0].mxu0
        %v858 = vadd.f32 0.0, %v857
        %v859 = vpop.f32.mrb[0].mxu0
        %v860 = vadd.f32 0.0, %v859
        %861 = vmatprep.mubr.f32.mxu0 0.0
        %862 = vmatmul.mubr.f32.gmra.mrb[0].mxu0 %v645
        %v863 = vpop.f32.mrb[0].mxu0
        %v864 = vadd.f32 0.0, %v863
        %v865 = vpop.f32.mrb[0].mxu0
        %v866 = vadd.f32 0.0, %v865
        %867 = vmatprep.mubr.f32.mxu0 0.0
        %868 = vmatmul.mubr.f32.gmra.mrb[0].mxu0 %v648
        %v869 = vpop.f32.mrb[0].mxu0
        %v870 = vadd.f32 0.0, %v869
        %v871 = vpop.f32.mrb[0].mxu0
        %v872 = vadd.f32 0.0, %v871
        %873 = vmatprep.mubr.f32.mxu0 0.0
        %874 = vmatmul.mubr.f32.gmra.mrb[0].mxu0 %v651
        %v875 = vpop.f32.mrb[0].mxu0
        %v876 = vadd.f32 0.0, %v875
        %v877 = vpop.f32.mrb[0].mxu0
        %v878 = vadd.f32 0.0, %v877
        %879 = vmatprep.mubr.f32.mxu0 0.0
        %880 = vmatmul.mubr.f32.gmra.mrb[0].mxu0 %v654
        %v881 = vpop.f32.mrb[0].mxu0
        %v882 = vadd.f32 0.0, %v881
        %v883 = vpop.f32.mrb[0].mxu0
        %v884 = vadd.f32 0.0, %v883
        %885 = vmatprep.mubr.f32.mxu0 0.0
        %886 = vmatmul.mubr.f32.gmra.mrb[0].mxu0 %v657
        %v887 = vpop.f32.mrb[0].mxu0
        %v888 = vadd.f32 0.0, %v887
        %v889 = vpop.f32.mrb[0].mxu0
        %v890 = vadd.f32 0.0, %v889
        %891 = vmatprep.mubr.f32.mxu0 0.0
        %892 = vmatmul.mubr.f32.gmra.mrb[0].mxu0 %v660
        %v893 = vpop.f32.mrb[0].mxu0
        %v894 = vadd.f32 0.0, %v893
        %v895 = vpop.f32.mrb[0].mxu0
        %v896 = vadd.f32 0.0, %v895
        %897 = vmatprep.mubr.f32.mxu0 0.0
        %898 = vmatmul.mubr.f32.gmra.mrb[0].mxu0 %v663
        %v899 = vpop.f32.mrb[0].mxu0
        %v900 = vadd.f32 0.0, %v899
        %v901 = vpop.f32.mrb[0].mxu0
        %v902 = vadd.f32 0.0, %v901
        %903 = vmatprep.mubr.f32.mxu0 0.0
        %904 = vmatmul.mubr.f32.gmra.mrb[0].mxu0 %v666
        %v905 = vpop.f32.mrb[0].mxu0
        %v906 = vadd.f32 0.0, %v905
        %v907 = vpop.f32.mrb[0].mxu0
        %v908 = vadd.f32 0.0, %v907
        %909 = vmatprep.mubr.f32.mxu0 0.0
        %910 = vmatmul.mubr.f32.gmra.mrb[0].mxu0 %v669
        %v911 = vpop.f32.mrb[0].mxu0
        %v912 = vadd.f32 0.0, %v911
        %v913 = vpop.f32.mrb[0].mxu0
        %v914 = vadd.f32 0.0, %v913
        %915 = vmatprep.mubr.f32.mxu0 0.0
        %916 = vmatmul.mubr.f32.gmra.mrb[0].mxu0 %v672
        %v917 = vpop.f32.mrb[0].mxu0
        %v918 = vadd.f32 0.0, %v917
        %v919 = vpop.f32.mrb[0].mxu0
        %v920 = vadd.f32 0.0, %v919
        %921 = vmatprep.mubr.f32.mxu0 0.0
        %922 = vmatmul.mubr.f32.gmra.mrb[0].mxu0 %v675
        %v923 = vpop.f32.mrb[0].mxu0
        %v924 = vadd.f32 0.0, %v923
        %v925 = vpop.f32.mrb[0].mxu0
        %v926 = vadd.f32 0.0, %v925
        %927 = vmatprep.mubr.f32.mxu0 0.0
        %928 = vmatmul.mubr.f32.gmra.mrb[0].mxu0 %v678
        %v929 = vpop.f32.mrb[0].mxu0
        %v930 = vadd.f32 0.0, %v929
        %v931 = vpop.f32.mrb[0].mxu0
        %v932 = vadd.f32 0.0, %v931
        %933 = vmatprep.mubr.f32.mxu0 0.0
        %934 = vmatmul.mubr.f32.gmra.mrb[0].mxu0 %v681
        %v935 = vpop.f32.mrb[0].mxu0
        %v936 = vadd.f32 0.0, %v935
        %v937 = vpop.f32.mrb[0].mxu0
        %v938 = vadd.f32 0.0, %v937
        %939 = vdwg.mxu0
        %940 = vmatprep.subr.mxu0 %v573
        %941 = vmatpush1.msra.mxu0 %v572
        %942 = vmatprep.subr.mxu0 %v581
        %943 = vmatpush1.msra.mxu0 %v580
        %944 = vmatprep.subr.mxu0 0.0
        %945 = vmatpush1.msra.mxu0 0.0
        %946 = vmatprep.subr.mxu0 0.0
        %947 = vmatpush1.msra.mxu0 0.0
        %948 = vmatprep.subr.mxu0 0.0
        %949 = vmatpush1.msra.mxu0 0.0
        %950 = vmatprep.subr.mxu0 0.0
        %951 = vmatpush1.msra.mxu0 0.0
        %952 = vmatprep.subr.mxu0 0.0
        %953 = vmatpush1.msra.mxu0 0.0
        %954 = vmatprep.subr.mxu0 0.0
        %955 = vmatpush1.msra.mxu0 0.0
        %956 = vmatprep.subr.mxu0 0.0
        %957 = vmatpush1.msra.mxu0 0.0
        %958 = vmatprep.subr.mxu0 0.0
        %959 = vmatpush1.msra.mxu0 0.0
        %960 = vmatprep.subr.mxu0 0.0
        %961 = vmatpush1.msra.mxu0 0.0
        %962 = vmatprep.subr.mxu0 0.0
        %963 = vmatpush1.msra.mxu0 0.0
        %964 = vmatprep.subr.mxu0 0.0
        %965 = vmatpush1.msra.mxu0 0.0
        %966 = vmatprep.subr.mxu0 0.0
        %967 = vmatpush1.msra.mxu0 0.0
        %968 = vmatprep.subr.mxu0 0.0
        %969 = vmatpush1.msra.mxu0 0.0
        %970 = vmatprep.subr.mxu0 0.0
        %971 = vmatpush1.msra.mxu0 0.0
        %972 = vmatprep.subr.mxu0 0.0
        %973 = vmatpush1.msra.mxu0 0.0
        %974 = vmatprep.subr.mxu0 0.0
        %975 = vmatpush1.msra.mxu0 0.0
        %976 = vmatprep.subr.mxu0 0.0
        %977 = vmatpush1.msra.mxu0 0.0
        %978 = vmatprep.subr.mxu0 0.0
        %979 = vmatpush1.msra.mxu0 0.0
        %980 = vmatprep.subr.mxu0 0.0
        %981 = vmatpush1.msra.mxu0 0.0
        %982 = vmatprep.subr.mxu0 0.0
        %983 = vmatpush1.msra.mxu0 0.0
        %984 = vmatprep.subr.mxu0 0.0
        %985 = vmatpush1.msra.mxu0 0.0
        %986 = vmatprep.subr.mxu0 0.0
        %987 = vmatpush1.msra.mxu0 0.0
        %988 = vmatprep.subr.mxu0 0.0
        %989 = vmatpush1.msra.mxu0 0.0
        %990 = vmatprep.subr.mxu0 0.0
        %991 = vmatpush1.msra.mxu0 0.0
        %992 = vmatprep.subr.mxu0 0.0
        %993 = vmatpush1.msra.mxu0 0.0
        %994 = vmatprep.subr.mxu0 0.0
        %995 = vmatpush1.msra.mxu0 0.0
        %996 = vmatprep.subr.mxu0 0.0
        %997 = vmatpush1.msra.mxu0 0.0
        %998 = vmatprep.subr.mxu0 0.0
        %999 = vmatpush1.msra.mxu0 0.0
        %1000 = vmatprep.subr.mxu0 0.0
        %1001 = vmatpush1.msra.mxu0 0.0
        %1002 = vmatprep.subr.mxu0 0.0
        %1003 = vmatpush1.msra.mxu0 0.0
        %1004 = vmatprep.mubr.f32.mxu0 0.0
        %1005 = vmatmul.mubr.f32.gmra.mrb[0].mxu0 %v588
        %v1006 = vpop.f32.mrb[0].mxu0
        %v1007 = vadd.f32 0.0, %v1006
        %v1008 = vpop.f32.mrb[0].mxu0
        %v1009 = vadd.f32 0.0, %v1008
        %1010 = vmatprep.mubr.f32.mxu0 0.0
        %1011 = vmatmul.mubr.f32.gmra.mrb[0].mxu0 %v591
        %v1012 = vpop.f32.mrb[0].mxu0
        %v1013 = vadd.f32 0.0, %v1012
        %v1014 = vpop.f32.mrb[0].mxu0
        %v1015 = vadd.f32 0.0, %v1014
        %1016 = vmatprep.mubr.f32.mxu0 0.0
        %1017 = vmatmul.mubr.f32.gmra.mrb[0].mxu0 %v594
        %v1018 = vpop.f32.mrb[0].mxu0
        %v1019 = vadd.f32 0.0, %v1018
        %v1020 = vpop.f32.mrb[0].mxu0
        %v1021 = vadd.f32 0.0, %v1020
        %1022 = vmatprep.mubr.f32.mxu0 0.0
        %1023 = vmatmul.mubr.f32.gmra.mrb[0].mxu0 %v597
        %v1024 = vpop.f32.mrb[0].mxu0
        %v1025 = vadd.f32 0.0, %v1024
        %v1026 = vpop.f32.mrb[0].mxu0
        %v1027 = vadd.f32 0.0, %v1026
        %1028 = vmatprep.mubr.f32.mxu0 0.0
        %1029 = vmatmul.mubr.f32.gmra.mrb[0].mxu0 %v600
        %v1030 = vpop.f32.mrb[0].mxu0
        %v1031 = vadd.f32 0.0, %v1030
        %v1032 = vpop.f32.mrb[0].mxu0
        %v1033 = vadd.f32 0.0, %v1032
        %1034 = vmatprep.mubr.f32.mxu0 0.0
        %1035 = vmatmul.mubr.f32.gmra.mrb[0].mxu0 %v603
        %v1036 = vpop.f32.mrb[0].mxu0
        %v1037 = vadd.f32 0.0, %v1036
        %v1038 = vpop.f32.mrb[0].mxu0
        %v1039 = vadd.f32 0.0, %v1038
        %1040 = vmatprep.mubr.f32.mxu0 0.0
        %1041 = vmatmul.mubr.f32.gmra.mrb[0].mxu0 %v606
        %v1042 = vpop.f32.mrb[0].mxu0
        %v1043 = vadd.f32 0.0, %v1042
        %v1044 = vpop.f32.mrb[0].mxu0
        %v1045 = vadd.f32 0.0, %v1044
        %1046 = vmatprep.mubr.f32.mxu0 0.0
        %1047 = vmatmul.mubr.f32.gmra.mrb[0].mxu0 %v609
        %v1048 = vpop.f32.mrb[0].mxu0
        %v1049 = vadd.f32 0.0, %v1048
        %v1050 = vpop.f32.mrb[0].mxu0
        %v1051 = vadd.f32 0.0, %v1050
        %1052 = vmatprep.mubr.f32.mxu0 0.0
        %1053 = vmatmul.mubr.f32.gmra.mrb[0].mxu0 %v612
        %v1054 = vpop.f32.mrb[0].mxu0
        %v1055 = vadd.f32 0.0, %v1054
        %v1056 = vpop.f32.mrb[0].mxu0
        %v1057 = vadd.f32 0.0, %v1056
        %1058 = vmatprep.mubr.f32.mxu0 0.0
        %1059 = vmatmul.mubr.f32.gmra.mrb[0].mxu0 %v615
        %v1060 = vpop.f32.mrb[0].mxu0
        %v1061 = vadd.f32 0.0, %v1060
        %v1062 = vpop.f32.mrb[0].mxu0
        %v1063 = vadd.f32 0.0, %v1062
        %1064 = vmatprep.mubr.f32.mxu0 0.0
        %1065 = vmatmul.mubr.f32.gmra.mrb[0].mxu0 %v618
        %v1066 = vpop.f32.mrb[0].mxu0
        %v1067 = vadd.f32 0.0, %v1066
        %v1068 = vpop.f32.mrb[0].mxu0
        %v1069 = vadd.f32 0.0, %v1068
        %1070 = vmatprep.mubr.f32.mxu0 0.0
        %1071 = vmatmul.mubr.f32.gmra.mrb[0].mxu0 %v621
        %v1072 = vpop.f32.mrb[0].mxu0
        %v1073 = vadd.f32 0.0, %v1072
        %v1074 = vpop.f32.mrb[0].mxu0
        %v1075 = vadd.f32 0.0, %v1074
        %1076 = vmatprep.mubr.f32.mxu0 0.0
        %1077 = vmatmul.mubr.f32.gmra.mrb[0].mxu0 %v624
        %v1078 = vpop.f32.mrb[0].mxu0
        %v1079 = vadd.f32 0.0, %v1078
        %v1080 = vpop.f32.mrb[0].mxu0
        %v1081 = vadd.f32 0.0, %v1080
        %1082 = vmatprep.mubr.f32.mxu0 0.0
        %1083 = vmatmul.mubr.f32.gmra.mrb[0].mxu0 %v627
        %v1084 = vpop.f32.mrb[0].mxu0
        %v1085 = vadd.f32 0.0, %v1084
        %v1086 = vpop.f32.mrb[0].mxu0
        %v1087 = vadd.f32 0.0, %v1086
        %1088 = vmatprep.mubr.f32.mxu0 0.0
        %1089 = vmatmul.mubr.f32.gmra.mrb[0].mxu0 %v630
        %v1090 = vpop.f32.mrb[0].mxu0
        %v1091 = vadd.f32 0.0, %v1090
        %v1092 = vpop.f32.mrb[0].mxu0
        %v1093 = vadd.f32 0.0, %v1092
        %1094 = vmatprep.mubr.f32.mxu0 0.0
        %1095 = vmatmul.mubr.f32.gmra.mrb[0].mxu0 %v633
        %v1096 = vpop.f32.mrb[0].mxu0
        %v1097 = vadd.f32 0.0, %v1096
        %v1098 = vpop.f32.mrb[0].mxu0
        %v1099 = vadd.f32 0.0, %v1098
        %1100 = vmatprep.mubr.f32.mxu0 0.0
        %1101 = vmatmul.mubr.f32.gmra.mrb[0].mxu0 %v636
        %v1102 = vpop.f32.mrb[0].mxu0
        %v1103 = vadd.f32 0.0, %v1102
        %v1104 = vpop.f32.mrb[0].mxu0
        %v1105 = vadd.f32 0.0, %v1104
        %1106 = vmatprep.mubr.f32.mxu0 0.0
        %1107 = vmatmul.mubr.f32.gmra.mrb[0].mxu0 %v639
        %v1108 = vpop.f32.mrb[0].mxu0
        %v1109 = vadd.f32 0.0, %v1108
        %v1110 = vpop.f32.mrb[0].mxu0
        %v1111 = vadd.f32 0.0, %v1110
        %1112 = vmatprep.mubr.f32.mxu0 0.0
        %1113 = vmatmul.mubr.f32.gmra.mrb[0].mxu0 %v642
        %v1114 = vpop.f32.mrb[0].mxu0
        %v1115 = vadd.f32 0.0, %v1114
        %v1116 = vpop.f32.mrb[0].mxu0
        %v1117 = vadd.f32 0.0, %v1116
        %1118 = vmatprep.mubr.f32.mxu0 0.0
        %1119 = vmatmul.mubr.f32.gmra.mrb[0].mxu0 %v645
        %v1120 = vpop.f32.mrb[0].mxu0
        %v1121 = vadd.f32 0.0, %v1120
        %v1122 = vpop.f32.mrb[0].mxu0
        %v1123 = vadd.f32 0.0, %v1122
        %1124 = vmatprep.mubr.f32.mxu0 0.0
        %1125 = vmatmul.mubr.f32.gmra.mrb[0].mxu0 %v648
        %v1126 = vpop.f32.mrb[0].mxu0
        %v1127 = vadd.f32 0.0, %v1126
        %v1128 = vpop.f32.mrb[0].mxu0
        %v1129 = vadd.f32 0.0, %v1128
        %1130 = vmatprep.mubr.f32.mxu0 0.0
        %1131 = vmatmul.mubr.f32.gmra.mrb[0].mxu0 %v651
        %v1132 = vpop.f32.mrb[0].mxu0
        %v1133 = vadd.f32 0.0, %v1132
        %v1134 = vpop.f32.mrb[0].mxu0
        %v1135 = vadd.f32 0.0, %v1134
        %1136 = vmatprep.mubr.f32.mxu0 0.0
        %1137 = vmatmul.mubr.f32.gmra.mrb[0].mxu0 %v654
        %v1138 = vpop.f32.mrb[0].mxu0
        %v1139 = vadd.f32 0.0, %v1138
        %v1140 = vpop.f32.mrb[0].mxu0
        %v1141 = vadd.f32 0.0, %v1140
        %1142 = vmatprep.mubr.f32.mxu0 0.0
        %1143 = vmatmul.mubr.f32.gmra.mrb[0].mxu0 %v657
        %v1144 = vpop.f32.mrb[0].mxu0
        %v1145 = vadd.f32 0.0, %v1144
        %v1146 = vpop.f32.mrb[0].mxu0
        %v1147 = vadd.f32 0.0, %v1146
        %1148 = vmatprep.mubr.f32.mxu0 0.0
        %1149 = vmatmul.mubr.f32.gmra.mrb[0].mxu0 %v660
        %v1150 = vpop.f32.mrb[0].mxu0
        %v1151 = vadd.f32 0.0, %v1150
        %v1152 = vpop.f32.mrb[0].mxu0
        %v1153 = vadd.f32 0.0, %v1152
        %1154 = vmatprep.mubr.f32.mxu0 0.0
        %1155 = vmatmul.mubr.f32.gmra.mrb[0].mxu0 %v663
        %v1156 = vpop.f32.mrb[0].mxu0
        %v1157 = vadd.f32 0.0, %v1156
        %v1158 = vpop.f32.mrb[0].mxu0
        %v1159 = vadd.f32 0.0, %v1158
        %1160 = vmatprep.mubr.f32.mxu0 0.0
        %1161 = vmatmul.mubr.f32.gmra.mrb[0].mxu0 %v666
        %v1162 = vpop.f32.mrb[0].mxu0
        %v1163 = vadd.f32 0.0, %v1162
        %v1164 = vpop.f32.mrb[0].mxu0
        %v1165 = vadd.f32 0.0, %v1164
        %1166 = vmatprep.mubr.f32.mxu0 0.0
        %1167 = vmatmul.mubr.f32.gmra.mrb[0].mxu0 %v669
        %v1168 = vpop.f32.mrb[0].mxu0
        %v1169 = vadd.f32 0.0, %v1168
        %v1170 = vpop.f32.mrb[0].mxu0
        %v1171 = vadd.f32 0.0, %v1170
        %1172 = vmatprep.mubr.f32.mxu0 0.0
        %1173 = vmatmul.mubr.f32.gmra.mrb[0].mxu0 %v672
        %v1174 = vpop.f32.mrb[0].mxu0
        %v1175 = vadd.f32 0.0, %v1174
        %v1176 = vpop.f32.mrb[0].mxu0
        %v1177 = vadd.f32 0.0, %v1176
        %1178 = vmatprep.mubr.f32.mxu0 0.0
        %1179 = vmatmul.mubr.f32.gmra.mrb[0].mxu0 %v675
        %v1180 = vpop.f32.mrb[0].mxu0
        %v1181 = vadd.f32 0.0, %v1180
        %v1182 = vpop.f32.mrb[0].mxu0
        %v1183 = vadd.f32 0.0, %v1182
        %1184 = vmatprep.mubr.f32.mxu0 0.0
        %1185 = vmatmul.mubr.f32.gmra.mrb[0].mxu0 %v678
        %v1186 = vpop.f32.mrb[0].mxu0
        %v1187 = vadd.f32 0.0, %v1186
        %v1188 = vpop.f32.mrb[0].mxu0
        %v1189 = vadd.f32 0.0, %v1188
        %1190 = vmatprep.mubr.f32.mxu0 0.0
        %1191 = vmatmul.mubr.f32.gmra.mrb[0].mxu0 %v681
        %v1192 = vpop.f32.mrb[0].mxu0
        %v1193 = vadd.f32 0.0, %v1192
        %v1194 = vpop.f32.mrb[0].mxu0
        %v1195 = vadd.f32 0.0, %v1194
        %1196 = vdwg.mxu0
        %1197 = vmatprep.subr.mxu0 %v575
        %1198 = vmatpush1.msra.mxu0 %v574
        %1199 = vmatprep.subr.mxu0 %v583
        %1200 = vmatpush1.msra.mxu0 %v582
        %1201 = vmatprep.subr.mxu0 0.0
        %1202 = vmatpush1.msra.mxu0 0.0
        %1203 = vmatprep.subr.mxu0 0.0
        %1204 = vmatpush1.msra.mxu0 0.0
        %1205 = vmatprep.subr.mxu0 0.0
        %1206 = vmatpush1.msra.mxu0 0.0
        %1207 = vmatprep.subr.mxu0 0.0
        %1208 = vmatpush1.msra.mxu0 0.0
        %1209 = vmatprep.subr.mxu0 0.0
        %1210 = vmatpush1.msra.mxu0 0.0
        %1211 = vmatprep.subr.mxu0 0.0
        %1212 = vmatpush1.msra.mxu0 0.0
        %1213 = vmatprep.subr.mxu0 0.0
        %1214 = vmatpush1.msra.mxu0 0.0
        %1215 = vmatprep.subr.mxu0 0.0
        %1216 = vmatpush1.msra.mxu0 0.0
        %1217 = vmatprep.subr.mxu0 0.0
        %1218 = vmatpush1.msra.mxu0 0.0
        %1219 = vmatprep.subr.mxu0 0.0
        %1220 = vmatpush1.msra.mxu0 0.0
        %1221 = vmatprep.subr.mxu0 0.0
        %1222 = vmatpush1.msra.mxu0 0.0
        %1223 = vmatprep.subr.mxu0 0.0
        %1224 = vmatpush1.msra.mxu0 0.0
        %1225 = vmatprep.subr.mxu0 0.0
        %1226 = vmatpush1.msra.mxu0 0.0
        %1227 = vmatprep.subr.mxu0 0.0
        %1228 = vmatpush1.msra.mxu0 0.0
        %1229 = vmatprep.subr.mxu0 0.0
        %1230 = vmatpush1.msra.mxu0 0.0
        %1231 = vmatprep.subr.mxu0 0.0
        %1232 = vmatpush1.msra.mxu0 0.0
        %1233 = vmatprep.subr.mxu0 0.0
        %1234 = vmatpush1.msra.mxu0 0.0
        %1235 = vmatprep.subr.mxu0 0.0
        %1236 = vmatpush1.msra.mxu0 0.0
        %1237 = vmatprep.subr.mxu0 0.0
        %1238 = vmatpush1.msra.mxu0 0.0
        %1239 = vmatprep.subr.mxu0 0.0
        %1240 = vmatpush1.msra.mxu0 0.0
        %1241 = vmatprep.subr.mxu0 0.0
        %1242 = vmatpush1.msra.mxu0 0.0
        %1243 = vmatprep.subr.mxu0 0.0
        %1244 = vmatpush1.msra.mxu0 0.0
        %1245 = vmatprep.subr.mxu0 0.0
        %1246 = vmatpush1.msra.mxu0 0.0
        %1247 = vmatprep.subr.mxu0 0.0
        %1248 = vmatpush1.msra.mxu0 0.0
        %1249 = vmatprep.subr.mxu0 0.0
        %1250 = vmatpush1.msra.mxu0 0.0
        %1251 = vmatprep.subr.mxu0 0.0
        %1252 = vmatpush1.msra.mxu0 0.0
        %1253 = vmatprep.subr.mxu0 0.0
        %1254 = vmatpush1.msra.mxu0 0.0
        %1255 = vmatprep.subr.mxu0 0.0
        %1256 = vmatpush1.msra.mxu0 0.0
        %1257 = vmatprep.subr.mxu0 0.0
        %1258 = vmatpush1.msra.mxu0 0.0
        %1259 = vmatprep.subr.mxu0 0.0
        %1260 = vmatpush1.msra.mxu0 0.0
        %1261 = vmatprep.mubr.f32.mxu0 0.0
        %1262 = vmatmul.mubr.f32.gmra.mrb[0].mxu0 %v588
        %v1263 = vpop.f32.mrb[0].mxu0
        %v1264 = vadd.f32 0.0, %v1263
        %v1265 = vpop.f32.mrb[0].mxu0
        %v1266 = vadd.f32 0.0, %v1265
        %1267 = vmatprep.mubr.f32.mxu0 0.0
        %1268 = vmatmul.mubr.f32.gmra.mrb[0].mxu0 %v591
        %v1269 = vpop.f32.mrb[0].mxu0
        %v1270 = vadd.f32 0.0, %v1269
        %v1271 = vpop.f32.mrb[0].mxu0
        %v1272 = vadd.f32 0.0, %v1271
        %1273 = vmatprep.mubr.f32.mxu0 0.0
        %1274 = vmatmul.mubr.f32.gmra.mrb[0].mxu0 %v594
        %v1275 = vpop.f32.mrb[0].mxu0
        %v1276 = vadd.f32 0.0, %v1275
        %v1277 = vpop.f32.mrb[0].mxu0
        %v1278 = vadd.f32 0.0, %v1277
        %1279 = vmatprep.mubr.f32.mxu0 0.0
        %1280 = vmatmul.mubr.f32.gmra.mrb[0].mxu0 %v597
        %v1281 = vpop.f32.mrb[0].mxu0
        %v1282 = vadd.f32 0.0, %v1281
        %v1283 = vpop.f32.mrb[0].mxu0
        %v1284 = vadd.f32 0.0, %v1283
        %1285 = vmatprep.mubr.f32.mxu0 0.0
        %1286 = vmatmul.mubr.f32.gmra.mrb[0].mxu0 %v600
        %v1287 = vpop.f32.mrb[0].mxu0
        %v1288 = vadd.f32 0.0, %v1287
        %v1289 = vpop.f32.mrb[0].mxu0
        %v1290 = vadd.f32 0.0, %v1289
        %1291 = vmatprep.mubr.f32.mxu0 0.0
        %1292 = vmatmul.mubr.f32.gmra.mrb[0].mxu0 %v603
        %v1293 = vpop.f32.mrb[0].mxu0
        %v1294 = vadd.f32 0.0, %v1293
        %v1295 = vpop.f32.mrb[0].mxu0
        %v1296 = vadd.f32 0.0, %v1295
        %1297 = vmatprep.mubr.f32.mxu0 0.0
        %1298 = vmatmul.mubr.f32.gmra.mrb[0].mxu0 %v606
        %v1299 = vpop.f32.mrb[0].mxu0
        %v1300 = vadd.f32 0.0, %v1299
        %v1301 = vpop.f32.mrb[0].mxu0
        %v1302 = vadd.f32 0.0, %v1301
        %1303 = vmatprep.mubr.f32.mxu0 0.0
        %1304 = vmatmul.mubr.f32.gmra.mrb[0].mxu0 %v609
        %v1305 = vpop.f32.mrb[0].mxu0
        %v1306 = vadd.f32 0.0, %v1305
        %v1307 = vpop.f32.mrb[0].mxu0
        %v1308 = vadd.f32 0.0, %v1307
        %1309 = vmatprep.mubr.f32.mxu0 0.0
        %1310 = vmatmul.mubr.f32.gmra.mrb[0].mxu0 %v612
        %v1311 = vpop.f32.mrb[0].mxu0
        %v1312 = vadd.f32 0.0, %v1311
        %v1313 = vpop.f32.mrb[0].mxu0
        %v1314 = vadd.f32 0.0, %v1313
        %1315 = vmatprep.mubr.f32.mxu0 0.0
        %1316 = vmatmul.mubr.f32.gmra.mrb[0].mxu0 %v615
        %v1317 = vpop.f32.mrb[0].mxu0
        %v1318 = vadd.f32 0.0, %v1317
        %v1319 = vpop.f32.mrb[0].mxu0
        %v1320 = vadd.f32 0.0, %v1319
        %1321 = vmatprep.mubr.f32.mxu0 0.0
        %1322 = vmatmul.mubr.f32.gmra.mrb[0].mxu0 %v618
        %v1323 = vpop.f32.mrb[0].mxu0
        %v1324 = vadd.f32 0.0, %v1323
        %v1325 = vpop.f32.mrb[0].mxu0
        %v1326 = vadd.f32 0.0, %v1325
        %1327 = vmatprep.mubr.f32.mxu0 0.0
        %1328 = vmatmul.mubr.f32.gmra.mrb[0].mxu0 %v621
        %v1329 = vpop.f32.mrb[0].mxu0
        %v1330 = vadd.f32 0.0, %v1329
        %v1331 = vpop.f32.mrb[0].mxu0
        %v1332 = vadd.f32 0.0, %v1331
        %1333 = vmatprep.mubr.f32.mxu0 0.0
        %1334 = vmatmul.mubr.f32.gmra.mrb[0].mxu0 %v624
        %v1335 = vpop.f32.mrb[0].mxu0
        %v1336 = vadd.f32 0.0, %v1335
        %v1337 = vpop.f32.mrb[0].mxu0
        %v1338 = vadd.f32 0.0, %v1337
        %1339 = vmatprep.mubr.f32.mxu0 0.0
        %1340 = vmatmul.mubr.f32.gmra.mrb[0].mxu0 %v627
        %v1341 = vpop.f32.mrb[0].mxu0
        %v1342 = vadd.f32 0.0, %v1341
        %v1343 = vpop.f32.mrb[0].mxu0
        %v1344 = vadd.f32 0.0, %v1343
        %1345 = vmatprep.mubr.f32.mxu0 0.0
        %1346 = vmatmul.mubr.f32.gmra.mrb[0].mxu0 %v630
        %v1347 = vpop.f32.mrb[0].mxu0
        %v1348 = vadd.f32 0.0, %v1347
        %v1349 = vpop.f32.mrb[0].mxu0
        %v1350 = vadd.f32 0.0, %v1349
        %1351 = vmatprep.mubr.f32.mxu0 0.0
        %1352 = vmatmul.mubr.f32.gmra.mrb[0].mxu0 %v633
        %v1353 = vpop.f32.mrb[0].mxu0
        %v1354 = vadd.f32 0.0, %v1353
        %v1355 = vpop.f32.mrb[0].mxu0
        %v1356 = vadd.f32 0.0, %v1355
        %1357 = vmatprep.mubr.f32.mxu0 0.0
        %1358 = vmatmul.mubr.f32.gmra.mrb[0].mxu0 %v636
        %v1359 = vpop.f32.mrb[0].mxu0
        %v1360 = vadd.f32 0.0, %v1359
        %v1361 = vpop.f32.mrb[0].mxu0
        %v1362 = vadd.f32 0.0, %v1361
        %1363 = vmatprep.mubr.f32.mxu0 0.0
        %1364 = vmatmul.mubr.f32.gmra.mrb[0].mxu0 %v639
        %v1365 = vpop.f32.mrb[0].mxu0
        %v1366 = vadd.f32 0.0, %v1365
        %v1367 = vpop.f32.mrb[0].mxu0
        %v1368 = vadd.f32 0.0, %v1367
        %1369 = vmatprep.mubr.f32.mxu0 0.0
        %1370 = vmatmul.mubr.f32.gmra.mrb[0].mxu0 %v642
        %v1371 = vpop.f32.mrb[0].mxu0
        %v1372 = vadd.f32 0.0, %v1371
        %v1373 = vpop.f32.mrb[0].mxu0
        %v1374 = vadd.f32 0.0, %v1373
        %1375 = vmatprep.mubr.f32.mxu0 0.0
        %1376 = vmatmul.mubr.f32.gmra.mrb[0].mxu0 %v645
        %v1377 = vpop.f32.mrb[0].mxu0
        %v1378 = vadd.f32 0.0, %v1377
        %v1379 = vpop.f32.mrb[0].mxu0
        %v1380 = vadd.f32 0.0, %v1379
        %1381 = vmatprep.mubr.f32.mxu0 0.0
        %1382 = vmatmul.mubr.f32.gmra.mrb[0].mxu0 %v648
        %v1383 = vpop.f32.mrb[0].mxu0
        %v1384 = vadd.f32 0.0, %v1383
        %v1385 = vpop.f32.mrb[0].mxu0
        %v1386 = vadd.f32 0.0, %v1385
        %1387 = vmatprep.mubr.f32.mxu0 0.0
        %1388 = vmatmul.mubr.f32.gmra.mrb[0].mxu0 %v651
        %v1389 = vpop.f32.mrb[0].mxu0
        %v1390 = vadd.f32 0.0, %v1389
        %v1391 = vpop.f32.mrb[0].mxu0
        %v1392 = vadd.f32 0.0, %v1391
        %1393 = vmatprep.mubr.f32.mxu0 0.0
        %1394 = vmatmul.mubr.f32.gmra.mrb[0].mxu0 %v654
        %v1395 = vpop.f32.mrb[0].mxu0
        %v1396 = vadd.f32 0.0, %v1395
        %v1397 = vpop.f32.mrb[0].mxu0
        %v1398 = vadd.f32 0.0, %v1397
        %1399 = vmatprep.mubr.f32.mxu0 0.0
        %1400 = vmatmul.mubr.f32.gmra.mrb[0].mxu0 %v657
        %v1401 = vpop.f32.mrb[0].mxu0
        %v1402 = vadd.f32 0.0, %v1401
        %v1403 = vpop.f32.mrb[0].mxu0
        %v1404 = vadd.f32 0.0, %v1403
        %1405 = vmatprep.mubr.f32.mxu0 0.0
        %1406 = vmatmul.mubr.f32.gmra.mrb[0].mxu0 %v660
        %v1407 = vpop.f32.mrb[0].mxu0
        %v1408 = vadd.f32 0.0, %v1407
        %v1409 = vpop.f32.mrb[0].mxu0
        %v1410 = vadd.f32 0.0, %v1409
        %1411 = vmatprep.mubr.f32.mxu0 0.0
        %1412 = vmatmul.mubr.f32.gmra.mrb[0].mxu0 %v663
        %v1413 = vpop.f32.mrb[0].mxu0
        %v1414 = vadd.f32 0.0, %v1413
        %v1415 = vpop.f32.mrb[0].mxu0
        %v1416 = vadd.f32 0.0, %v1415
        %1417 = vmatprep.mubr.f32.mxu0 0.0
        %1418 = vmatmul.mubr.f32.gmra.mrb[0].mxu0 %v666
        %v1419 = vpop.f32.mrb[0].mxu0
        %v1420 = vadd.f32 0.0, %v1419
        %v1421 = vpop.f32.mrb[0].mxu0
        %v1422 = vadd.f32 0.0, %v1421
        %1423 = vmatprep.mubr.f32.mxu0 0.0
        %1424 = vmatmul.mubr.f32.gmra.mrb[0].mxu0 %v669
        %v1425 = vpop.f32.mrb[0].mxu0
        %v1426 = vadd.f32 0.0, %v1425
        %v1427 = vpop.f32.mrb[0].mxu0
        %v1428 = vadd.f32 0.0, %v1427
        %1429 = vmatprep.mubr.f32.mxu0 0.0
        %1430 = vmatmul.mubr.f32.gmra.mrb[0].mxu0 %v672
        %v1431 = vpop.f32.mrb[0].mxu0
        %v1432 = vadd.f32 0.0, %v1431
        %v1433 = vpop.f32.mrb[0].mxu0
        %v1434 = vadd.f32 0.0, %v1433
        %1435 = vmatprep.mubr.f32.mxu0 0.0
        %1436 = vmatmul.mubr.f32.gmra.mrb[0].mxu0 %v675
        %v1437 = vpop.f32.mrb[0].mxu0
        %v1438 = vadd.f32 0.0, %v1437
        %v1439 = vpop.f32.mrb[0].mxu0
        %v1440 = vadd.f32 0.0, %v1439
        %1441 = vmatprep.mubr.f32.mxu0 0.0
        %1442 = vmatmul.mubr.f32.gmra.mrb[0].mxu0 %v678
        %v1443 = vpop.f32.mrb[0].mxu0
        %v1444 = vadd.f32 0.0, %v1443
        %v1445 = vpop.f32.mrb[0].mxu0
        %v1446 = vadd.f32 0.0, %v1445
        %1447 = vmatprep.mubr.f32.mxu0 0.0
        %1448 = vmatmul.mubr.f32.gmra.mrb[0].mxu0 %v681
        %v1449 = vpop.f32.mrb[0].mxu0
        %v1450 = vadd.f32 0.0, %v1449
        %v1451 = vpop.f32.mrb[0].mxu0
        %v1452 = vadd.f32 0.0, %v1451
        %1453 = vdwg.mxu0
        %1454 = vmatprep.subr.mxu0 %v577
        %1455 = vmatpush1.msra.mxu0 %v576
        %1456 = vmatprep.subr.mxu0 %v585
        %1457 = vmatpush1.msra.mxu0 %v584
        %1458 = vmatprep.subr.mxu0 0.0
        %1459 = vmatpush1.msra.mxu0 0.0
        %1460 = vmatprep.subr.mxu0 0.0
        %1461 = vmatpush1.msra.mxu0 0.0
        %1462 = vmatprep.subr.mxu0 0.0
        %1463 = vmatpush1.msra.mxu0 0.0
        %1464 = vmatprep.subr.mxu0 0.0
        %1465 = vmatpush1.msra.mxu0 0.0
        %1466 = vmatprep.subr.mxu0 0.0
        %1467 = vmatpush1.msra.mxu0 0.0
        %1468 = vmatprep.subr.mxu0 0.0
        %1469 = vmatpush1.msra.mxu0 0.0
        %1470 = vmatprep.subr.mxu0 0.0
        %1471 = vmatpush1.msra.mxu0 0.0
        %1472 = vmatprep.subr.mxu0 0.0
        %1473 = vmatpush1.msra.mxu0 0.0
        %1474 = vmatprep.subr.mxu0 0.0
        %1475 = vmatpush1.msra.mxu0 0.0
        %1476 = vmatprep.subr.mxu0 0.0
        %1477 = vmatpush1.msra.mxu0 0.0
        %1478 = vmatprep.subr.mxu0 0.0
        %1479 = vmatpush1.msra.mxu0 0.0
        %1480 = vmatprep.subr.mxu0 0.0
        %1481 = vmatpush1.msra.mxu0 0.0
        %1482 = vmatprep.subr.mxu0 0.0
        %1483 = vmatpush1.msra.mxu0 0.0
        %1484 = vmatprep.subr.mxu0 0.0
        %1485 = vmatpush1.msra.mxu0 0.0
        %1486 = vmatprep.subr.mxu0 0.0
        %1487 = vmatpush1.msra.mxu0 0.0
        %1488 = vmatprep.subr.mxu0 0.0
        %1489 = vmatpush1.msra.mxu0 0.0
        %1490 = vmatprep.subr.mxu0 0.0
        %1491 = vmatpush1.msra.mxu0 0.0
        %1492 = vmatprep.subr.mxu0 0.0
        %1493 = vmatpush1.msra.mxu0 0.0
        %1494 = vmatprep.subr.mxu0 0.0
        %1495 = vmatpush1.msra.mxu0 0.0
        %1496 = vmatprep.subr.mxu0 0.0
        %1497 = vmatpush1.msra.mxu0 0.0
        %1498 = vmatprep.subr.mxu0 0.0
        %1499 = vmatpush1.msra.mxu0 0.0
        %1500 = vmatprep.subr.mxu0 0.0
        %1501 = vmatpush1.msra.mxu0 0.0
        %1502 = vmatprep.subr.mxu0 0.0
        %1503 = vmatpush1.msra.mxu0 0.0
        %1504 = vmatprep.subr.mxu0 0.0
        %1505 = vmatpush1.msra.mxu0 0.0
        %1506 = vmatprep.subr.mxu0 0.0
        %1507 = vmatpush1.msra.mxu0 0.0
        %1508 = vmatprep.subr.mxu0 0.0
        %1509 = vmatpush1.msra.mxu0 0.0
        %1510 = vmatprep.subr.mxu0 0.0
        %1511 = vmatpush1.msra.mxu0 0.0
        %1512 = vmatprep.subr.mxu0 0.0
        %1513 = vmatpush1.msra.mxu0 0.0
        %1514 = vmatprep.subr.mxu0 0.0
        %1515 = vmatpush1.msra.mxu0 0.0
        %1516 = vmatprep.subr.mxu0 0.0
        %1517 = vmatpush1.msra.mxu0 0.0
        %1518 = vmatprep.mubr.f32.mxu0 0.0
        %1519 = vmatmul.mubr.f32.gmra.mrb[0].mxu0 %v588
        %v1520 = vpop.f32.mrb[0].mxu0
        %v1521 = vadd.f32 0.0, %v1520
        %v1522 = vpop.f32.mrb[0].mxu0
        %v1523 = vadd.f32 0.0, %v1522
        %1524 = vmatprep.mubr.f32.mxu0 0.0
        %1525 = vmatmul.mubr.f32.gmra.mrb[0].mxu0 %v591
        %v1526 = vpop.f32.mrb[0].mxu0
        %v1527 = vadd.f32 0.0, %v1526
        %v1528 = vpop.f32.mrb[0].mxu0
        %v1529 = vadd.f32 0.0, %v1528
        %1530 = vmatprep.mubr.f32.mxu0 0.0
        %1531 = vmatmul.mubr.f32.gmra.mrb[0].mxu0 %v594
        %v1532 = vpop.f32.mrb[0].mxu0
        %v1533 = vadd.f32 0.0, %v1532
        %v1534 = vpop.f32.mrb[0].mxu0
        %v1535 = vadd.f32 0.0, %v1534
        %1536 = vmatprep.mubr.f32.mxu0 0.0
        %1537 = vmatmul.mubr.f32.gmra.mrb[0].mxu0 %v597
        %v1538 = vpop.f32.mrb[0].mxu0
        %v1539 = vadd.f32 0.0, %v1538
        %v1540 = vpop.f32.mrb[0].mxu0
        %v1541 = vadd.f32 0.0, %v1540
        %1542 = vmatprep.mubr.f32.mxu0 0.0
        %1543 = vmatmul.mubr.f32.gmra.mrb[0].mxu0 %v600
        %v1544 = vpop.f32.mrb[0].mxu0
        %v1545 = vadd.f32 0.0, %v1544
        %v1546 = vpop.f32.mrb[0].mxu0
        %v1547 = vadd.f32 0.0, %v1546
        %1548 = vmatprep.mubr.f32.mxu0 0.0
        %1549 = vmatmul.mubr.f32.gmra.mrb[0].mxu0 %v603
        %v1550 = vpop.f32.mrb[0].mxu0
        %v1551 = vadd.f32 0.0, %v1550
        %v1552 = vpop.f32.mrb[0].mxu0
        %v1553 = vadd.f32 0.0, %v1552
        %1554 = vmatprep.mubr.f32.mxu0 0.0
        %1555 = vmatmul.mubr.f32.gmra.mrb[0].mxu0 %v606
        %v1556 = vpop.f32.mrb[0].mxu0
        %v1557 = vadd.f32 0.0, %v1556
        %v1558 = vpop.f32.mrb[0].mxu0
        %v1559 = vadd.f32 0.0, %v1558
        %1560 = vmatprep.mubr.f32.mxu0 0.0
        %1561 = vmatmul.mubr.f32.gmra.mrb[0].mxu0 %v609
        %v1562 = vpop.f32.mrb[0].mxu0
        %v1563 = vadd.f32 0.0, %v1562
        %v1564 = vpop.f32.mrb[0].mxu0
        %v1565 = vadd.f32 0.0, %v1564
        %1566 = vmatprep.mubr.f32.mxu0 0.0
        %1567 = vmatmul.mubr.f32.gmra.mrb[0].mxu0 %v612
        %v1568 = vpop.f32.mrb[0].mxu0
        %v1569 = vadd.f32 0.0, %v1568
        %v1570 = vpop.f32.mrb[0].mxu0
        %v1571 = vadd.f32 0.0, %v1570
        %1572 = vmatprep.mubr.f32.mxu0 0.0
        %1573 = vmatmul.mubr.f32.gmra.mrb[0].mxu0 %v615
        %v1574 = vpop.f32.mrb[0].mxu0
        %v1575 = vadd.f32 0.0, %v1574
        %v1576 = vpop.f32.mrb[0].mxu0
        %v1577 = vadd.f32 0.0, %v1576
        %1578 = vmatprep.mubr.f32.mxu0 0.0
        %1579 = vmatmul.mubr.f32.gmra.mrb[0].mxu0 %v618
        %v1580 = vpop.f32.mrb[0].mxu0
        %v1581 = vadd.f32 0.0, %v1580
        %v1582 = vpop.f32.mrb[0].mxu0
        %v1583 = vadd.f32 0.0, %v1582
        %1584 = vmatprep.mubr.f32.mxu0 0.0
        %1585 = vmatmul.mubr.f32.gmra.mrb[0].mxu0 %v621
        %v1586 = vpop.f32.mrb[0].mxu0
        %v1587 = vadd.f32 0.0, %v1586
        %v1588 = vpop.f32.mrb[0].mxu0
        %v1589 = vadd.f32 0.0, %v1588
        %1590 = vmatprep.mubr.f32.mxu0 0.0
        %1591 = vmatmul.mubr.f32.gmra.mrb[0].mxu0 %v624
        %v1592 = vpop.f32.mrb[0].mxu0
        %v1593 = vadd.f32 0.0, %v1592
        %v1594 = vpop.f32.mrb[0].mxu0
        %v1595 = vadd.f32 0.0, %v1594
        %1596 = vmatprep.mubr.f32.mxu0 0.0
        %1597 = vmatmul.mubr.f32.gmra.mrb[0].mxu0 %v627
        %v1598 = vpop.f32.mrb[0].mxu0
        %v1599 = vadd.f32 0.0, %v1598
        %v1600 = vpop.f32.mrb[0].mxu0
        %v1601 = vadd.f32 0.0, %v1600
        %1602 = vmatprep.mubr.f32.mxu0 0.0
        %1603 = vmatmul.mubr.f32.gmra.mrb[0].mxu0 %v630
        %v1604 = vpop.f32.mrb[0].mxu0
        %v1605 = vadd.f32 0.0, %v1604
        %v1606 = vpop.f32.mrb[0].mxu0
        %v1607 = vadd.f32 0.0, %v1606
        %1608 = vmatprep.mubr.f32.mxu0 0.0
        %1609 = vmatmul.mubr.f32.gmra.mrb[0].mxu0 %v633
        %v1610 = vpop.f32.mrb[0].mxu0
        %v1611 = vadd.f32 0.0, %v1610
        %v1612 = vpop.f32.mrb[0].mxu0
        %v1613 = vadd.f32 0.0, %v1612
        %1614 = vmatprep.mubr.f32.mxu0 0.0
        %1615 = vmatmul.mubr.f32.gmra.mrb[0].mxu0 %v636
        %v1616 = vpop.f32.mrb[0].mxu0
        %v1617 = vadd.f32 0.0, %v1616
        %v1618 = vpop.f32.mrb[0].mxu0
        %v1619 = vadd.f32 0.0, %v1618
        %1620 = vmatprep.mubr.f32.mxu0 0.0
        %1621 = vmatmul.mubr.f32.gmra.mrb[0].mxu0 %v639
        %v1622 = vpop.f32.mrb[0].mxu0
        %v1623 = vadd.f32 0.0, %v1622
        %v1624 = vpop.f32.mrb[0].mxu0
        %v1625 = vadd.f32 0.0, %v1624
        %1626 = vmatprep.mubr.f32.mxu0 0.0
        %1627 = vmatmul.mubr.f32.gmra.mrb[0].mxu0 %v642
        %v1628 = vpop.f32.mrb[0].mxu0
        %v1629 = vadd.f32 0.0, %v1628
        %v1630 = vpop.f32.mrb[0].mxu0
        %v1631 = vadd.f32 0.0, %v1630
        %1632 = vmatprep.mubr.f32.mxu0 0.0
        %1633 = vmatmul.mubr.f32.gmra.mrb[0].mxu0 %v645
        %v1634 = vpop.f32.mrb[0].mxu0
        %v1635 = vadd.f32 0.0, %v1634
        %v1636 = vpop.f32.mrb[0].mxu0
        %v1637 = vadd.f32 0.0, %v1636
        %1638 = vmatprep.mubr.f32.mxu0 0.0
        %1639 = vmatmul.mubr.f32.gmra.mrb[0].mxu0 %v648
        %v1640 = vpop.f32.mrb[0].mxu0
        %v1641 = vadd.f32 0.0, %v1640
        %v1642 = vpop.f32.mrb[0].mxu0
        %v1643 = vadd.f32 0.0, %v1642
        %1644 = vmatprep.mubr.f32.mxu0 0.0
        %1645 = vmatmul.mubr.f32.gmra.mrb[0].mxu0 %v651
        %v1646 = vpop.f32.mrb[0].mxu0
        %v1647 = vadd.f32 0.0, %v1646
        %v1648 = vpop.f32.mrb[0].mxu0
        %v1649 = vadd.f32 0.0, %v1648
        %1650 = vmatprep.mubr.f32.mxu0 0.0
        %1651 = vmatmul.mubr.f32.gmra.mrb[0].mxu0 %v654
        %v1652 = vpop.f32.mrb[0].mxu0
        %v1653 = vadd.f32 0.0, %v1652
        %v1654 = vpop.f32.mrb[0].mxu0
        %v1655 = vadd.f32 0.0, %v1654
        %1656 = vmatprep.mubr.f32.mxu0 0.0
        %1657 = vmatmul.mubr.f32.gmra.mrb[0].mxu0 %v657
        %v1658 = vpop.f32.mrb[0].mxu0
        %v1659 = vadd.f32 0.0, %v1658
        %v1660 = vpop.f32.mrb[0].mxu0
        %v1661 = vadd.f32 0.0, %v1660
        %1662 = vmatprep.mubr.f32.mxu0 0.0
        %1663 = vmatmul.mubr.f32.gmra.mrb[0].mxu0 %v660
        %v1664 = vpop.f32.mrb[0].mxu0
        %v1665 = vadd.f32 0.0, %v1664
        %v1666 = vpop.f32.mrb[0].mxu0
        %v1667 = vadd.f32 0.0, %v1666
        %1668 = vmatprep.mubr.f32.mxu0 0.0
        %1669 = vmatmul.mubr.f32.gmra.mrb[0].mxu0 %v663
        %v1670 = vpop.f32.mrb[0].mxu0
        %v1671 = vadd.f32 0.0, %v1670
        %v1672 = vpop.f32.mrb[0].mxu0
        %v1673 = vadd.f32 0.0, %v1672
        %1674 = vmatprep.mubr.f32.mxu0 0.0
        %1675 = vmatmul.mubr.f32.gmra.mrb[0].mxu0 %v666
        %v1676 = vpop.f32.mrb[0].mxu0
        %v1677 = vadd.f32 0.0, %v1676
        %v1678 = vpop.f32.mrb[0].mxu0
        %v1679 = vadd.f32 0.0, %v1678
        %1680 = vmatprep.mubr.f32.mxu0 0.0
        %1681 = vmatmul.mubr.f32.gmra.mrb[0].mxu0 %v669
        %v1682 = vpop.f32.mrb[0].mxu0
        %v1683 = vadd.f32 0.0, %v1682
        %v1684 = vpop.f32.mrb[0].mxu0
        %v1685 = vadd.f32 0.0, %v1684
        %1686 = vmatprep.mubr.f32.mxu0 0.0
        %1687 = vmatmul.mubr.f32.gmra.mrb[0].mxu0 %v672
        %v1688 = vpop.f32.mrb[0].mxu0
        %v1689 = vadd.f32 0.0, %v1688
        %v1690 = vpop.f32.mrb[0].mxu0
        %v1691 = vadd.f32 0.0, %v1690
        %1692 = vmatprep.mubr.f32.mxu0 0.0
        %1693 = vmatmul.mubr.f32.gmra.mrb[0].mxu0 %v675
        %v1694 = vpop.f32.mrb[0].mxu0
        %v1695 = vadd.f32 0.0, %v1694
        %v1696 = vpop.f32.mrb[0].mxu0
        %v1697 = vadd.f32 0.0, %v1696
        %1698 = vmatprep.mubr.f32.mxu0 0.0
        %1699 = vmatmul.mubr.f32.gmra.mrb[0].mxu0 %v678
        %v1700 = vpop.f32.mrb[0].mxu0
        %v1701 = vadd.f32 0.0, %v1700
        %v1702 = vpop.f32.mrb[0].mxu0
        %v1703 = vadd.f32 0.0, %v1702
        %1704 = vmatprep.mubr.f32.mxu0 0.0
        %1705 = vmatmul.mubr.f32.gmra.mrb[0].mxu0 %v681
        %v1706 = vpop.f32.mrb[0].mxu0
        %v1707 = vadd.f32 0.0, %v1706
        %v1708 = vpop.f32.mrb[0].mxu0
        %v1709 = vadd.f32 0.0, %v1708
        %1710 = vdwg.mxu0
        %1711 = vset.pattern.permute.xlu0 2
        %1712 = vperm.xlu0 %1711, %v243
        %v1713 = vpop.permute.xlu0 %1712
        %1715 = vset.pattern.permute.xlu0 2
        %1716 = vperm.xlu0 %1715, %v244
        %v1717 = vpop.permute.xlu0 %1716
        %1719 = vset.pattern.permute.xlu0 2
        %1720 = vperm.xlu0 %1719, %v245
        %v1721 = vpop.permute.xlu0 %1720
        %1723 = vset.pattern.permute.xlu0 2
        %1724 = vperm.xlu0 %1723, %v246
        %v1725 = vpop.permute.xlu0 %1724
        %1727 = vset.pattern.permute.xlu0 2
        %1728 = vperm.xlu0 %1727, %v247
        %v1729 = vpop.permute.xlu0 %1728
        %1731 = vset.pattern.permute.xlu0 2
        %1732 = vperm.xlu0 %1731, %v248
        %v1733 = vpop.permute.xlu0 %1732
        %1735 = vset.pattern.permute.xlu0 2
        %1736 = vperm.xlu0 %1735, %v249
        %v1737 = vpop.permute.xlu0 %1736
        %1739 = vset.pattern.permute.xlu0 2
        %1740 = vperm.xlu0 %1739, %v250
        %v1741 = vpop.permute.xlu0 %1740
        %1743 = vset.pattern.permute.xlu0 2
        %1744 = vperm.xlu0 %1743, %v251
        %v1745 = vpop.permute.xlu0 %1744
        %1747 = vset.pattern.permute.xlu0 2
        %1748 = vperm.xlu0 %1747, %v252
        %v1749 = vpop.permute.xlu0 %1748
        %1751 = vset.pattern.permute.xlu0 2
        %1752 = vperm.xlu0 %1751, %v253
        %v1753 = vpop.permute.xlu0 %1752
        %1755 = vset.pattern.permute.xlu0 2
        %1756 = vperm.xlu0 %1755, %v254
        %v1757 = vpop.permute.xlu0 %1756
        %1759 = vset.pattern.permute.xlu0 2
        %1760 = vperm.xlu0 %1759, %v255
        %v1761 = vpop.permute.xlu0 %1760
        %1763 = vset.pattern.permute.xlu0 2
        %1764 = vperm.xlu0 %1763, %v256
        %v1765 = vpop.permute.xlu0 %1764
        %1767 = vset.pattern.permute.xlu0 2
        %1768 = vperm.xlu0 %1767, %v257
        %v1769 = vpop.permute.xlu0 %1768
        %1771 = vset.pattern.permute.xlu0 2
        %1772 = vperm.xlu0 %1771, %v258
        %v1773 = vpop.permute.xlu0 %1772
        %1775 = vset.pattern.permute.xlu0 2
        %1776 = vperm.xlu0 %1775, %v259
        %v1777 = vpop.permute.xlu0 %1776
        %1779 = vset.pattern.permute.xlu0 2
        %1780 = vperm.xlu0 %1779, %v260
        %v1781 = vpop.permute.xlu0 %1780
        %1783 = vset.pattern.permute.xlu0 2
        %1784 = vperm.xlu0 %1783, %v261
        %v1785 = vpop.permute.xlu0 %1784
        %1787 = vset.pattern.permute.xlu0 2
        %1788 = vperm.xlu0 %1787, %v262
        %v1789 = vpop.permute.xlu0 %1788
        %1791 = vset.pattern.permute.xlu0 2
        %1792 = vperm.xlu0 %1791, %v263
        %v1793 = vpop.permute.xlu0 %1792
        %1795 = vset.pattern.permute.xlu0 2
        %1796 = vperm.xlu0 %1795, %v264
        %v1797 = vpop.permute.xlu0 %1796
        %1799 = vset.pattern.permute.xlu0 2
        %1800 = vperm.xlu0 %1799, %v265
        %v1801 = vpop.permute.xlu0 %1800
        %1803 = vset.pattern.permute.xlu0 2
        %1804 = vperm.xlu0 %1803, %v266
        %v1805 = vpop.permute.xlu0 %1804
        %1807 = vset.pattern.permute.xlu0 2
        %1808 = vperm.xlu0 %1807, %v267
        %v1809 = vpop.permute.xlu0 %1808
        %1811 = vset.pattern.permute.xlu0 2
        %1812 = vperm.xlu0 %1811, %v268
        %v1813 = vpop.permute.xlu0 %1812
        %1815 = vset.pattern.permute.xlu0 2
        %1816 = vperm.xlu0 %1815, %v269
        %v1817 = vpop.permute.xlu0 %1816
        %1819 = vset.pattern.permute.xlu0 2
        %1820 = vperm.xlu0 %1819, %v270
        %v1821 = vpop.permute.xlu0 %1820
        %1823 = vset.pattern.permute.xlu0 2
        %1824 = vperm.xlu0 %1823, %v271
        %v1825 = vpop.permute.xlu0 %1824
        %1827 = vset.pattern.permute.xlu0 2
        %1828 = vperm.xlu0 %1827, %v272
        %v1829 = vpop.permute.xlu0 %1828
        %1831 = vset.pattern.permute.xlu0 2
        %1832 = vperm.xlu0 %1831, %v273
        %v1833 = vpop.permute.xlu0 %1832
        %1835 = vset.pattern.permute.xlu0 2
        %1836 = vperm.xlu0 %1835, %v274
        %v1837 = vpop.permute.xlu0 %1836
        %v1839 = vmul.f32 %v1713, %v307
        %v1840 = vmul.f32 %v1717, %v308
        %v1841 = vmul.f32 %v1721, %v309
        %v1842 = vmul.f32 %v1725, %v310
        %v1843 = vmul.f32 %v1729, %v311
        %v1844 = vmul.f32 %v1733, %v312
        %v1845 = vmul.f32 %v1737, %v313
        %v1846 = vmul.f32 %v1741, %v314
        %v1847 = vmul.f32 %v1745, %v315
        %v1848 = vmul.f32 %v1749, %v316
        %v1849 = vmul.f32 %v1753, %v317
        %v1850 = vmul.f32 %v1757, %v318
        %v1851 = vmul.f32 %v1761, %v319
        %v1852 = vmul.f32 %v1765, %v320
        %v1853 = vmul.f32 %v1769, %v321
        %v1854 = vmul.f32 %v1773, %v322
        %v1855 = vmul.f32 %v1777, %v323
        %v1856 = vmul.f32 %v1781, %v324
        %v1857 = vmul.f32 %v1785, %v325
        %v1858 = vmul.f32 %v1789, %v326
        %v1859 = vmul.f32 %v1793, %v327
        %v1860 = vmul.f32 %v1797, %v328
        %v1861 = vmul.f32 %v1801, %v329
        %v1862 = vmul.f32 %v1805, %v330
        %v1863 = vmul.f32 %v1809, %v331
        %v1864 = vmul.f32 %v1813, %v332
        %v1865 = vmul.f32 %v1817, %v333
        %v1866 = vmul.f32 %v1821, %v334
        %v1867 = vmul.f32 %v1825, %v335
        %v1868 = vmul.f32 %v1829, %v336
        %v1869 = vmul.f32 %v1833, %v337
        %v1870 = vmul.f32 %v1837, %v338
        %1871 = vset.pattern.permute.xlu0 3
        %1872 = vperm.xlu0 %1871, %v243
        %v1873 = vpop.permute.xlu0 %1872
        %1875 = vset.pattern.permute.xlu0 3
        %1876 = vperm.xlu0 %1875, %v244
        %v1877 = vpop.permute.xlu0 %1876
        %1879 = vset.pattern.permute.xlu0 3
        %1880 = vperm.xlu0 %1879, %v245
        %v1881 = vpop.permute.xlu0 %1880
        %1883 = vset.pattern.permute.xlu0 3
        %1884 = vperm.xlu0 %1883, %v246
        %v1885 = vpop.permute.xlu0 %1884
        %1887 = vset.pattern.permute.xlu0 3
        %1888 = vperm.xlu0 %1887, %v247
        %v1889 = vpop.permute.xlu0 %1888
        %1891 = vset.pattern.permute.xlu0 3
        %1892 = vperm.xlu0 %1891, %v248
        %v1893 = vpop.permute.xlu0 %1892
        %1895 = vset.pattern.permute.xlu0 3
        %1896 = vperm.xlu0 %1895, %v249
        %v1897 = vpop.permute.xlu0 %1896
        %1899 = vset.pattern.permute.xlu0 3
        %1900 = vperm.xlu0 %1899, %v250
        %v1901 = vpop.permute.xlu0 %1900
        %1903 = vset.pattern.permute.xlu0 3
        %1904 = vperm.xlu0 %1903, %v251
        %v1905 = vpop.permute.xlu0 %1904
        %1907 = vset.pattern.permute.xlu0 3
        %1908 = vperm.xlu0 %1907, %v252
        %v1909 = vpop.permute.xlu0 %1908
        %1911 = vset.pattern.permute.xlu0 3
        %1912 = vperm.xlu0 %1911, %v253
        %v1913 = vpop.permute.xlu0 %1912
        %1915 = vset.pattern.permute.xlu0 3
        %1916 = vperm.xlu0 %1915, %v254
        %v1917 = vpop.permute.xlu0 %1916
        %1919 = vset.pattern.permute.xlu0 3
        %1920 = vperm.xlu0 %1919, %v255
        %v1921 = vpop.permute.xlu0 %1920
        %1923 = vset.pattern.permute.xlu0 3
        %1924 = vperm.xlu0 %1923, %v256
        %v1925 = vpop.permute.xlu0 %1924
        %1927 = vset.pattern.permute.xlu0 3
        %1928 = vperm.xlu0 %1927, %v257
        %v1929 = vpop.permute.xlu0 %1928
        %1931 = vset.pattern.permute.xlu0 3
        %1932 = vperm.xlu0 %1931, %v258
        %v1933 = vpop.permute.xlu0 %1932
        %1935 = vset.pattern.permute.xlu0 3
        %1936 = vperm.xlu0 %1935, %v259
        %v1937 = vpop.permute.xlu0 %1936
        %1939 = vset.pattern.permute.xlu0 3
        %1940 = vperm.xlu0 %1939, %v260
        %v1941 = vpop.permute.xlu0 %1940
        %1943 = vset.pattern.permute.xlu0 3
        %1944 = vperm.xlu0 %1943, %v261
        %v1945 = vpop.permute.xlu0 %1944
        %1947 = vset.pattern.permute.xlu0 3
        %1948 = vperm.xlu0 %1947, %v262
        %v1949 = vpop.permute.xlu0 %1948
        %1951 = vset.pattern.permute.xlu0 3
        %1952 = vperm.xlu0 %1951, %v263
        %v1953 = vpop.permute.xlu0 %1952
        %1955 = vset.pattern.permute.xlu0 3
        %1956 = vperm.xlu0 %1955, %v264
        %v1957 = vpop.permute.xlu0 %1956
        %1959 = vset.pattern.permute.xlu0 3
        %1960 = vperm.xlu0 %1959, %v265
        %v1961 = vpop.permute.xlu0 %1960
        %1963 = vset.pattern.permute.xlu0 3
        %1964 = vperm.xlu0 %1963, %v266
        %v1965 = vpop.permute.xlu0 %1964
        %1967 = vset.pattern.permute.xlu0 3
        %1968 = vperm.xlu0 %1967, %v267
        %v1969 = vpop.permute.xlu0 %1968
        %1971 = vset.pattern.permute.xlu0 3
        %1972 = vperm.xlu0 %1971, %v268
        %v1973 = vpop.permute.xlu0 %1972
        %1975 = vset.pattern.permute.xlu0 3
        %1976 = vperm.xlu0 %1975, %v269
        %v1977 = vpop.permute.xlu0 %1976
        %1979 = vset.pattern.permute.xlu0 3
        %1980 = vperm.xlu0 %1979, %v270
        %v1981 = vpop.permute.xlu0 %1980
        %1983 = vset.pattern.permute.xlu0 3
        %1984 = vperm.xlu0 %1983, %v271
        %v1985 = vpop.permute.xlu0 %1984
        %1987 = vset.pattern.permute.xlu0 3
        %1988 = vperm.xlu0 %1987, %v272
        %v1989 = vpop.permute.xlu0 %1988
        %1991 = vset.pattern.permute.xlu0 3
        %1992 = vperm.xlu0 %1991, %v273
        %v1993 = vpop.permute.xlu0 %1992
        %1995 = vset.pattern.permute.xlu0 3
        %1996 = vperm.xlu0 %1995, %v274
        %v1997 = vpop.permute.xlu0 %1996
        %v1999 = vmul.f32 %v1873, %v307
        %v2000 = vmul.f32 %v1877, %v308
        %v2001 = vmul.f32 %v1881, %v309
        %v2002 = vmul.f32 %v1885, %v310
        %v2003 = vmul.f32 %v1889, %v311
        %v2004 = vmul.f32 %v1893, %v312
        %v2005 = vmul.f32 %v1897, %v313
        %v2006 = vmul.f32 %v1901, %v314
        %v2007 = vmul.f32 %v1905, %v315
        %v2008 = vmul.f32 %v1909, %v316
        %v2009 = vmul.f32 %v1913, %v317
        %v2010 = vmul.f32 %v1917, %v318
        %v2011 = vmul.f32 %v1921, %v319
        %v2012 = vmul.f32 %v1925, %v320
        %v2013 = vmul.f32 %v1929, %v321
        %v2014 = vmul.f32 %v1933, %v322
        %v2015 = vmul.f32 %v1937, %v323
        %v2016 = vmul.f32 %v1941, %v324
        %v2017 = vmul.f32 %v1945, %v325
        %v2018 = vmul.f32 %v1949, %v326
        %v2019 = vmul.f32 %v1953, %v327
        %v2020 = vmul.f32 %v1957, %v328
        %v2021 = vmul.f32 %v1961, %v329
        %v2022 = vmul.f32 %v1965, %v330
        %v2023 = vmul.f32 %v1969, %v331
        %v2024 = vmul.f32 %v1973, %v332
        %v2025 = vmul.f32 %v1977, %v333
        %v2026 = vmul.f32 %v1981, %v334
        %v2027 = vmul.f32 %v1985, %v335
        %v2028 = vmul.f32 %v1989, %v336
        %v2029 = vmul.f32 %v1993, %v337
        %v2030 = vmul.f32 %v1997, %v338
        %2031 = vset.pattern.permute.xlu0 4
        %2032 = vperm.xlu0 %2031, %v243
        %v2033 = vpop.permute.xlu0 %2032
        %2035 = vset.pattern.permute.xlu0 4
        %2036 = vperm.xlu0 %2035, %v244
        %v2037 = vpop.permute.xlu0 %2036
        %2039 = vset.pattern.permute.xlu0 4
        %2040 = vperm.xlu0 %2039, %v245
        %v2041 = vpop.permute.xlu0 %2040
        %2043 = vset.pattern.permute.xlu0 4
        %2044 = vperm.xlu0 %2043, %v246
        %v2045 = vpop.permute.xlu0 %2044
        %2047 = vset.pattern.permute.xlu0 4
        %2048 = vperm.xlu0 %2047, %v247
        %v2049 = vpop.permute.xlu0 %2048
        %2051 = vset.pattern.permute.xlu0 4
        %2052 = vperm.xlu0 %2051, %v248
        %v2053 = vpop.permute.xlu0 %2052
        %2055 = vset.pattern.permute.xlu0 4
        %2056 = vperm.xlu0 %2055, %v249
        %v2057 = vpop.permute.xlu0 %2056
        %2059 = vset.pattern.permute.xlu0 4
        %2060 = vperm.xlu0 %2059, %v250
        %v2061 = vpop.permute.xlu0 %2060
        %2063 = vset.pattern.permute.xlu0 4
        %2064 = vperm.xlu0 %2063, %v251
        %v2065 = vpop.permute.xlu0 %2064
        %2067 = vset.pattern.permute.xlu0 4
        %2068 = vperm.xlu0 %2067, %v252
        %v2069 = vpop.permute.xlu0 %2068
        %2071 = vset.pattern.permute.xlu0 4
        %2072 = vperm.xlu0 %2071, %v253
        %v2073 = vpop.permute.xlu0 %2072
        %2075 = vset.pattern.permute.xlu0 4
        %2076 = vperm.xlu0 %2075, %v254
        %v2077 = vpop.permute.xlu0 %2076
        %2079 = vset.pattern.permute.xlu0 4
        %2080 = vperm.xlu0 %2079, %v255
        %v2081 = vpop.permute.xlu0 %2080
        %2083 = vset.pattern.permute.xlu0 4
        %2084 = vperm.xlu0 %2083, %v256
        %v2085 = vpop.permute.xlu0 %2084
        %2087 = vset.pattern.permute.xlu0 4
        %2088 = vperm.xlu0 %2087, %v257
        %v2089 = vpop.permute.xlu0 %2088
        %2091 = vset.pattern.permute.xlu0 4
        %2092 = vperm.xlu0 %2091, %v258
        %v2093 = vpop.permute.xlu0 %2092
        %2095 = vset.pattern.permute.xlu0 4
        %2096 = vperm.xlu0 %2095, %v259
        %v2097 = vpop.permute.xlu0 %2096
        %2099 = vset.pattern.permute.xlu0 4
        %2100 = vperm.xlu0 %2099, %v260
        %v2101 = vpop.permute.xlu0 %2100
        %2103 = vset.pattern.permute.xlu0 4
        %2104 = vperm.xlu0 %2103, %v261
        %v2105 = vpop.permute.xlu0 %2104
        %2107 = vset.pattern.permute.xlu0 4
        %2108 = vperm.xlu0 %2107, %v262
        %v2109 = vpop.permute.xlu0 %2108
        %2111 = vset.pattern.permute.xlu0 4
        %2112 = vperm.xlu0 %2111, %v263
        %v2113 = vpop.permute.xlu0 %2112
        %2115 = vset.pattern.permute.xlu0 4
        %2116 = vperm.xlu0 %2115, %v264
        %v2117 = vpop.permute.xlu0 %2116
        %2119 = vset.pattern.permute.xlu0 4
        %2120 = vperm.xlu0 %2119, %v265
        %v2121 = vpop.permute.xlu0 %2120
        %2123 = vset.pattern.permute.xlu0 4
        %2124 = vperm.xlu0 %2123, %v266
        %v2125 = vpop.permute.xlu0 %2124
        %2127 = vset.pattern.permute.xlu0 4
        %2128 = vperm.xlu0 %2127, %v267
        %v2129 = vpop.permute.xlu0 %2128
        %2131 = vset.pattern.permute.xlu0 4
        %2132 = vperm.xlu0 %2131, %v268
        %v2133 = vpop.permute.xlu0 %2132
        %2135 = vset.pattern.permute.xlu0 4
        %2136 = vperm.xlu0 %2135, %v269
        %v2137 = vpop.permute.xlu0 %2136
        %2139 = vset.pattern.permute.xlu0 4
        %2140 = vperm.xlu0 %2139, %v270
        %v2141 = vpop.permute.xlu0 %2140
        %2143 = vset.pattern.permute.xlu0 4
        %2144 = vperm.xlu0 %2143, %v271
        %v2145 = vpop.permute.xlu0 %2144
        %2147 = vset.pattern.permute.xlu0 4
        %2148 = vperm.xlu0 %2147, %v272
        %v2149 = vpop.permute.xlu0 %2148
        %2151 = vset.pattern.permute.xlu0 4
        %2152 = vperm.xlu0 %2151, %v273
        %v2153 = vpop.permute.xlu0 %2152
        %2155 = vset.pattern.permute.xlu0 4
        %2156 = vperm.xlu0 %2155, %v274
        %v2157 = vpop.permute.xlu0 %2156
        %v2159 = vmul.f32 %v2033, %v307
        %v2160 = vmul.f32 %v2037, %v308
        %v2161 = vmul.f32 %v2041, %v309
        %v2162 = vmul.f32 %v2045, %v310
        %v2163 = vmul.f32 %v2049, %v311
        %v2164 = vmul.f32 %v2053, %v312
        %v2165 = vmul.f32 %v2057, %v313
        %v2166 = vmul.f32 %v2061, %v314
        %v2167 = vmul.f32 %v2065, %v315
        %v2168 = vmul.f32 %v2069, %v316
        %v2169 = vmul.f32 %v2073, %v317
        %v2170 = vmul.f32 %v2077, %v318
        %v2171 = vmul.f32 %v2081, %v319
        %v2172 = vmul.f32 %v2085, %v320
        %v2173 = vmul.f32 %v2089, %v321
        %v2174 = vmul.f32 %v2093, %v322
        %v2175 = vmul.f32 %v2097, %v323
        %v2176 = vmul.f32 %v2101, %v324
        %v2177 = vmul.f32 %v2105, %v325
        %v2178 = vmul.f32 %v2109, %v326
        %v2179 = vmul.f32 %v2113, %v327
        %v2180 = vmul.f32 %v2117, %v328
        %v2181 = vmul.f32 %v2121, %v329
        %v2182 = vmul.f32 %v2125, %v330
        %v2183 = vmul.f32 %v2129, %v331
        %v2184 = vmul.f32 %v2133, %v332
        %v2185 = vmul.f32 %v2137, %v333
        %v2186 = vmul.f32 %v2141, %v334
        %v2187 = vmul.f32 %v2145, %v335
        %v2188 = vmul.f32 %v2149, %v336
        %v2189 = vmul.f32 %v2153, %v337
        %v2190 = vmul.f32 %v2157, %v338
        %2191 = vset.pattern.permute.xlu0 5
        %2192 = vperm.xlu0 %2191, %v243
        %v2193 = vpop.permute.xlu0 %2192
        %2195 = vset.pattern.permute.xlu0 5
        %2196 = vperm.xlu0 %2195, %v244
        %v2197 = vpop.permute.xlu0 %2196
        %2199 = vset.pattern.permute.xlu0 5
        %2200 = vperm.xlu0 %2199, %v245
        %v2201 = vpop.permute.xlu0 %2200
        %2203 = vset.pattern.permute.xlu0 5
        %2204 = vperm.xlu0 %2203, %v246
        %v2205 = vpop.permute.xlu0 %2204
        %2207 = vset.pattern.permute.xlu0 5
        %2208 = vperm.xlu0 %2207, %v247
        %v2209 = vpop.permute.xlu0 %2208
        %2211 = vset.pattern.permute.xlu0 5
        %2212 = vperm.xlu0 %2211, %v248
        %v2213 = vpop.permute.xlu0 %2212
        %2215 = vset.pattern.permute.xlu0 5
        %2216 = vperm.xlu0 %2215, %v249
        %v2217 = vpop.permute.xlu0 %2216
        %2219 = vset.pattern.permute.xlu0 5
        %2220 = vperm.xlu0 %2219, %v250
        %v2221 = vpop.permute.xlu0 %2220
        %2223 = vset.pattern.permute.xlu0 5
        %2224 = vperm.xlu0 %2223, %v251
        %v2225 = vpop.permute.xlu0 %2224
        %2227 = vset.pattern.permute.xlu0 5
        %2228 = vperm.xlu0 %2227, %v252
        %v2229 = vpop.permute.xlu0 %2228
        %2231 = vset.pattern.permute.xlu0 5
        %2232 = vperm.xlu0 %2231, %v253
        %v2233 = vpop.permute.xlu0 %2232
        %2235 = vset.pattern.permute.xlu0 5
        %2236 = vperm.xlu0 %2235, %v254
        %v2237 = vpop.permute.xlu0 %2236
        %2239 = vset.pattern.permute.xlu0 5
        %2240 = vperm.xlu0 %2239, %v255
        %v2241 = vpop.permute.xlu0 %2240
        %2243 = vset.pattern.permute.xlu0 5
        %2244 = vperm.xlu0 %2243, %v256
        %v2245 = vpop.permute.xlu0 %2244
        %2247 = vset.pattern.permute.xlu0 5
        %2248 = vperm.xlu0 %2247, %v257
        %v2249 = vpop.permute.xlu0 %2248
        %2251 = vset.pattern.permute.xlu0 5
        %2252 = vperm.xlu0 %2251, %v258
        %v2253 = vpop.permute.xlu0 %2252
        %2255 = vset.pattern.permute.xlu0 5
        %2256 = vperm.xlu0 %2255, %v259
        %v2257 = vpop.permute.xlu0 %2256
        %2259 = vset.pattern.permute.xlu0 5
        %2260 = vperm.xlu0 %2259, %v260
        %v2261 = vpop.permute.xlu0 %2260
        %2263 = vset.pattern.permute.xlu0 5
        %2264 = vperm.xlu0 %2263, %v261
        %v2265 = vpop.permute.xlu0 %2264
        %2267 = vset.pattern.permute.xlu0 5
        %2268 = vperm.xlu0 %2267, %v262
        %v2269 = vpop.permute.xlu0 %2268
        %2271 = vset.pattern.permute.xlu0 5
        %2272 = vperm.xlu0 %2271, %v263
        %v2273 = vpop.permute.xlu0 %2272
        %2275 = vset.pattern.permute.xlu0 5
        %2276 = vperm.xlu0 %2275, %v264
        %v2277 = vpop.permute.xlu0 %2276
        %2279 = vset.pattern.permute.xlu0 5
        %2280 = vperm.xlu0 %2279, %v265
        %v2281 = vpop.permute.xlu0 %2280
        %2283 = vset.pattern.permute.xlu0 5
        %2284 = vperm.xlu0 %2283, %v266
        %v2285 = vpop.permute.xlu0 %2284
        %2287 = vset.pattern.permute.xlu0 5
        %2288 = vperm.xlu0 %2287, %v267
        %v2289 = vpop.permute.xlu0 %2288
        %2291 = vset.pattern.permute.xlu0 5
        %2292 = vperm.xlu0 %2291, %v268
        %v2293 = vpop.permute.xlu0 %2292
        %2295 = vset.pattern.permute.xlu0 5
        %2296 = vperm.xlu0 %2295, %v269
        %v2297 = vpop.permute.xlu0 %2296
        %2299 = vset.pattern.permute.xlu0 5
        %2300 = vperm.xlu0 %2299, %v270
        %v2301 = vpop.permute.xlu0 %2300
        %2303 = vset.pattern.permute.xlu0 5
        %2304 = vperm.xlu0 %2303, %v271
        %v2305 = vpop.permute.xlu0 %2304
        %2307 = vset.pattern.permute.xlu0 5
        %2308 = vperm.xlu0 %2307, %v272
        %v2309 = vpop.permute.xlu0 %2308
        %2311 = vset.pattern.permute.xlu0 5
        %2312 = vperm.xlu0 %2311, %v273
        %v2313 = vpop.permute.xlu0 %2312
        %2315 = vset.pattern.permute.xlu0 5
        %2316 = vperm.xlu0 %2315, %v274
        %v2317 = vpop.permute.xlu0 %2316
        %v2319 = vmul.f32 %v2193, %v307
        %v2320 = vmul.f32 %v2197, %v308
        %v2321 = vmul.f32 %v2201, %v309
        %v2322 = vmul.f32 %v2205, %v310
        %v2323 = vmul.f32 %v2209, %v311
        %v2324 = vmul.f32 %v2213, %v312
        %v2325 = vmul.f32 %v2217, %v313
        %v2326 = vmul.f32 %v2221, %v314
        %v2327 = vmul.f32 %v2225, %v315
        %v2328 = vmul.f32 %v2229, %v316
        %v2329 = vmul.f32 %v2233, %v317
        %v2330 = vmul.f32 %v2237, %v318
        %v2331 = vmul.f32 %v2241, %v319
        %v2332 = vmul.f32 %v2245, %v320
        %v2333 = vmul.f32 %v2249, %v321
        %v2334 = vmul.f32 %v2253, %v322
        %v2335 = vmul.f32 %v2257, %v323
        %v2336 = vmul.f32 %v2261, %v324
        %v2337 = vmul.f32 %v2265, %v325
        %v2338 = vmul.f32 %v2269, %v326
        %v2339 = vmul.f32 %v2273, %v327
        %v2340 = vmul.f32 %v2277, %v328
        %v2341 = vmul.f32 %v2281, %v329
        %v2342 = vmul.f32 %v2285, %v330
        %v2343 = vmul.f32 %v2289, %v331
        %v2344 = vmul.f32 %v2293, %v332
        %v2345 = vmul.f32 %v2297, %v333
        %v2346 = vmul.f32 %v2301, %v334
        %v2347 = vmul.f32 %v2305, %v335
        %v2348 = vmul.f32 %v2309, %v336
        %v2349 = vmul.f32 %v2313, %v337
        %v2350 = vmul.f32 %v2317, %v338
        %2383 = vrot.lane.b32.xlu0 %v1999, 16
        %v2384 = vpop.permute.xlu0 %2383
        %2385 = vrot.lane.b32.xlu0 %v2000, 16
        %v2386 = vpop.permute.xlu0 %2385
        %2387 = vrot.lane.b32.xlu0 %v2001, 16
        %v2388 = vpop.permute.xlu0 %2387
        %2389 = vrot.lane.b32.xlu0 %v2002, 16
        %v2390 = vpop.permute.xlu0 %2389
        %2391 = vrot.lane.b32.xlu0 %v2003, 16
        %v2392 = vpop.permute.xlu0 %2391
        %2393 = vrot.lane.b32.xlu0 %v2004, 16
        %v2394 = vpop.permute.xlu0 %2393
        %2395 = vrot.lane.b32.xlu0 %v2005, 16
        %v2396 = vpop.permute.xlu0 %2395
        %2397 = vrot.lane.b32.xlu0 %v2006, 16
        %v2398 = vpop.permute.xlu0 %2397
        %2399 = vrot.lane.b32.xlu0 %v2007, 16
        %v2400 = vpop.permute.xlu0 %2399
        %2401 = vrot.lane.b32.xlu0 %v2008, 16
        %v2402 = vpop.permute.xlu0 %2401
        %2403 = vrot.lane.b32.xlu0 %v2009, 16
        %v2404 = vpop.permute.xlu0 %2403
        %2405 = vrot.lane.b32.xlu0 %v2010, 16
        %v2406 = vpop.permute.xlu0 %2405
        %2407 = vrot.lane.b32.xlu0 %v2011, 16
        %v2408 = vpop.permute.xlu0 %2407
        %2409 = vrot.lane.b32.xlu0 %v2012, 16
        %v2410 = vpop.permute.xlu0 %2409
        %2411 = vrot.lane.b32.xlu0 %v2013, 16
        %v2412 = vpop.permute.xlu0 %2411
        %2413 = vrot.lane.b32.xlu0 %v2014, 16
        %v2414 = vpop.permute.xlu0 %2413
        %2415 = vrot.lane.b32.xlu0 %v2015, 16
        %v2416 = vpop.permute.xlu0 %2415
        %2417 = vrot.lane.b32.xlu0 %v2016, 16
        %v2418 = vpop.permute.xlu0 %2417
        %2419 = vrot.lane.b32.xlu0 %v2017, 16
        %v2420 = vpop.permute.xlu0 %2419
        %2421 = vrot.lane.b32.xlu0 %v2018, 16
        %v2422 = vpop.permute.xlu0 %2421
        %2423 = vrot.lane.b32.xlu0 %v2019, 16
        %v2424 = vpop.permute.xlu0 %2423
        %2425 = vrot.lane.b32.xlu0 %v2020, 16
        %v2426 = vpop.permute.xlu0 %2425
        %2427 = vrot.lane.b32.xlu0 %v2021, 16
        %v2428 = vpop.permute.xlu0 %2427
        %2429 = vrot.lane.b32.xlu0 %v2022, 16
        %v2430 = vpop.permute.xlu0 %2429
        %2431 = vrot.lane.b32.xlu0 %v2023, 16
        %v2432 = vpop.permute.xlu0 %2431
        %2433 = vrot.lane.b32.xlu0 %v2024, 16
        %v2434 = vpop.permute.xlu0 %2433
        %2435 = vrot.lane.b32.xlu0 %v2025, 16
        %v2436 = vpop.permute.xlu0 %2435
        %2437 = vrot.lane.b32.xlu0 %v2026, 16
        %v2438 = vpop.permute.xlu0 %2437
        %2439 = vrot.lane.b32.xlu0 %v2027, 16
        %v2440 = vpop.permute.xlu0 %2439
        %2441 = vrot.lane.b32.xlu0 %v2028, 16
        %v2442 = vpop.permute.xlu0 %2441
        %2443 = vrot.lane.b32.xlu0 %v2029, 16
        %v2444 = vpop.permute.xlu0 %2443
        %2445 = vrot.lane.b32.xlu0 %v2030, 16
        %v2446 = vpop.permute.xlu0 %2445
        %2511 = vrot.lane.b32.xlu0 %v2159, 32
        %v2512 = vpop.permute.xlu0 %2511
        %2513 = vrot.lane.b32.xlu0 %v2160, 32
        %v2514 = vpop.permute.xlu0 %2513
        %2515 = vrot.lane.b32.xlu0 %v2161, 32
        %v2516 = vpop.permute.xlu0 %2515
        %2517 = vrot.lane.b32.xlu0 %v2162, 32
        %v2518 = vpop.permute.xlu0 %2517
        %2519 = vrot.lane.b32.xlu0 %v2163, 32
        %v2520 = vpop.permute.xlu0 %2519
        %2521 = vrot.lane.b32.xlu0 %v2164, 32
        %v2522 = vpop.permute.xlu0 %2521
        %2523 = vrot.lane.b32.xlu0 %v2165, 32
        %v2524 = vpop.permute.xlu0 %2523
        %2525 = vrot.lane.b32.xlu0 %v2166, 32
        %v2526 = vpop.permute.xlu0 %2525
        %2527 = vrot.lane.b32.xlu0 %v2167, 32
        %v2528 = vpop.permute.xlu0 %2527
        %2529 = vrot.lane.b32.xlu0 %v2168, 32
        %v2530 = vpop.permute.xlu0 %2529
        %2531 = vrot.lane.b32.xlu0 %v2169, 32
        %v2532 = vpop.permute.xlu0 %2531
        %2533 = vrot.lane.b32.xlu0 %v2170, 32
        %v2534 = vpop.permute.xlu0 %2533
        %2535 = vrot.lane.b32.xlu0 %v2171, 32
        %v2536 = vpop.permute.xlu0 %2535
        %2537 = vrot.lane.b32.xlu0 %v2172, 32
        %v2538 = vpop.permute.xlu0 %2537
        %2539 = vrot.lane.b32.xlu0 %v2173, 32
        %v2540 = vpop.permute.xlu0 %2539
        %2541 = vrot.lane.b32.xlu0 %v2174, 32
        %v2542 = vpop.permute.xlu0 %2541
        %2543 = vrot.lane.b32.xlu0 %v2175, 32
        %v2544 = vpop.permute.xlu0 %2543
        %2545 = vrot.lane.b32.xlu0 %v2176, 32
        %v2546 = vpop.permute.xlu0 %2545
        %2547 = vrot.lane.b32.xlu0 %v2177, 32
        %v2548 = vpop.permute.xlu0 %2547
        %2549 = vrot.lane.b32.xlu0 %v2178, 32
        %v2550 = vpop.permute.xlu0 %2549
        %2551 = vrot.lane.b32.xlu0 %v2179, 32
        %v2552 = vpop.permute.xlu0 %2551
        %2553 = vrot.lane.b32.xlu0 %v2180, 32
        %v2554 = vpop.permute.xlu0 %2553
        %2555 = vrot.lane.b32.xlu0 %v2181, 32
        %v2556 = vpop.permute.xlu0 %2555
        %2557 = vrot.lane.b32.xlu0 %v2182, 32
        %v2558 = vpop.permute.xlu0 %2557
        %2559 = vrot.lane.b32.xlu0 %v2183, 32
        %v2560 = vpop.permute.xlu0 %2559
        %2561 = vrot.lane.b32.xlu0 %v2184, 32
        %v2562 = vpop.permute.xlu0 %2561
        %2563 = vrot.lane.b32.xlu0 %v2185, 32
        %v2564 = vpop.permute.xlu0 %2563
        %2565 = vrot.lane.b32.xlu0 %v2186, 32
        %v2566 = vpop.permute.xlu0 %2565
        %2567 = vrot.lane.b32.xlu0 %v2187, 32
        %v2568 = vpop.permute.xlu0 %2567
        %2569 = vrot.lane.b32.xlu0 %v2188, 32
        %v2570 = vpop.permute.xlu0 %2569
        %2571 = vrot.lane.b32.xlu0 %v2189, 32
        %v2572 = vpop.permute.xlu0 %2571
        %2573 = vrot.lane.b32.xlu0 %v2190, 32
        %v2574 = vpop.permute.xlu0 %2573
        %2639 = vrot.lane.b32.xlu0 %v2319, 48
        %v2640 = vpop.permute.xlu0 %2639
        %2641 = vrot.lane.b32.xlu0 %v2320, 48
        %v2642 = vpop.permute.xlu0 %2641
        %2643 = vrot.lane.b32.xlu0 %v2321, 48
        %v2644 = vpop.permute.xlu0 %2643
        %2645 = vrot.lane.b32.xlu0 %v2322, 48
        %v2646 = vpop.permute.xlu0 %2645
        %2647 = vrot.lane.b32.xlu0 %v2323, 48
        %v2648 = vpop.permute.xlu0 %2647
        %2649 = vrot.lane.b32.xlu0 %v2324, 48
        %v2650 = vpop.permute.xlu0 %2649
        %2651 = vrot.lane.b32.xlu0 %v2325, 48
        %v2652 = vpop.permute.xlu0 %2651
        %2653 = vrot.lane.b32.xlu0 %v2326, 48
        %v2654 = vpop.permute.xlu0 %2653
        %2655 = vrot.lane.b32.xlu0 %v2327, 48
        %v2656 = vpop.permute.xlu0 %2655
        %2657 = vrot.lane.b32.xlu0 %v2328, 48
        %v2658 = vpop.permute.xlu0 %2657
        %2659 = vrot.lane.b32.xlu0 %v2329, 48
        %v2660 = vpop.permute.xlu0 %2659
        %2661 = vrot.lane.b32.xlu0 %v2330, 48
        %v2662 = vpop.permute.xlu0 %2661
        %2663 = vrot.lane.b32.xlu0 %v2331, 48
        %v2664 = vpop.permute.xlu0 %2663
        %2665 = vrot.lane.b32.xlu0 %v2332, 48
        %v2666 = vpop.permute.xlu0 %2665
        %2667 = vrot.lane.b32.xlu0 %v2333, 48
        %v2668 = vpop.permute.xlu0 %2667
        %2669 = vrot.lane.b32.xlu0 %v2334, 48
        %v2670 = vpop.permute.xlu0 %2669
        %2671 = vrot.lane.b32.xlu0 %v2335, 48
        %v2672 = vpop.permute.xlu0 %2671
        %2673 = vrot.lane.b32.xlu0 %v2336, 48
        %v2674 = vpop.permute.xlu0 %2673
        %2675 = vrot.lane.b32.xlu0 %v2337, 48
        %v2676 = vpop.permute.xlu0 %2675
        %2677 = vrot.lane.b32.xlu0 %v2338, 48
        %v2678 = vpop.permute.xlu0 %2677
        %2679 = vrot.lane.b32.xlu0 %v2339, 48
        %v2680 = vpop.permute.xlu0 %2679
        %2681 = vrot.lane.b32.xlu0 %v2340, 48
        %v2682 = vpop.permute.xlu0 %2681
        %2683 = vrot.lane.b32.xlu0 %v2341, 48
        %v2684 = vpop.permute.xlu0 %2683
        %2685 = vrot.lane.b32.xlu0 %v2342, 48
        %v2686 = vpop.permute.xlu0 %2685
        %2687 = vrot.lane.b32.xlu0 %v2343, 48
        %v2688 = vpop.permute.xlu0 %2687
        %2689 = vrot.lane.b32.xlu0 %v2344, 48
        %v2690 = vpop.permute.xlu0 %2689
        %2691 = vrot.lane.b32.xlu0 %v2345, 48
        %v2692 = vpop.permute.xlu0 %2691
        %2693 = vrot.lane.b32.xlu0 %v2346, 48
        %v2694 = vpop.permute.xlu0 %2693
        %2695 = vrot.lane.b32.xlu0 %v2347, 48
        %v2696 = vpop.permute.xlu0 %2695
        %2697 = vrot.lane.b32.xlu0 %v2348, 48
        %v2698 = vpop.permute.xlu0 %2697
        %2699 = vrot.lane.b32.xlu0 %v2349, 48
        %v2700 = vpop.permute.xlu0 %2699
        %2701 = vrot.lane.b32.xlu0 %v2350, 48
        %v2702 = vpop.permute.xlu0 %2701
        %v2735 = vsel %vm586, %v1839, %v2384
        %v2736 = vsel %vm586, %v1840, %v2386
        %v2737 = vsel %vm586, %v1841, %v2388
        %v2738 = vsel %vm586, %v1842, %v2390
        %v2739 = vsel %vm586, %v1843, %v2392
        %v2740 = vsel %vm586, %v1844, %v2394
        %v2741 = vsel %vm586, %v1845, %v2396
        %v2742 = vsel %vm586, %v1846, %v2398
        %v2743 = vsel %vm586, %v1847, %v2400
        %v2744 = vsel %vm586, %v1848, %v2402
        %v2745 = vsel %vm586, %v1849, %v2404
        %v2746 = vsel %vm586, %v1850, %v2406
        %v2747 = vsel %vm586, %v1851, %v2408
        %v2748 = vsel %vm586, %v1852, %v2410
        %v2749 = vsel %vm586, %v1853, %v2412
        %v2750 = vsel %vm586, %v1854, %v2414
        %v2751 = vsel %vm586, %v1855, %v2416
        %v2752 = vsel %vm586, %v1856, %v2418
        %v2753 = vsel %vm586, %v1857, %v2420
        %v2754 = vsel %vm586, %v1858, %v2422
        %v2755 = vsel %vm586, %v1859, %v2424
        %v2756 = vsel %vm586, %v1860, %v2426
        %v2757 = vsel %vm586, %v1861, %v2428
        %v2758 = vsel %vm586, %v1862, %v2430
        %v2759 = vsel %vm586, %v1863, %v2432
        %v2760 = vsel %vm586, %v1864, %v2434
        %v2761 = vsel %vm586, %v1865, %v2436
        %v2762 = vsel %vm586, %v1866, %v2438
        %v2763 = vsel %vm586, %v1867, %v2440
        %v2764 = vsel %vm586, %v1868, %v2442
        %v2765 = vsel %vm586, %v1869, %v2444
        %v2766 = vsel %vm586, %v1870, %v2446
        %vm2767 = vcmask 261120
        %v2768 = vsel %vm2767, %v2735, %v2512
        %v2769 = vsel %vm2767, %v2736, %v2514
        %v2770 = vsel %vm2767, %v2737, %v2516
        %v2771 = vsel %vm2767, %v2738, %v2518
        %v2772 = vsel %vm2767, %v2739, %v2520
        %v2773 = vsel %vm2767, %v2740, %v2522
        %v2774 = vsel %vm2767, %v2741, %v2524
        %v2775 = vsel %vm2767, %v2742, %v2526
        %v2776 = vsel %vm2767, %v2743, %v2528
        %v2777 = vsel %vm2767, %v2744, %v2530
        %v2778 = vsel %vm2767, %v2745, %v2532
        %v2779 = vsel %vm2767, %v2746, %v2534
        %v2780 = vsel %vm2767, %v2747, %v2536
        %v2781 = vsel %vm2767, %v2748, %v2538
        %v2782 = vsel %vm2767, %v2749, %v2540
        %v2783 = vsel %vm2767, %v2750, %v2542
        %v2784 = vsel %vm2767, %v2751, %v2544
        %v2785 = vsel %vm2767, %v2752, %v2546
        %v2786 = vsel %vm2767, %v2753, %v2548
        %v2787 = vsel %vm2767, %v2754, %v2550
        %v2788 = vsel %vm2767, %v2755, %v2552
        %v2789 = vsel %vm2767, %v2756, %v2554
        %v2790 = vsel %vm2767, %v2757, %v2556
        %v2791 = vsel %vm2767, %v2758, %v2558
        %v2792 = vsel %vm2767, %v2759, %v2560
        %v2793 = vsel %vm2767, %v2760, %v2562
        %v2794 = vsel %vm2767, %v2761, %v2564
        %v2795 = vsel %vm2767, %v2762, %v2566
        %v2796 = vsel %vm2767, %v2763, %v2568
        %v2797 = vsel %vm2767, %v2764, %v2570
        %v2798 = vsel %vm2767, %v2765, %v2572
        %v2799 = vsel %vm2767, %v2766, %v2574
        %vm2800 = vcmask 392192
        %v2801 = vsel %vm2800, %v2768, %v2640
        %v2802 = vsel %vm2800, %v2769, %v2642
        %v2803 = vsel %vm2800, %v2770, %v2644
        %v2804 = vsel %vm2800, %v2771, %v2646
        %v2805 = vsel %vm2800, %v2772, %v2648
        %v2806 = vsel %vm2800, %v2773, %v2650
        %v2807 = vsel %vm2800, %v2774, %v2652
        %v2808 = vsel %vm2800, %v2775, %v2654
        %v2809 = vsel %vm2800, %v2776, %v2656
        %v2810 = vsel %vm2800, %v2777, %v2658
        %v2811 = vsel %vm2800, %v2778, %v2660
        %v2812 = vsel %vm2800, %v2779, %v2662
        %v2813 = vsel %vm2800, %v2780, %v2664
        %v2814 = vsel %vm2800, %v2781, %v2666
        %v2815 = vsel %vm2800, %v2782, %v2668
        %v2816 = vsel %vm2800, %v2783, %v2670
        %v2817 = vsel %vm2800, %v2784, %v2672
        %v2818 = vsel %vm2800, %v2785, %v2674
        %v2819 = vsel %vm2800, %v2786, %v2676
        %v2820 = vsel %vm2800, %v2787, %v2678
        %v2821 = vsel %vm2800, %v2788, %v2680
        %v2822 = vsel %vm2800, %v2789, %v2682
        %v2823 = vsel %vm2800, %v2790, %v2684
        %v2824 = vsel %vm2800, %v2791, %v2686
        %v2825 = vsel %vm2800, %v2792, %v2688
        %v2826 = vsel %vm2800, %v2793, %v2690
        %v2827 = vsel %vm2800, %v2794, %v2692
        %v2828 = vsel %vm2800, %v2795, %v2694
        %v2829 = vsel %vm2800, %v2796, %v2696
        %v2830 = vsel %vm2800, %v2797, %v2698
        %v2831 = vsel %vm2800, %v2798, %v2700
        %v2832 = vsel %vm2800, %v2799, %v2702
        %v2833 = vpack.c.bf16 %v2802, %v2801
        %v2834 = vpack.c.bf16 %v2804, %v2803
        %v2835 = vpack.c.bf16 %v2806, %v2805
        %v2836 = vpack.c.bf16 %v2808, %v2807
        %v2837 = vpack.c.bf16 %v2810, %v2809
        %v2838 = vpack.c.bf16 %v2812, %v2811
        %v2839 = vpack.c.bf16 %v2814, %v2813
        %v2840 = vpack.c.bf16 %v2816, %v2815
        %v2841 = vpack.c.bf16 %v2818, %v2817
        %v2842 = vpack.c.bf16 %v2820, %v2819
        %v2843 = vpack.c.bf16 %v2822, %v2821
        %v2844 = vpack.c.bf16 %v2824, %v2823
        %v2845 = vpack.c.bf16 %v2826, %v2825
        %v2846 = vpack.c.bf16 %v2828, %v2827
        %v2847 = vpack.c.bf16 %v2830, %v2829
        %v2848 = vpack.c.bf16 %v2832, %v2831
        %v2849 = vld [vmem:[%s4] sm:$0xff]
        %v2850 = vld [vmem:[%s4 + $0x8] sm:$0xff]
        %v2851 = vld [vmem:[%s4 + $0x10] sm:$0xff]
        %v2852 = vld [vmem:[%s4 + $0x18] sm:$0xff]
        %v2853 = vld [vmem:[%s4 + $0x20] sm:$0xff]
        %v2854 = vld [vmem:[%s4 + $0x28] sm:$0xff]
        %v2855 = vld [vmem:[%s4 + $0x30] sm:$0xff]
        %v2856 = vld [vmem:[%s4 + $0x38] sm:$0xff]
        %v2857 = vld [vmem:[%s4 + $0x40] sm:$0xff]
        %v2858 = vld [vmem:[%s4 + $0x48] sm:$0xff]
        %v2859 = vld [vmem:[%s4 + $0x50] sm:$0xff]
        %v2860 = vld [vmem:[%s4 + $0x58] sm:$0xff]
        %v2861 = vld [vmem:[%s4 + $0x60] sm:$0xff]
        %v2862 = vld [vmem:[%s4 + $0x68] sm:$0xff]
        %v2863 = vld [vmem:[%s4 + $0x70] sm:$0xff]
        %v2864 = vld [vmem:[%s4 + $0x78] sm:$0xff]
        %v2865 = vld [vmem:[%s4 + $0x80] sm:$0xff]
        %v2866 = vld [vmem:[%s4 + $0x88] sm:$0xff]
        %v2867 = vld [vmem:[%s4 + $0x90] sm:$0xff]
        %v2868 = vld [vmem:[%s4 + $0x98] sm:$0xff]
        %v2869 = vld [vmem:[%s4 + $0xa0] sm:$0xff]
        %v2870 = vld [vmem:[%s4 + $0xa8] sm:$0xff]
        %v2871 = vld [vmem:[%s4 + $0xb0] sm:$0xff]
        %v2872 = vld [vmem:[%s4 + $0xb8] sm:$0xff]
        %v2873 = vld [vmem:[%s4 + $0xc0] sm:$0xff]
        %v2874 = vld [vmem:[%s4 + $0xc8] sm:$0xff]
        %v2875 = vld [vmem:[%s4 + $0xd0] sm:$0xff]
        %v2876 = vld [vmem:[%s4 + $0xd8] sm:$0xff]
        %v2877 = vld [vmem:[%s4 + $0xe0] sm:$0xff]
        %v2878 = vld [vmem:[%s4 + $0xe8] sm:$0xff]
        %v2879 = vld [vmem:[%s4 + $0xf0] sm:$0xff]
        %v2880 = vld [vmem:[%s4 + $0xf8] sm:$0xff]
        %v2913 = vunpack.c.l.b16 %v2849
        %v2914 = vunpack.c.h.b16 %v2849
        %v2915 = vunpack.c.l.b16 %v2850
        %v2916 = vunpack.c.h.b16 %v2850
        %v2917 = vunpack.c.l.b16 %v2851
        %v2918 = vunpack.c.h.b16 %v2851
        %v2919 = vunpack.c.l.b16 %v2852
        %v2920 = vunpack.c.h.b16 %v2852
        %v2921 = vunpack.c.l.b16 %v2853
        %v2922 = vunpack.c.h.b16 %v2853
        %v2923 = vunpack.c.l.b16 %v2854
        %v2924 = vunpack.c.h.b16 %v2854
        %v2925 = vunpack.c.l.b16 %v2855
        %v2926 = vunpack.c.h.b16 %v2855
        %v2927 = vunpack.c.l.b16 %v2856
        %v2928 = vunpack.c.h.b16 %v2856
        %v2929 = vunpack.c.l.b16 %v2857
        %v2930 = vunpack.c.h.b16 %v2857
        %v2931 = vunpack.c.l.b16 %v2858
        %v2932 = vunpack.c.h.b16 %v2858
        %v2933 = vunpack.c.l.b16 %v2859
        %v2934 = vunpack.c.h.b16 %v2859
        %v2935 = vunpack.c.l.b16 %v2860
        %v2936 = vunpack.c.h.b16 %v2860
        %v2937 = vunpack.c.l.b16 %v2861
        %v2938 = vunpack.c.h.b16 %v2861
        %v2939 = vunpack.c.l.b16 %v2862
        %v2940 = vunpack.c.h.b16 %v2862
        %v2941 = vunpack.c.l.b16 %v2863
        %v2942 = vunpack.c.h.b16 %v2863
        %v2943 = vunpack.c.l.b16 %v2864
        %v2944 = vunpack.c.h.b16 %v2864
        %v2945 = vunpack.c.l.b16 %v2865
        %v2946 = vunpack.c.h.b16 %v2865
        %v2947 = vunpack.c.l.b16 %v2866
        %v2948 = vunpack.c.h.b16 %v2866
        %v2949 = vunpack.c.l.b16 %v2867
        %v2950 = vunpack.c.h.b16 %v2867
        %v2951 = vunpack.c.l.b16 %v2868
        %v2952 = vunpack.c.h.b16 %v2868
        %v2953 = vunpack.c.l.b16 %v2869
        %v2954 = vunpack.c.h.b16 %v2869
        %v2955 = vunpack.c.l.b16 %v2870
        %v2956 = vunpack.c.h.b16 %v2870
        %v2957 = vunpack.c.l.b16 %v2871
        %v2958 = vunpack.c.h.b16 %v2871
        %v2959 = vunpack.c.l.b16 %v2872
        %v2960 = vunpack.c.h.b16 %v2872
        %v2961 = vunpack.c.l.b16 %v2873
        %v2962 = vunpack.c.h.b16 %v2873
        %v2963 = vunpack.c.l.b16 %v2874
        %v2964 = vunpack.c.h.b16 %v2874
        %v2965 = vunpack.c.l.b16 %v2875
        %v2966 = vunpack.c.h.b16 %v2875
        %v2967 = vunpack.c.l.b16 %v2876
        %v2968 = vunpack.c.h.b16 %v2876
        %v2969 = vunpack.c.l.b16 %v2877
        %v2970 = vunpack.c.h.b16 %v2877
        %v2971 = vunpack.c.l.b16 %v2878
        %v2972 = vunpack.c.h.b16 %v2878
        %v2973 = vunpack.c.l.b16 %v2879
        %v2974 = vunpack.c.h.b16 %v2879
        %v2975 = vunpack.c.l.b16 %v2880
        %v2976 = vunpack.c.h.b16 %v2880
        %v2977 = vpack.c.b16 %v2921, %v2913
        %v2978 = vpack.c.b16 %v2922, %v2914
        %v2979 = vpack.c.b16 %v2923, %v2915
        %v2980 = vpack.c.b16 %v2924, %v2916
        %v2981 = vpack.c.b16 %v2925, %v2917
        %v2982 = vpack.c.b16 %v2926, %v2918
        %v2983 = vpack.c.b16 %v2927, %v2919
        %v2984 = vpack.c.b16 %v2928, %v2920
        %v2985 = vpack.c.b16 %v2937, %v2929
        %v2986 = vpack.c.b16 %v2938, %v2930
        %v2987 = vpack.c.b16 %v2939, %v2931
        %v2988 = vpack.c.b16 %v2940, %v2932
        %v2989 = vpack.c.b16 %v2941, %v2933
        %v2990 = vpack.c.b16 %v2942, %v2934
        %v2991 = vpack.c.b16 %v2943, %v2935
        %v2992 = vpack.c.b16 %v2944, %v2936
        %v2993 = vpack.c.b16 %v2953, %v2945
        %v2994 = vpack.c.b16 %v2954, %v2946
        %v2995 = vpack.c.b16 %v2955, %v2947
        %v2996 = vpack.c.b16 %v2956, %v2948
        %v2997 = vpack.c.b16 %v2957, %v2949
        %v2998 = vpack.c.b16 %v2958, %v2950
        %v2999 = vpack.c.b16 %v2959, %v2951
        %v3000 = vpack.c.b16 %v2960, %v2952
        %v3001 = vpack.c.b16 %v2969, %v2961
        %v3002 = vpack.c.b16 %v2970, %v2962
        %v3003 = vpack.c.b16 %v2971, %v2963
        %v3004 = vpack.c.b16 %v2972, %v2964
        %v3005 = vpack.c.b16 %v2973, %v2965
        %v3006 = vpack.c.b16 %v2974, %v2966
        %v3007 = vpack.c.b16 %v2975, %v2967
        %v3008 = vpack.c.b16 %v2976, %v2968
        %vm3041 = vcmask 523264
        %v3043 = vsel %vm3041, %v2833, 0
        %v3046 = vsel %vm3041, %v2834, 0
        %v3049 = vsel %vm3041, %v2835, 0
        %v3052 = vsel %vm3041, %v2836, 0
        %v3055 = vsel %vm3041, %v2837, 0
        %v3058 = vsel %vm3041, %v2838, 0
        %v3061 = vsel %vm3041, %v2839, 0
        %v3064 = vsel %vm3041, %v2840, 0
        %v3067 = vsel %vm3041, %v2841, 0
        %v3070 = vsel %vm3041, %v2842, 0
        %v3073 = vsel %vm3041, %v2843, 0
        %v3076 = vsel %vm3041, %v2844, 0
        %v3079 = vsel %vm3041, %v2845, 0
        %v3082 = vsel %vm3041, %v2846, 0
        %v3085 = vsel %vm3041, %v2847, 0
        %v3088 = vsel %vm3041, %v2848, 0
        %3090 = vmatprep.subr.bf16.mxu0 %v2978
        %3091 = vmatpush1.bf16.msra.mxu0 %v2977
        %3092 = vmatprep.subr.bf16.mxu0 %v2986
        %3093 = vmatpush1.bf16.msra.mxu0 %v2985
        %3094 = vmatprep.subr.bf16.mxu0 %v2994
        %3095 = vmatpush1.bf16.msra.mxu0 %v2993
        %3096 = vmatprep.subr.bf16.mxu0 %v3002
        %3097 = vmatpush1.bf16.msra.mxu0 %v3001
        %3098 = vmatprep.subr.bf16.mxu0 0
        %3099 = vmatpush1.bf16.msra.mxu0 0
        %3100 = vmatprep.subr.bf16.mxu0 0
        %3101 = vmatpush1.bf16.msra.mxu0 0
        %3102 = vmatprep.subr.bf16.mxu0 0
        %3103 = vmatpush1.bf16.msra.mxu0 0
        %3104 = vmatprep.subr.bf16.mxu0 0
        %3105 = vmatpush1.bf16.msra.mxu0 0
        %3106 = vmatprep.subr.bf16.mxu0 0
        %3107 = vmatpush1.bf16.msra.mxu0 0
        %3108 = vmatprep.subr.bf16.mxu0 0
        %3109 = vmatpush1.bf16.msra.mxu0 0
        %3110 = vmatprep.subr.bf16.mxu0 0
        %3111 = vmatpush1.bf16.msra.mxu0 0
        %3112 = vmatprep.subr.bf16.mxu0 0
        %3113 = vmatpush1.bf16.msra.mxu0 0
        %3114 = vmatprep.subr.bf16.mxu0 0
        %3115 = vmatpush1.bf16.msra.mxu0 0
        %3116 = vmatprep.subr.bf16.mxu0 0
        %3117 = vmatpush1.bf16.msra.mxu0 0
        %3118 = vmatprep.subr.bf16.mxu0 0
        %3119 = vmatpush1.bf16.msra.mxu0 0
        %3120 = vmatprep.subr.bf16.mxu0 0
        %3121 = vmatpush1.bf16.msra.mxu0 0
        %3122 = vmatprep.mubr.bf16.mxu0 0
        %3123 = vmatmul.mubr.bf16.gmra.mrb[0].mxu0 %v3043
        %v3124 = vpop.f32.mrb[0].mxu0
        %v3125 = vadd.f32 0.0, %v3124
        %v3126 = vpop.f32.mrb[0].mxu0
        %v3127 = vadd.f32 0.0, %v3126
        %v3128 = vpop.f32.mrb[0].mxu0
        %v3129 = vadd.f32 0.0, %v3128
        %v3130 = vpop.f32.mrb[0].mxu0
        %v3131 = vadd.f32 0.0, %v3130
        %3132 = vmatprep.mubr.bf16.mxu0 0
        %3133 = vmatmul.mubr.bf16.gmra.mrb[0].mxu0 %v3046
        %v3134 = vpop.f32.mrb[0].mxu0
        %v3135 = vadd.f32 0.0, %v3134
        %v3136 = vpop.f32.mrb[0].mxu0
        %v3137 = vadd.f32 0.0, %v3136
        %v3138 = vpop.f32.mrb[0].mxu0
        %v3139 = vadd.f32 0.0, %v3138
        %v3140 = vpop.f32.mrb[0].mxu0
        %v3141 = vadd.f32 0.0, %v3140
        %3142 = vmatprep.mubr.bf16.mxu0 0
        %3143 = vmatmul.mubr.bf16.gmra.mrb[0].mxu0 %v3049
        %v3144 = vpop.f32.mrb[0].mxu0
        %v3145 = vadd.f32 0.0, %v3144
        %v3146 = vpop.f32.mrb[0].mxu0
        %v3147 = vadd.f32 0.0, %v3146
        %v3148 = vpop.f32.mrb[0].mxu0
        %v3149 = vadd.f32 0.0, %v3148
        %v3150 = vpop.f32.mrb[0].mxu0
        %v3151 = vadd.f32 0.0, %v3150
        %3152 = vmatprep.mubr.bf16.mxu0 0
        %3153 = vmatmul.mubr.bf16.gmra.mrb[0].mxu0 %v3052
        %v3154 = vpop.f32.mrb[0].mxu0
        %v3155 = vadd.f32 0.0, %v3154
        %v3156 = vpop.f32.mrb[0].mxu0
        %v3157 = vadd.f32 0.0, %v3156
        %v3158 = vpop.f32.mrb[0].mxu0
        %v3159 = vadd.f32 0.0, %v3158
        %v3160 = vpop.f32.mrb[0].mxu0
        %v3161 = vadd.f32 0.0, %v3160
        %3162 = vmatprep.mubr.bf16.mxu0 0
        %3163 = vmatmul.mubr.bf16.gmra.mrb[0].mxu0 %v3055
        %v3164 = vpop.f32.mrb[0].mxu0
        %v3165 = vadd.f32 0.0, %v3164
        %v3166 = vpop.f32.mrb[0].mxu0
        %v3167 = vadd.f32 0.0, %v3166
        %v3168 = vpop.f32.mrb[0].mxu0
        %v3169 = vadd.f32 0.0, %v3168
        %v3170 = vpop.f32.mrb[0].mxu0
        %v3171 = vadd.f32 0.0, %v3170
        %3172 = vmatprep.mubr.bf16.mxu0 0
        %3173 = vmatmul.mubr.bf16.gmra.mrb[0].mxu0 %v3058
        %v3174 = vpop.f32.mrb[0].mxu0
        %v3175 = vadd.f32 0.0, %v3174
        %v3176 = vpop.f32.mrb[0].mxu0
        %v3177 = vadd.f32 0.0, %v3176
        %v3178 = vpop.f32.mrb[0].mxu0
        %v3179 = vadd.f32 0.0, %v3178
        %v3180 = vpop.f32.mrb[0].mxu0
        %v3181 = vadd.f32 0.0, %v3180
        %3182 = vmatprep.mubr.bf16.mxu0 0
        %3183 = vmatmul.mubr.bf16.gmra.mrb[0].mxu0 %v3061
        %v3184 = vpop.f32.mrb[0].mxu0
        %v3185 = vadd.f32 0.0, %v3184
        %v3186 = vpop.f32.mrb[0].mxu0
        %v3187 = vadd.f32 0.0, %v3186
        %v3188 = vpop.f32.mrb[0].mxu0
        %v3189 = vadd.f32 0.0, %v3188
        %v3190 = vpop.f32.mrb[0].mxu0
        %v3191 = vadd.f32 0.0, %v3190
        %3192 = vmatprep.mubr.bf16.mxu0 0
        %3193 = vmatmul.mubr.bf16.gmra.mrb[0].mxu0 %v3064
        %v3194 = vpop.f32.mrb[0].mxu0
        %v3195 = vadd.f32 0.0, %v3194
        %v3196 = vpop.f32.mrb[0].mxu0
        %v3197 = vadd.f32 0.0, %v3196
        %v3198 = vpop.f32.mrb[0].mxu0
        %v3199 = vadd.f32 0.0, %v3198
        %v3200 = vpop.f32.mrb[0].mxu0
        %v3201 = vadd.f32 0.0, %v3200
        %3202 = vmatprep.mubr.bf16.mxu0 0
        %3203 = vmatmul.mubr.bf16.gmra.mrb[0].mxu0 %v3067
        %v3204 = vpop.f32.mrb[0].mxu0
        %v3205 = vadd.f32 0.0, %v3204
        %v3206 = vpop.f32.mrb[0].mxu0
        %v3207 = vadd.f32 0.0, %v3206
        %v3208 = vpop.f32.mrb[0].mxu0
        %v3209 = vadd.f32 0.0, %v3208
        %v3210 = vpop.f32.mrb[0].mxu0
        %v3211 = vadd.f32 0.0, %v3210
        %3212 = vmatprep.mubr.bf16.mxu0 0
        %3213 = vmatmul.mubr.bf16.gmra.mrb[0].mxu0 %v3070
        %v3214 = vpop.f32.mrb[0].mxu0
        %v3215 = vadd.f32 0.0, %v3214
        %v3216 = vpop.f32.mrb[0].mxu0
        %v3217 = vadd.f32 0.0, %v3216
        %v3218 = vpop.f32.mrb[0].mxu0
        %v3219 = vadd.f32 0.0, %v3218
        %v3220 = vpop.f32.mrb[0].mxu0
        %v3221 = vadd.f32 0.0, %v3220
        %3222 = vmatprep.mubr.bf16.mxu0 0
        %3223 = vmatmul.mubr.bf16.gmra.mrb[0].mxu0 %v3073
        %v3224 = vpop.f32.mrb[0].mxu0
        %v3225 = vadd.f32 0.0, %v3224
        %v3226 = vpop.f32.mrb[0].mxu0
        %v3227 = vadd.f32 0.0, %v3226
        %v3228 = vpop.f32.mrb[0].mxu0
        %v3229 = vadd.f32 0.0, %v3228
        %v3230 = vpop.f32.mrb[0].mxu0
        %v3231 = vadd.f32 0.0, %v3230
        %3232 = vmatprep.mubr.bf16.mxu0 0
        %3233 = vmatmul.mubr.bf16.gmra.mrb[0].mxu0 %v3076
        %v3234 = vpop.f32.mrb[0].mxu0
        %v3235 = vadd.f32 0.0, %v3234
        %v3236 = vpop.f32.mrb[0].mxu0
        %v3237 = vadd.f32 0.0, %v3236
        %v3238 = vpop.f32.mrb[0].mxu0
        %v3239 = vadd.f32 0.0, %v3238
        %v3240 = vpop.f32.mrb[0].mxu0
        %v3241 = vadd.f32 0.0, %v3240
        %3242 = vmatprep.mubr.bf16.mxu0 0
        %3243 = vmatmul.mubr.bf16.gmra.mrb[0].mxu0 %v3079
        %v3244 = vpop.f32.mrb[0].mxu0
        %v3245 = vadd.f32 0.0, %v3244
        %v3246 = vpop.f32.mrb[0].mxu0
        %v3247 = vadd.f32 0.0, %v3246
        %v3248 = vpop.f32.mrb[0].mxu0
        %v3249 = vadd.f32 0.0, %v3248
        %v3250 = vpop.f32.mrb[0].mxu0
        %v3251 = vadd.f32 0.0, %v3250
        %3252 = vmatprep.mubr.bf16.mxu0 0
        %3253 = vmatmul.mubr.bf16.gmra.mrb[0].mxu0 %v3082
        %v3254 = vpop.f32.mrb[0].mxu0
        %v3255 = vadd.f32 0.0, %v3254
        %v3256 = vpop.f32.mrb[0].mxu0
        %v3257 = vadd.f32 0.0, %v3256
        %v3258 = vpop.f32.mrb[0].mxu0
        %v3259 = vadd.f32 0.0, %v3258
        %v3260 = vpop.f32.mrb[0].mxu0
        %v3261 = vadd.f32 0.0, %v3260
        %3262 = vmatprep.mubr.bf16.mxu0 0
        %3263 = vmatmul.mubr.bf16.gmra.mrb[0].mxu0 %v3085
        %v3264 = vpop.f32.mrb[0].mxu0
        %v3265 = vadd.f32 0.0, %v3264
        %v3266 = vpop.f32.mrb[0].mxu0
        %v3267 = vadd.f32 0.0, %v3266
        %v3268 = vpop.f32.mrb[0].mxu0
        %v3269 = vadd.f32 0.0, %v3268
        %v3270 = vpop.f32.mrb[0].mxu0
        %v3271 = vadd.f32 0.0, %v3270
        %3272 = vmatprep.mubr.bf16.mxu0 0
        %3273 = vmatmul.mubr.bf16.gmra.mrb[0].mxu0 %v3088
        %v3274 = vpop.f32.mrb[0].mxu0
        %v3275 = vadd.f32 0.0, %v3274
        %v3276 = vpop.f32.mrb[0].mxu0
        %v3277 = vadd.f32 0.0, %v3276
        %v3278 = vpop.f32.mrb[0].mxu0
        %v3279 = vadd.f32 0.0, %v3278
        %v3280 = vpop.f32.mrb[0].mxu0
        %v3281 = vadd.f32 0.0, %v3280
        %3282 = vdwg.mxu0
        %3283 = vmatprep.subr.bf16.mxu0 %v2980
        %3284 = vmatpush1.bf16.msra.mxu0 %v2979
        %3285 = vmatprep.subr.bf16.mxu0 %v2988
        %3286 = vmatpush1.bf16.msra.mxu0 %v2987
        %3287 = vmatprep.subr.bf16.mxu0 %v2996
        %3288 = vmatpush1.bf16.msra.mxu0 %v2995
        %3289 = vmatprep.subr.bf16.mxu0 %v3004
        %3290 = vmatpush1.bf16.msra.mxu0 %v3003
        %3291 = vmatprep.subr.bf16.mxu0 0
        %3292 = vmatpush1.bf16.msra.mxu0 0
        %3293 = vmatprep.subr.bf16.mxu0 0
        %3294 = vmatpush1.bf16.msra.mxu0 0
        %3295 = vmatprep.subr.bf16.mxu0 0
        %3296 = vmatpush1.bf16.msra.mxu0 0
        %3297 = vmatprep.subr.bf16.mxu0 0
        %3298 = vmatpush1.bf16.msra.mxu0 0
        %3299 = vmatprep.subr.bf16.mxu0 0
        %3300 = vmatpush1.bf16.msra.mxu0 0
        %3301 = vmatprep.subr.bf16.mxu0 0
        %3302 = vmatpush1.bf16.msra.mxu0 0
        %3303 = vmatprep.subr.bf16.mxu0 0
        %3304 = vmatpush1.bf16.msra.mxu0 0
        %3305 = vmatprep.subr.bf16.mxu0 0
        %3306 = vmatpush1.bf16.msra.mxu0 0
        %3307 = vmatprep.subr.bf16.mxu0 0
        %3308 = vmatpush1.bf16.msra.mxu0 0
        %3309 = vmatprep.subr.bf16.mxu0 0
        %3310 = vmatpush1.bf16.msra.mxu0 0
        %3311 = vmatprep.subr.bf16.mxu0 0
        %3312 = vmatpush1.bf16.msra.mxu0 0
        %3313 = vmatprep.subr.bf16.mxu0 0
        %3314 = vmatpush1.bf16.msra.mxu0 0
        %3315 = vmatprep.mubr.bf16.mxu0 0
        %3316 = vmatmul.mubr.bf16.gmra.mrb[0].mxu0 %v3043
        %v3317 = vpop.f32.mrb[0].mxu0
        %v3318 = vadd.f32 0.0, %v3317
        %v3319 = vpop.f32.mrb[0].mxu0
        %v3320 = vadd.f32 0.0, %v3319
        %v3321 = vpop.f32.mrb[0].mxu0
        %v3322 = vadd.f32 0.0, %v3321
        %v3323 = vpop.f32.mrb[0].mxu0
        %v3324 = vadd.f32 0.0, %v3323
        %3325 = vmatprep.mubr.bf16.mxu0 0
        %3326 = vmatmul.mubr.bf16.gmra.mrb[0].mxu0 %v3046
        %v3327 = vpop.f32.mrb[0].mxu0
        %v3328 = vadd.f32 0.0, %v3327
        %v3329 = vpop.f32.mrb[0].mxu0
        %v3330 = vadd.f32 0.0, %v3329
        %v3331 = vpop.f32.mrb[0].mxu0
        %v3332 = vadd.f32 0.0, %v3331
        %v3333 = vpop.f32.mrb[0].mxu0
        %v3334 = vadd.f32 0.0, %v3333
        %3335 = vmatprep.mubr.bf16.mxu0 0
        %3336 = vmatmul.mubr.bf16.gmra.mrb[0].mxu0 %v3049
        %v3337 = vpop.f32.mrb[0].mxu0
        %v3338 = vadd.f32 0.0, %v3337
        %v3339 = vpop.f32.mrb[0].mxu0
        %v3340 = vadd.f32 0.0, %v3339
        %v3341 = vpop.f32.mrb[0].mxu0
        %v3342 = vadd.f32 0.0, %v3341
        %v3343 = vpop.f32.mrb[0].mxu0
        %v3344 = vadd.f32 0.0, %v3343
        %3345 = vmatprep.mubr.bf16.mxu0 0
        %3346 = vmatmul.mubr.bf16.gmra.mrb[0].mxu0 %v3052
        %v3347 = vpop.f32.mrb[0].mxu0
        %v3348 = vadd.f32 0.0, %v3347
        %v3349 = vpop.f32.mrb[0].mxu0
        %v3350 = vadd.f32 0.0, %v3349
        %v3351 = vpop.f32.mrb[0].mxu0
        %v3352 = vadd.f32 0.0, %v3351
        %v3353 = vpop.f32.mrb[0].mxu0
        %v3354 = vadd.f32 0.0, %v3353
        %3355 = vmatprep.mubr.bf16.mxu0 0
        %3356 = vmatmul.mubr.bf16.gmra.mrb[0].mxu0 %v3055
        %v3357 = vpop.f32.mrb[0].mxu0
        %v3358 = vadd.f32 0.0, %v3357
        %v3359 = vpop.f32.mrb[0].mxu0
        %v3360 = vadd.f32 0.0, %v3359
        %v3361 = vpop.f32.mrb[0].mxu0
        %v3362 = vadd.f32 0.0, %v3361
        %v3363 = vpop.f32.mrb[0].mxu0
        %v3364 = vadd.f32 0.0, %v3363
        %3365 = vmatprep.mubr.bf16.mxu0 0
        %3366 = vmatmul.mubr.bf16.gmra.mrb[0].mxu0 %v3058
        %v3367 = vpop.f32.mrb[0].mxu0
        %v3368 = vadd.f32 0.0, %v3367
        %v3369 = vpop.f32.mrb[0].mxu0
        %v3370 = vadd.f32 0.0, %v3369
        %v3371 = vpop.f32.mrb[0].mxu0
        %v3372 = vadd.f32 0.0, %v3371
        %v3373 = vpop.f32.mrb[0].mxu0
        %v3374 = vadd.f32 0.0, %v3373
        %3375 = vmatprep.mubr.bf16.mxu0 0
        %3376 = vmatmul.mubr.bf16.gmra.mrb[0].mxu0 %v3061
        %v3377 = vpop.f32.mrb[0].mxu0
        %v3378 = vadd.f32 0.0, %v3377
        %v3379 = vpop.f32.mrb[0].mxu0
        %v3380 = vadd.f32 0.0, %v3379
        %v3381 = vpop.f32.mrb[0].mxu0
        %v3382 = vadd.f32 0.0, %v3381
        %v3383 = vpop.f32.mrb[0].mxu0
        %v3384 = vadd.f32 0.0, %v3383
        %3385 = vmatprep.mubr.bf16.mxu0 0
        %3386 = vmatmul.mubr.bf16.gmra.mrb[0].mxu0 %v3064
        %v3387 = vpop.f32.mrb[0].mxu0
        %v3388 = vadd.f32 0.0, %v3387
        %v3389 = vpop.f32.mrb[0].mxu0
        %v3390 = vadd.f32 0.0, %v3389
        %v3391 = vpop.f32.mrb[0].mxu0
        %v3392 = vadd.f32 0.0, %v3391
        %v3393 = vpop.f32.mrb[0].mxu0
        %v3394 = vadd.f32 0.0, %v3393
        %3395 = vmatprep.mubr.bf16.mxu0 0
        %3396 = vmatmul.mubr.bf16.gmra.mrb[0].mxu0 %v3067
        %v3397 = vpop.f32.mrb[0].mxu0
        %v3398 = vadd.f32 0.0, %v3397
        %v3399 = vpop.f32.mrb[0].mxu0
        %v3400 = vadd.f32 0.0, %v3399
        %v3401 = vpop.f32.mrb[0].mxu0
        %v3402 = vadd.f32 0.0, %v3401
        %v3403 = vpop.f32.mrb[0].mxu0
        %v3404 = vadd.f32 0.0, %v3403
        %3405 = vmatprep.mubr.bf16.mxu0 0
        %3406 = vmatmul.mubr.bf16.gmra.mrb[0].mxu0 %v3070
        %v3407 = vpop.f32.mrb[0].mxu0
        %v3408 = vadd.f32 0.0, %v3407
        %v3409 = vpop.f32.mrb[0].mxu0
        %v3410 = vadd.f32 0.0, %v3409
        %v3411 = vpop.f32.mrb[0].mxu0
        %v3412 = vadd.f32 0.0, %v3411
        %v3413 = vpop.f32.mrb[0].mxu0
        %v3414 = vadd.f32 0.0, %v3413
        %3415 = vmatprep.mubr.bf16.mxu0 0
        %3416 = vmatmul.mubr.bf16.gmra.mrb[0].mxu0 %v3073
        %v3417 = vpop.f32.mrb[0].mxu0
        %v3418 = vadd.f32 0.0, %v3417
        %v3419 = vpop.f32.mrb[0].mxu0
        %v3420 = vadd.f32 0.0, %v3419
        %v3421 = vpop.f32.mrb[0].mxu0
        %v3422 = vadd.f32 0.0, %v3421
        %v3423 = vpop.f32.mrb[0].mxu0
        %v3424 = vadd.f32 0.0, %v3423
        %3425 = vmatprep.mubr.bf16.mxu0 0
        %3426 = vmatmul.mubr.bf16.gmra.mrb[0].mxu0 %v3076
        %v3427 = vpop.f32.mrb[0].mxu0
        %v3428 = vadd.f32 0.0, %v3427
        %v3429 = vpop.f32.mrb[0].mxu0
        %v3430 = vadd.f32 0.0, %v3429
        %v3431 = vpop.f32.mrb[0].mxu0
        %v3432 = vadd.f32 0.0, %v3431
        %v3433 = vpop.f32.mrb[0].mxu0
        %v3434 = vadd.f32 0.0, %v3433
        %3435 = vmatprep.mubr.bf16.mxu0 0
        %3436 = vmatmul.mubr.bf16.gmra.mrb[0].mxu0 %v3079
        %v3437 = vpop.f32.mrb[0].mxu0
        %v3438 = vadd.f32 0.0, %v3437
        %v3439 = vpop.f32.mrb[0].mxu0
        %v3440 = vadd.f32 0.0, %v3439
        %v3441 = vpop.f32.mrb[0].mxu0
        %v3442 = vadd.f32 0.0, %v3441
        %v3443 = vpop.f32.mrb[0].mxu0
        %v3444 = vadd.f32 0.0, %v3443
        %3445 = vmatprep.mubr.bf16.mxu0 0
        %3446 = vmatmul.mubr.bf16.gmra.mrb[0].mxu0 %v3082
        %v3447 = vpop.f32.mrb[0].mxu0
        %v3448 = vadd.f32 0.0, %v3447
        %v3449 = vpop.f32.mrb[0].mxu0
        %v3450 = vadd.f32 0.0, %v3449
        %v3451 = vpop.f32.mrb[0].mxu0
        %v3452 = vadd.f32 0.0, %v3451
        %v3453 = vpop.f32.mrb[0].mxu0
        %v3454 = vadd.f32 0.0, %v3453
        %3455 = vmatprep.mubr.bf16.mxu0 0
        %3456 = vmatmul.mubr.bf16.gmra.mrb[0].mxu0 %v3085
        %v3457 = vpop.f32.mrb[0].mxu0
        %v3458 = vadd.f32 0.0, %v3457
        %v3459 = vpop.f32.mrb[0].mxu0
        %v3460 = vadd.f32 0.0, %v3459
        %v3461 = vpop.f32.mrb[0].mxu0
        %v3462 = vadd.f32 0.0, %v3461
        %v3463 = vpop.f32.mrb[0].mxu0
        %v3464 = vadd.f32 0.0, %v3463
        %3465 = vmatprep.mubr.bf16.mxu0 0
        %3466 = vmatmul.mubr.bf16.gmra.mrb[0].mxu0 %v3088
        %v3467 = vpop.f32.mrb[0].mxu0
        %v3468 = vadd.f32 0.0, %v3467
        %v3469 = vpop.f32.mrb[0].mxu0
        %v3470 = vadd.f32 0.0, %v3469
        %v3471 = vpop.f32.mrb[0].mxu0
        %v3472 = vadd.f32 0.0, %v3471
        %v3473 = vpop.f32.mrb[0].mxu0
        %v3474 = vadd.f32 0.0, %v3473
        %3475 = vdwg.mxu0
        %3476 = vmatprep.subr.bf16.mxu0 %v2982
        %3477 = vmatpush1.bf16.msra.mxu0 %v2981
        %3478 = vmatprep.subr.bf16.mxu0 %v2990
        %3479 = vmatpush1.bf16.msra.mxu0 %v2989
        %3480 = vmatprep.subr.bf16.mxu0 %v2998
        %3481 = vmatpush1.bf16.msra.mxu0 %v2997
        %3482 = vmatprep.subr.bf16.mxu0 %v3006
        %3483 = vmatpush1.bf16.msra.mxu0 %v3005
        %3484 = vmatprep.subr.bf16.mxu0 0
        %3485 = vmatpush1.bf16.msra.mxu0 0
        %3486 = vmatprep.subr.bf16.mxu0 0
        %3487 = vmatpush1.bf16.msra.mxu0 0
        %3488 = vmatprep.subr.bf16.mxu0 0
        %3489 = vmatpush1.bf16.msra.mxu0 0
        %3490 = vmatprep.subr.bf16.mxu0 0
        %3491 = vmatpush1.bf16.msra.mxu0 0
        %3492 = vmatprep.subr.bf16.mxu0 0
        %3493 = vmatpush1.bf16.msra.mxu0 0
        %3494 = vmatprep.subr.bf16.mxu0 0
        %3495 = vmatpush1.bf16.msra.mxu0 0
        %3496 = vmatprep.subr.bf16.mxu0 0
        %3497 = vmatpush1.bf16.msra.mxu0 0
        %3498 = vmatprep.subr.bf16.mxu0 0
        %3499 = vmatpush1.bf16.msra.mxu0 0
        %3500 = vmatprep.subr.bf16.mxu0 0
        %3501 = vmatpush1.bf16.msra.mxu0 0
        %3502 = vmatprep.subr.bf16.mxu0 0
        %3503 = vmatpush1.bf16.msra.mxu0 0
        %3504 = vmatprep.subr.bf16.mxu0 0
        %3505 = vmatpush1.bf16.msra.mxu0 0
        %3506 = vmatprep.subr.bf16.mxu0 0
        %3507 = vmatpush1.bf16.msra.mxu0 0
        %3508 = vmatprep.mubr.bf16.mxu0 0
        %3509 = vmatmul.mubr.bf16.gmra.mrb[0].mxu0 %v3043
        %v3510 = vpop.f32.mrb[0].mxu0
        %v3511 = vadd.f32 0.0, %v3510
        %v3512 = vpop.f32.mrb[0].mxu0
        %v3513 = vadd.f32 0.0, %v3512
        %v3514 = vpop.f32.mrb[0].mxu0
        %v3515 = vadd.f32 0.0, %v3514
        %v3516 = vpop.f32.mrb[0].mxu0
        %v3517 = vadd.f32 0.0, %v3516
        %3518 = vmatprep.mubr.bf16.mxu0 0
        %3519 = vmatmul.mubr.bf16.gmra.mrb[0].mxu0 %v3046
        %v3520 = vpop.f32.mrb[0].mxu0
        %v3521 = vadd.f32 0.0, %v3520
        %v3522 = vpop.f32.mrb[0].mxu0
        %v3523 = vadd.f32 0.0, %v3522
        %v3524 = vpop.f32.mrb[0].mxu0
        %v3525 = vadd.f32 0.0, %v3524
        %v3526 = vpop.f32.mrb[0].mxu0
        %v3527 = vadd.f32 0.0, %v3526
        %3528 = vmatprep.mubr.bf16.mxu0 0
        %3529 = vmatmul.mubr.bf16.gmra.mrb[0].mxu0 %v3049
        %v3530 = vpop.f32.mrb[0].mxu0
        %v3531 = vadd.f32 0.0, %v3530
        %v3532 = vpop.f32.mrb[0].mxu0
        %v3533 = vadd.f32 0.0, %v3532
        %v3534 = vpop.f32.mrb[0].mxu0
        %v3535 = vadd.f32 0.0, %v3534
        %v3536 = vpop.f32.mrb[0].mxu0
        %v3537 = vadd.f32 0.0, %v3536
        %3538 = vmatprep.mubr.bf16.mxu0 0
        %3539 = vmatmul.mubr.bf16.gmra.mrb[0].mxu0 %v3052
        %v3540 = vpop.f32.mrb[0].mxu0
        %v3541 = vadd.f32 0.0, %v3540
        %v3542 = vpop.f32.mrb[0].mxu0
        %v3543 = vadd.f32 0.0, %v3542
        %v3544 = vpop.f32.mrb[0].mxu0
        %v3545 = vadd.f32 0.0, %v3544
        %v3546 = vpop.f32.mrb[0].mxu0
        %v3547 = vadd.f32 0.0, %v3546
        %3548 = vmatprep.mubr.bf16.mxu0 0
        %3549 = vmatmul.mubr.bf16.gmra.mrb[0].mxu0 %v3055
        %v3550 = vpop.f32.mrb[0].mxu0
        %v3551 = vadd.f32 0.0, %v3550
        %v3552 = vpop.f32.mrb[0].mxu0
        %v3553 = vadd.f32 0.0, %v3552
        %v3554 = vpop.f32.mrb[0].mxu0
        %v3555 = vadd.f32 0.0, %v3554
        %v3556 = vpop.f32.mrb[0].mxu0
        %v3557 = vadd.f32 0.0, %v3556
        %3558 = vmatprep.mubr.bf16.mxu0 0
        %3559 = vmatmul.mubr.bf16.gmra.mrb[0].mxu0 %v3058
        %v3560 = vpop.f32.mrb[0].mxu0
        %v3561 = vadd.f32 0.0, %v3560
        %v3562 = vpop.f32.mrb[0].mxu0
        %v3563 = vadd.f32 0.0, %v3562
        %v3564 = vpop.f32.mrb[0].mxu0
        %v3565 = vadd.f32 0.0, %v3564
        %v3566 = vpop.f32.mrb[0].mxu0
        %v3567 = vadd.f32 0.0, %v3566
        %3568 = vmatprep.mubr.bf16.mxu0 0
        %3569 = vmatmul.mubr.bf16.gmra.mrb[0].mxu0 %v3061
        %v3570 = vpop.f32.mrb[0].mxu0
        %v3571 = vadd.f32 0.0, %v3570
        %v3572 = vpop.f32.mrb[0].mxu0
        %v3573 = vadd.f32 0.0, %v3572
        %v3574 = vpop.f32.mrb[0].mxu0
        %v3575 = vadd.f32 0.0, %v3574
        %v3576 = vpop.f32.mrb[0].mxu0
        %v3577 = vadd.f32 0.0, %v3576
        %3578 = vmatprep.mubr.bf16.mxu0 0
        %3579 = vmatmul.mubr.bf16.gmra.mrb[0].mxu0 %v3064
        %v3580 = vpop.f32.mrb[0].mxu0
        %v3581 = vadd.f32 0.0, %v3580
        %v3582 = vpop.f32.mrb[0].mxu0
        %v3583 = vadd.f32 0.0, %v3582
        %v3584 = vpop.f32.mrb[0].mxu0
        %v3585 = vadd.f32 0.0, %v3584
        %v3586 = vpop.f32.mrb[0].mxu0
        %v3587 = vadd.f32 0.0, %v3586
        %3588 = vmatprep.mubr.bf16.mxu0 0
        %3589 = vmatmul.mubr.bf16.gmra.mrb[0].mxu0 %v3067
        %v3590 = vpop.f32.mrb[0].mxu0
        %v3591 = vadd.f32 0.0, %v3590
        %v3592 = vpop.f32.mrb[0].mxu0
        %v3593 = vadd.f32 0.0, %v3592
        %v3594 = vpop.f32.mrb[0].mxu0
        %v3595 = vadd.f32 0.0, %v3594
        %v3596 = vpop.f32.mrb[0].mxu0
        %v3597 = vadd.f32 0.0, %v3596
        %3598 = vmatprep.mubr.bf16.mxu0 0
        %3599 = vmatmul.mubr.bf16.gmra.mrb[0].mxu0 %v3070
        %v3600 = vpop.f32.mrb[0].mxu0
        %v3601 = vadd.f32 0.0, %v3600
        %v3602 = vpop.f32.mrb[0].mxu0
        %v3603 = vadd.f32 0.0, %v3602
        %v3604 = vpop.f32.mrb[0].mxu0
        %v3605 = vadd.f32 0.0, %v3604
        %v3606 = vpop.f32.mrb[0].mxu0
        %v3607 = vadd.f32 0.0, %v3606
        %3608 = vmatprep.mubr.bf16.mxu0 0
        %3609 = vmatmul.mubr.bf16.gmra.mrb[0].mxu0 %v3073
        %v3610 = vpop.f32.mrb[0].mxu0
        %v3611 = vadd.f32 0.0, %v3610
        %v3612 = vpop.f32.mrb[0].mxu0
        %v3613 = vadd.f32 0.0, %v3612
        %v3614 = vpop.f32.mrb[0].mxu0
        %v3615 = vadd.f32 0.0, %v3614
        %v3616 = vpop.f32.mrb[0].mxu0
        %v3617 = vadd.f32 0.0, %v3616
        %3618 = vmatprep.mubr.bf16.mxu0 0
        %3619 = vmatmul.mubr.bf16.gmra.mrb[0].mxu0 %v3076
        %v3620 = vpop.f32.mrb[0].mxu0
        %v3621 = vadd.f32 0.0, %v3620
        %v3622 = vpop.f32.mrb[0].mxu0
        %v3623 = vadd.f32 0.0, %v3622
        %v3624 = vpop.f32.mrb[0].mxu0
        %v3625 = vadd.f32 0.0, %v3624
        %v3626 = vpop.f32.mrb[0].mxu0
        %v3627 = vadd.f32 0.0, %v3626
        %3628 = vmatprep.mubr.bf16.mxu0 0
        %3629 = vmatmul.mubr.bf16.gmra.mrb[0].mxu0 %v3079
        %v3630 = vpop.f32.mrb[0].mxu0
        %v3631 = vadd.f32 0.0, %v3630
        %v3632 = vpop.f32.mrb[0].mxu0
        %v3633 = vadd.f32 0.0, %v3632
        %v3634 = vpop.f32.mrb[0].mxu0
        %v3635 = vadd.f32 0.0, %v3634
        %v3636 = vpop.f32.mrb[0].mxu0
        %v3637 = vadd.f32 0.0, %v3636
        %3638 = vmatprep.mubr.bf16.mxu0 0
        %3639 = vmatmul.mubr.bf16.gmra.mrb[0].mxu0 %v3082
        %v3640 = vpop.f32.mrb[0].mxu0
        %v3641 = vadd.f32 0.0, %v3640
        %v3642 = vpop.f32.mrb[0].mxu0
        %v3643 = vadd.f32 0.0, %v3642
        %v3644 = vpop.f32.mrb[0].mxu0
        %v3645 = vadd.f32 0.0, %v3644
        %v3646 = vpop.f32.mrb[0].mxu0
        %v3647 = vadd.f32 0.0, %v3646
        %3648 = vmatprep.mubr.bf16.mxu0 0
        %3649 = vmatmul.mubr.bf16.gmra.mrb[0].mxu0 %v3085
        %v3650 = vpop.f32.mrb[0].mxu0
        %v3651 = vadd.f32 0.0, %v3650
        %v3652 = vpop.f32.mrb[0].mxu0
        %v3653 = vadd.f32 0.0, %v3652
        %v3654 = vpop.f32.mrb[0].mxu0
        %v3655 = vadd.f32 0.0, %v3654
        %v3656 = vpop.f32.mrb[0].mxu0
        %v3657 = vadd.f32 0.0, %v3656
        %3658 = vmatprep.mubr.bf16.mxu0 0
        %3659 = vmatmul.mubr.bf16.gmra.mrb[0].mxu0 %v3088
        %v3660 = vpop.f32.mrb[0].mxu0
        %v3661 = vadd.f32 0.0, %v3660
        %v3662 = vpop.f32.mrb[0].mxu0
        %v3663 = vadd.f32 0.0, %v3662
        %v3664 = vpop.f32.mrb[0].mxu0
        %v3665 = vadd.f32 0.0, %v3664
        %v3666 = vpop.f32.mrb[0].mxu0
        %v3667 = vadd.f32 0.0, %v3666
        %3668 = vdwg.mxu0
        %3669 = vmatprep.subr.bf16.mxu0 %v2984
        %3670 = vmatpush1.bf16.msra.mxu0 %v2983
        %3671 = vmatprep.subr.bf16.mxu0 %v2992
        %3672 = vmatpush1.bf16.msra.mxu0 %v2991
        %3673 = vmatprep.subr.bf16.mxu0 %v3000
        %3674 = vmatpush1.bf16.msra.mxu0 %v2999
        %3675 = vmatprep.subr.bf16.mxu0 %v3008
        %3676 = vmatpush1.bf16.msra.mxu0 %v3007
        %3677 = vmatprep.subr.bf16.mxu0 0
        %3678 = vmatpush1.bf16.msra.mxu0 0
        %3679 = vmatprep.subr.bf16.mxu0 0
        %3680 = vmatpush1.bf16.msra.mxu0 0
        %3681 = vmatprep.subr.bf16.mxu0 0
        %3682 = vmatpush1.bf16.msra.mxu0 0
        %3683 = vmatprep.subr.bf16.mxu0 0
        %3684 = vmatpush1.bf16.msra.mxu0 0
        %3685 = vmatprep.subr.bf16.mxu0 0
        %3686 = vmatpush1.bf16.msra.mxu0 0
        %3687 = vmatprep.subr.bf16.mxu0 0
        %3688 = vmatpush1.bf16.msra.mxu0 0
        %3689 = vmatprep.subr.bf16.mxu0 0
        %3690 = vmatpush1.bf16.msra.mxu0 0
        %3691 = vmatprep.subr.bf16.mxu0 0
        %3692 = vmatpush1.bf16.msra.mxu0 0
        %3693 = vmatprep.subr.bf16.mxu0 0
        %3694 = vmatpush1.bf16.msra.mxu0 0
        %3695 = vmatprep.subr.bf16.mxu0 0
        %3696 = vmatpush1.bf16.msra.mxu0 0
        %3697 = vmatprep.subr.bf16.mxu0 0
        %3698 = vmatpush1.bf16.msra.mxu0 0
        %3699 = vmatprep.subr.bf16.mxu0 0
        %3700 = vmatpush1.bf16.msra.mxu0 0
        %3701 = vmatprep.mubr.bf16.mxu0 0
        %3702 = vmatmul.mubr.bf16.gmra.mrb[0].mxu0 %v3043
        %v3703 = vpop.f32.mrb[0].mxu0
        %v3704 = vadd.f32 0.0, %v3703
        %v3705 = vpop.f32.mrb[0].mxu0
        %v3706 = vadd.f32 0.0, %v3705
        %v3707 = vpop.f32.mrb[0].mxu0
        %v3708 = vadd.f32 0.0, %v3707
        %v3709 = vpop.f32.mrb[0].mxu0
        %v3710 = vadd.f32 0.0, %v3709
        %3711 = vmatprep.mubr.bf16.mxu0 0
        %3712 = vmatmul.mubr.bf16.gmra.mrb[0].mxu0 %v3046
        %v3713 = vpop.f32.mrb[0].mxu0
        %v3714 = vadd.f32 0.0, %v3713
        %v3715 = vpop.f32.mrb[0].mxu0
        %v3716 = vadd.f32 0.0, %v3715
        %v3717 = vpop.f32.mrb[0].mxu0
        %v3718 = vadd.f32 0.0, %v3717
        %v3719 = vpop.f32.mrb[0].mxu0
        %v3720 = vadd.f32 0.0, %v3719
        %3721 = vmatprep.mubr.bf16.mxu0 0
        %3722 = vmatmul.mubr.bf16.gmra.mrb[0].mxu0 %v3049
        %v3723 = vpop.f32.mrb[0].mxu0
        %v3724 = vadd.f32 0.0, %v3723
        %v3725 = vpop.f32.mrb[0].mxu0
        %v3726 = vadd.f32 0.0, %v3725
        %v3727 = vpop.f32.mrb[0].mxu0
        %v3728 = vadd.f32 0.0, %v3727
        %v3729 = vpop.f32.mrb[0].mxu0
        %v3730 = vadd.f32 0.0, %v3729
        %3731 = vmatprep.mubr.bf16.mxu0 0
        %3732 = vmatmul.mubr.bf16.gmra.mrb[0].mxu0 %v3052
        %v3733 = vpop.f32.mrb[0].mxu0
        %v3734 = vadd.f32 0.0, %v3733
        %v3735 = vpop.f32.mrb[0].mxu0
        %v3736 = vadd.f32 0.0, %v3735
        %v3737 = vpop.f32.mrb[0].mxu0
        %v3738 = vadd.f32 0.0, %v3737
        %v3739 = vpop.f32.mrb[0].mxu0
        %v3740 = vadd.f32 0.0, %v3739
        %3741 = vmatprep.mubr.bf16.mxu0 0
        %3742 = vmatmul.mubr.bf16.gmra.mrb[0].mxu0 %v3055
        %v3743 = vpop.f32.mrb[0].mxu0
        %v3744 = vadd.f32 0.0, %v3743
        %v3745 = vpop.f32.mrb[0].mxu0
        %v3746 = vadd.f32 0.0, %v3745
        %v3747 = vpop.f32.mrb[0].mxu0
        %v3748 = vadd.f32 0.0, %v3747
        %v3749 = vpop.f32.mrb[0].mxu0
        %v3750 = vadd.f32 0.0, %v3749
        %3751 = vmatprep.mubr.bf16.mxu0 0
        %3752 = vmatmul.mubr.bf16.gmra.mrb[0].mxu0 %v3058
        %v3753 = vpop.f32.mrb[0].mxu0
        %v3754 = vadd.f32 0.0, %v3753
        %v3755 = vpop.f32.mrb[0].mxu0
        %v3756 = vadd.f32 0.0, %v3755
        %v3757 = vpop.f32.mrb[0].mxu0
        %v3758 = vadd.f32 0.0, %v3757
        %v3759 = vpop.f32.mrb[0].mxu0
        %v3760 = vadd.f32 0.0, %v3759
        %3761 = vmatprep.mubr.bf16.mxu0 0
        %3762 = vmatmul.mubr.bf16.gmra.mrb[0].mxu0 %v3061
        %v3763 = vpop.f32.mrb[0].mxu0
        %v3764 = vadd.f32 0.0, %v3763
        %v3765 = vpop.f32.mrb[0].mxu0
        %v3766 = vadd.f32 0.0, %v3765
        %v3767 = vpop.f32.mrb[0].mxu0
        %v3768 = vadd.f32 0.0, %v3767
        %v3769 = vpop.f32.mrb[0].mxu0
        %v3770 = vadd.f32 0.0, %v3769
        %3771 = vmatprep.mubr.bf16.mxu0 0
        %3772 = vmatmul.mubr.bf16.gmra.mrb[0].mxu0 %v3064
        %v3773 = vpop.f32.mrb[0].mxu0
        %v3774 = vadd.f32 0.0, %v3773
        %v3775 = vpop.f32.mrb[0].mxu0
        %v3776 = vadd.f32 0.0, %v3775
        %v3777 = vpop.f32.mrb[0].mxu0
        %v3778 = vadd.f32 0.0, %v3777
        %v3779 = vpop.f32.mrb[0].mxu0
        %v3780 = vadd.f32 0.0, %v3779
        %3781 = vmatprep.mubr.bf16.mxu0 0
        %3782 = vmatmul.mubr.bf16.gmra.mrb[0].mxu0 %v3067
        %v3783 = vpop.f32.mrb[0].mxu0
        %v3784 = vadd.f32 0.0, %v3783
        %v3785 = vpop.f32.mrb[0].mxu0
        %v3786 = vadd.f32 0.0, %v3785
        %v3787 = vpop.f32.mrb[0].mxu0
        %v3788 = vadd.f32 0.0, %v3787
        %v3789 = vpop.f32.mrb[0].mxu0
        %v3790 = vadd.f32 0.0, %v3789
        %3791 = vmatprep.mubr.bf16.mxu0 0
        %3792 = vmatmul.mubr.bf16.gmra.mrb[0].mxu0 %v3070
        %v3793 = vpop.f32.mrb[0].mxu0
        %v3794 = vadd.f32 0.0, %v3793
        %v3795 = vpop.f32.mrb[0].mxu0
        %v3796 = vadd.f32 0.0, %v3795
        %v3797 = vpop.f32.mrb[0].mxu0
        %v3798 = vadd.f32 0.0, %v3797
        %v3799 = vpop.f32.mrb[0].mxu0
        %v3800 = vadd.f32 0.0, %v3799
        %3801 = vmatprep.mubr.bf16.mxu0 0
        %3802 = vmatmul.mubr.bf16.gmra.mrb[0].mxu0 %v3073
        %v3803 = vpop.f32.mrb[0].mxu0
        %v3804 = vadd.f32 0.0, %v3803
        %v3805 = vpop.f32.mrb[0].mxu0
        %v3806 = vadd.f32 0.0, %v3805
        %v3807 = vpop.f32.mrb[0].mxu0
        %v3808 = vadd.f32 0.0, %v3807
        %v3809 = vpop.f32.mrb[0].mxu0
        %v3810 = vadd.f32 0.0, %v3809
        %3811 = vmatprep.mubr.bf16.mxu0 0
        %3812 = vmatmul.mubr.bf16.gmra.mrb[0].mxu0 %v3076
        %v3813 = vpop.f32.mrb[0].mxu0
        %v3814 = vadd.f32 0.0, %v3813
        %v3815 = vpop.f32.mrb[0].mxu0
        %v3816 = vadd.f32 0.0, %v3815
        %v3817 = vpop.f32.mrb[0].mxu0
        %v3818 = vadd.f32 0.0, %v3817
        %v3819 = vpop.f32.mrb[0].mxu0
        %v3820 = vadd.f32 0.0, %v3819
        %3821 = vmatprep.mubr.bf16.mxu0 0
        %3822 = vmatmul.mubr.bf16.gmra.mrb[0].mxu0 %v3079
        %v3823 = vpop.f32.mrb[0].mxu0
        %v3824 = vadd.f32 0.0, %v3823
        %v3825 = vpop.f32.mrb[0].mxu0
        %v3826 = vadd.f32 0.0, %v3825
        %v3827 = vpop.f32.mrb[0].mxu0
        %v3828 = vadd.f32 0.0, %v3827
        %v3829 = vpop.f32.mrb[0].mxu0
        %v3830 = vadd.f32 0.0, %v3829
        %3831 = vmatprep.mubr.bf16.mxu0 0
        %3832 = vmatmul.mubr.bf16.gmra.mrb[0].mxu0 %v3082
        %v3833 = vpop.f32.mrb[0].mxu0
        %v3834 = vadd.f32 0.0, %v3833
        %v3835 = vpop.f32.mrb[0].mxu0
        %v3836 = vadd.f32 0.0, %v3835
        %v3837 = vpop.f32.mrb[0].mxu0
        %v3838 = vadd.f32 0.0, %v3837
        %v3839 = vpop.f32.mrb[0].mxu0
        %v3840 = vadd.f32 0.0, %v3839
        %3841 = vmatprep.mubr.bf16.mxu0 0
        %3842 = vmatmul.mubr.bf16.gmra.mrb[0].mxu0 %v3085
        %v3843 = vpop.f32.mrb[0].mxu0
        %v3844 = vadd.f32 0.0, %v3843
        %v3845 = vpop.f32.mrb[0].mxu0
        %v3846 = vadd.f32 0.0, %v3845
        %v3847 = vpop.f32.mrb[0].mxu0
        %v3848 = vadd.f32 0.0, %v3847
        %v3849 = vpop.f32.mrb[0].mxu0
        %v3850 = vadd.f32 0.0, %v3849
        %3851 = vmatprep.mubr.bf16.mxu0 0
        %3852 = vmatmul.mubr.bf16.gmra.mrb[0].mxu0 %v3088
        %v3853 = vpop.f32.mrb[0].mxu0
        %v3854 = vadd.f32 0.0, %v3853
        %v3855 = vpop.f32.mrb[0].mxu0
        %v3856 = vadd.f32 0.0, %v3855
        %v3857 = vpop.f32.mrb[0].mxu0
        %v3858 = vadd.f32 0.0, %v3857
        %v3859 = vpop.f32.mrb[0].mxu0
        %v3860 = vadd.f32 0.0, %v3859
        %3861 = vdwg.mxu0
        %v3862 = vmul.f32 %v750, %v3125
        %v3863 = vmul.f32 %v752, %v3127
        %v3864 = vmul.f32 %v1007, %v3318
        %v3865 = vmul.f32 %v1009, %v3320
        %v3866 = vmul.f32 %v1264, %v3511
        %v3867 = vmul.f32 %v1266, %v3513
        %v3868 = vmul.f32 %v1521, %v3704
        %v3869 = vmul.f32 %v1523, %v3706
        %v3870 = vmul.f32 %v756, %v3129
        %v3871 = vmul.f32 %v758, %v3131
        %v3872 = vmul.f32 %v1013, %v3322
        %v3873 = vmul.f32 %v1015, %v3324
        %v3874 = vmul.f32 %v1270, %v3515
        %v3875 = vmul.f32 %v1272, %v3517
        %v3876 = vmul.f32 %v1527, %v3708
        %v3877 = vmul.f32 %v1529, %v3710
        %v3878 = vmul.f32 %v762, %v3135
        %v3879 = vmul.f32 %v764, %v3137
        %v3880 = vmul.f32 %v1019, %v3328
        %v3881 = vmul.f32 %v1021, %v3330
        %v3882 = vmul.f32 %v1276, %v3521
        %v3883 = vmul.f32 %v1278, %v3523
        %v3884 = vmul.f32 %v1533, %v3714
        %v3885 = vmul.f32 %v1535, %v3716
        %v3886 = vmul.f32 %v768, %v3139
        %v3887 = vmul.f32 %v770, %v3141
        %v3888 = vmul.f32 %v1025, %v3332
        %v3889 = vmul.f32 %v1027, %v3334
        %v3890 = vmul.f32 %v1282, %v3525
        %v3891 = vmul.f32 %v1284, %v3527
        %v3892 = vmul.f32 %v1539, %v3718
        %v3893 = vmul.f32 %v1541, %v3720
        %v3894 = vmul.f32 %v774, %v3145
        %v3895 = vmul.f32 %v776, %v3147
        %v3896 = vmul.f32 %v1031, %v3338
        %v3897 = vmul.f32 %v1033, %v3340
        %v3898 = vmul.f32 %v1288, %v3531
        %v3899 = vmul.f32 %v1290, %v3533
        %v3900 = vmul.f32 %v1545, %v3724
        %v3901 = vmul.f32 %v1547, %v3726
        %v3902 = vmul.f32 %v780, %v3149
        %v3903 = vmul.f32 %v782, %v3151
        %v3904 = vmul.f32 %v1037, %v3342
        %v3905 = vmul.f32 %v1039, %v3344
        %v3906 = vmul.f32 %v1294, %v3535
        %v3907 = vmul.f32 %v1296, %v3537
        %v3908 = vmul.f32 %v1551, %v3728
        %v3909 = vmul.f32 %v1553, %v3730
        %v3910 = vmul.f32 %v786, %v3155
        %v3911 = vmul.f32 %v788, %v3157
        %v3912 = vmul.f32 %v1043, %v3348
        %v3913 = vmul.f32 %v1045, %v3350
        %v3914 = vmul.f32 %v1300, %v3541
        %v3915 = vmul.f32 %v1302, %v3543
        %v3916 = vmul.f32 %v1557, %v3734
        %v3917 = vmul.f32 %v1559, %v3736
        %v3918 = vmul.f32 %v792, %v3159
        %v3919 = vmul.f32 %v794, %v3161
        %v3920 = vmul.f32 %v1049, %v3352
        %v3921 = vmul.f32 %v1051, %v3354
        %v3922 = vmul.f32 %v1306, %v3545
        %v3923 = vmul.f32 %v1308, %v3547
        %v3924 = vmul.f32 %v1563, %v3738
        %v3925 = vmul.f32 %v1565, %v3740
        %v3926 = vmul.f32 %v798, %v3165
        %v3927 = vmul.f32 %v800, %v3167
        %v3928 = vmul.f32 %v1055, %v3358
        %v3929 = vmul.f32 %v1057, %v3360
        %v3930 = vmul.f32 %v1312, %v3551
        %v3931 = vmul.f32 %v1314, %v3553
        %v3932 = vmul.f32 %v1569, %v3744
        %v3933 = vmul.f32 %v1571, %v3746
        %v3934 = vmul.f32 %v804, %v3169
        %v3935 = vmul.f32 %v806, %v3171
        %v3936 = vmul.f32 %v1061, %v3362
        %v3937 = vmul.f32 %v1063, %v3364
        %v3938 = vmul.f32 %v1318, %v3555
        %v3939 = vmul.f32 %v1320, %v3557
        %v3940 = vmul.f32 %v1575, %v3748
        %v3941 = vmul.f32 %v1577, %v3750
        %v3942 = vmul.f32 %v810, %v3175
        %v3943 = vmul.f32 %v812, %v3177
        %v3944 = vmul.f32 %v1067, %v3368
        %v3945 = vmul.f32 %v1069, %v3370
        %v3946 = vmul.f32 %v1324, %v3561
        %v3947 = vmul.f32 %v1326, %v3563
        %v3948 = vmul.f32 %v1581, %v3754
        %v3949 = vmul.f32 %v1583, %v3756
        %v3950 = vmul.f32 %v816, %v3179
        %v3951 = vmul.f32 %v818, %v3181
        %v3952 = vmul.f32 %v1073, %v3372
        %v3953 = vmul.f32 %v1075, %v3374
        %v3954 = vmul.f32 %v1330, %v3565
        %v3955 = vmul.f32 %v1332, %v3567
        %v3956 = vmul.f32 %v1587, %v3758
        %v3957 = vmul.f32 %v1589, %v3760
        %v3958 = vmul.f32 %v822, %v3185
        %v3959 = vmul.f32 %v824, %v3187
        %v3960 = vmul.f32 %v1079, %v3378
        %v3961 = vmul.f32 %v1081, %v3380
        %v3962 = vmul.f32 %v1336, %v3571
        %v3963 = vmul.f32 %v1338, %v3573
        %v3964 = vmul.f32 %v1593, %v3764
        %v3965 = vmul.f32 %v1595, %v3766
        %v3966 = vmul.f32 %v828, %v3189
        %v3967 = vmul.f32 %v830, %v3191
        %v3968 = vmul.f32 %v1085, %v3382
        %v3969 = vmul.f32 %v1087, %v3384
        %v3970 = vmul.f32 %v1342, %v3575
        %v3971 = vmul.f32 %v1344, %v3577
        %v3972 = vmul.f32 %v1599, %v3768
        %v3973 = vmul.f32 %v1601, %v3770
        %v3974 = vmul.f32 %v834, %v3195
        %v3975 = vmul.f32 %v836, %v3197
        %v3976 = vmul.f32 %v1091, %v3388
        %v3977 = vmul.f32 %v1093, %v3390
        %v3978 = vmul.f32 %v1348, %v3581
        %v3979 = vmul.f32 %v1350, %v3583
        %v3980 = vmul.f32 %v1605, %v3774
        %v3981 = vmul.f32 %v1607, %v3776
        %v3982 = vmul.f32 %v840, %v3199
        %v3983 = vmul.f32 %v842, %v3201
        %v3984 = vmul.f32 %v1097, %v3392
        %v3985 = vmul.f32 %v1099, %v3394
        %v3986 = vmul.f32 %v1354, %v3585
        %v3987 = vmul.f32 %v1356, %v3587
        %v3988 = vmul.f32 %v1611, %v3778
        %v3989 = vmul.f32 %v1613, %v3780
        %v3990 = vmul.f32 %v846, %v3205
        %v3991 = vmul.f32 %v848, %v3207
        %v3992 = vmul.f32 %v1103, %v3398
        %v3993 = vmul.f32 %v1105, %v3400
        %v3994 = vmul.f32 %v1360, %v3591
        %v3995 = vmul.f32 %v1362, %v3593
        %v3996 = vmul.f32 %v1617, %v3784
        %v3997 = vmul.f32 %v1619, %v3786
        %v3998 = vmul.f32 %v852, %v3209
        %v3999 = vmul.f32 %v854, %v3211
        %v4000 = vmul.f32 %v1109, %v3402
        %v4001 = vmul.f32 %v1111, %v3404
        %v4002 = vmul.f32 %v1366, %v3595
        %v4003 = vmul.f32 %v1368, %v3597
        %v4004 = vmul.f32 %v1623, %v3788
        %v4005 = vmul.f32 %v1625, %v3790
        %v4006 = vmul.f32 %v858, %v3215
        %v4007 = vmul.f32 %v860, %v3217
        %v4008 = vmul.f32 %v1115, %v3408
        %v4009 = vmul.f32 %v1117, %v3410
        %v4010 = vmul.f32 %v1372, %v3601
        %v4011 = vmul.f32 %v1374, %v3603
        %v4012 = vmul.f32 %v1629, %v3794
        %v4013 = vmul.f32 %v1631, %v3796
        %v4014 = vmul.f32 %v864, %v3219
        %v4015 = vmul.f32 %v866, %v3221
        %v4016 = vmul.f32 %v1121, %v3412
        %v4017 = vmul.f32 %v1123, %v3414
        %v4018 = vmul.f32 %v1378, %v3605
        %v4019 = vmul.f32 %v1380, %v3607
        %v4020 = vmul.f32 %v1635, %v3798
        %v4021 = vmul.f32 %v1637, %v3800
        %v4022 = vmul.f32 %v870, %v3225
        %v4023 = vmul.f32 %v872, %v3227
        %v4024 = vmul.f32 %v1127, %v3418
        %v4025 = vmul.f32 %v1129, %v3420
        %v4026 = vmul.f32 %v1384, %v3611
        %v4027 = vmul.f32 %v1386, %v3613
        %v4028 = vmul.f32 %v1641, %v3804
        %v4029 = vmul.f32 %v1643, %v3806
        %v4030 = vmul.f32 %v876, %v3229
        %v4031 = vmul.f32 %v878, %v3231
        %v4032 = vmul.f32 %v1133, %v3422
        %v4033 = vmul.f32 %v1135, %v3424
        %v4034 = vmul.f32 %v1390, %v3615
        %v4035 = vmul.f32 %v1392, %v3617
        %v4036 = vmul.f32 %v1647, %v3808
        %v4037 = vmul.f32 %v1649, %v3810
        %v4038 = vmul.f32 %v882, %v3235
        %v4039 = vmul.f32 %v884, %v3237
        %v4040 = vmul.f32 %v1139, %v3428
        %v4041 = vmul.f32 %v1141, %v3430
        %v4042 = vmul.f32 %v1396, %v3621
        %v4043 = vmul.f32 %v1398, %v3623
        %v4044 = vmul.f32 %v1653, %v3814
        %v4045 = vmul.f32 %v1655, %v3816
        %v4046 = vmul.f32 %v888, %v3239
        %v4047 = vmul.f32 %v890, %v3241
        %v4048 = vmul.f32 %v1145, %v3432
        %v4049 = vmul.f32 %v1147, %v3434
        %v4050 = vmul.f32 %v1402, %v3625
        %v4051 = vmul.f32 %v1404, %v3627
        %v4052 = vmul.f32 %v1659, %v3818
        %v4053 = vmul.f32 %v1661, %v3820
        %v4054 = vmul.f32 %v894, %v3245
        %v4055 = vmul.f32 %v896, %v3247
        %v4056 = vmul.f32 %v1151, %v3438
        %v4057 = vmul.f32 %v1153, %v3440
        %v4058 = vmul.f32 %v1408, %v3631
        %v4059 = vmul.f32 %v1410, %v3633
        %v4060 = vmul.f32 %v1665, %v3824
        %v4061 = vmul.f32 %v1667, %v3826
        %v4062 = vmul.f32 %v900, %v3249
        %v4063 = vmul.f32 %v902, %v3251
        %v4064 = vmul.f32 %v1157, %v3442
        %v4065 = vmul.f32 %v1159, %v3444
        %v4066 = vmul.f32 %v1414, %v3635
        %v4067 = vmul.f32 %v1416, %v3637
        %v4068 = vmul.f32 %v1671, %v3828
        %v4069 = vmul.f32 %v1673, %v3830
        %v4070 = vmul.f32 %v906, %v3255
        %v4071 = vmul.f32 %v908, %v3257
        %v4072 = vmul.f32 %v1163, %v3448
        %v4073 = vmul.f32 %v1165, %v3450
        %v4074 = vmul.f32 %v1420, %v3641
        %v4075 = vmul.f32 %v1422, %v3643
        %v4076 = vmul.f32 %v1677, %v3834
        %v4077 = vmul.f32 %v1679, %v3836
        %v4078 = vmul.f32 %v912, %v3259
        %v4079 = vmul.f32 %v914, %v3261
        %v4080 = vmul.f32 %v1169, %v3452
        %v4081 = vmul.f32 %v1171, %v3454
        %v4082 = vmul.f32 %v1426, %v3645
        %v4083 = vmul.f32 %v1428, %v3647
        %v4084 = vmul.f32 %v1683, %v3838
        %v4085 = vmul.f32 %v1685, %v3840
        %v4086 = vmul.f32 %v918, %v3265
        %v4087 = vmul.f32 %v920, %v3267
        %v4088 = vmul.f32 %v1175, %v3458
        %v4089 = vmul.f32 %v1177, %v3460
        %v4090 = vmul.f32 %v1432, %v3651
        %v4091 = vmul.f32 %v1434, %v3653
        %v4092 = vmul.f32 %v1689, %v3844
        %v4093 = vmul.f32 %v1691, %v3846
        %v4094 = vmul.f32 %v924, %v3269
        %v4095 = vmul.f32 %v926, %v3271
        %v4096 = vmul.f32 %v1181, %v3462
        %v4097 = vmul.f32 %v1183, %v3464
        %v4098 = vmul.f32 %v1438, %v3655
        %v4099 = vmul.f32 %v1440, %v3657
        %v4100 = vmul.f32 %v1695, %v3848
        %v4101 = vmul.f32 %v1697, %v3850
        %v4102 = vmul.f32 %v930, %v3275
        %v4103 = vmul.f32 %v932, %v3277
        %v4104 = vmul.f32 %v1187, %v3468
        %v4105 = vmul.f32 %v1189, %v3470
        %v4106 = vmul.f32 %v1444, %v3661
        %v4107 = vmul.f32 %v1446, %v3663
        %v4108 = vmul.f32 %v1701, %v3854
        %v4109 = vmul.f32 %v1703, %v3856
        %v4110 = vmul.f32 %v936, %v3279
        %v4111 = vmul.f32 %v938, %v3281
        %v4112 = vmul.f32 %v1193, %v3472
        %v4113 = vmul.f32 %v1195, %v3474
        %v4114 = vmul.f32 %v1450, %v3665
        %v4115 = vmul.f32 %v1452, %v3667
        %v4116 = vmul.f32 %v1707, %v3858
        %v4117 = vmul.f32 %v1709, %v3860
        %v4118 = vadd.f32 %v3862, %v3866
        %v4119 = vadd.f32 %v3863, %v3867
        %v4120 = vadd.f32 %v3864, %v3868
        %v4121 = vadd.f32 %v3865, %v3869
        %v4122 = vadd.f32 %v3870, %v3874
        %v4123 = vadd.f32 %v3871, %v3875
        %v4124 = vadd.f32 %v3872, %v3876
        %v4125 = vadd.f32 %v3873, %v3877
        %v4126 = vadd.f32 %v3878, %v3882
        %v4127 = vadd.f32 %v3879, %v3883
        %v4128 = vadd.f32 %v3880, %v3884
        %v4129 = vadd.f32 %v3881, %v3885
        %v4130 = vadd.f32 %v3886, %v3890
        %v4131 = vadd.f32 %v3887, %v3891
        %v4132 = vadd.f32 %v3888, %v3892
        %v4133 = vadd.f32 %v3889, %v3893
        %v4134 = vadd.f32 %v3894, %v3898
        %v4135 = vadd.f32 %v3895, %v3899
        %v4136 = vadd.f32 %v3896, %v3900
        %v4137 = vadd.f32 %v3897, %v3901
        %v4138 = vadd.f32 %v3902, %v3906
        %v4139 = vadd.f32 %v3903, %v3907
        %v4140 = vadd.f32 %v3904, %v3908
        %v4141 = vadd.f32 %v3905, %v3909
        %v4142 = vadd.f32 %v3910, %v3914
        %v4143 = vadd.f32 %v3911, %v3915
        %v4144 = vadd.f32 %v3912, %v3916
        %v4145 = vadd.f32 %v3913, %v3917
        %v4146 = vadd.f32 %v3918, %v3922
        %v4147 = vadd.f32 %v3919, %v3923
        %v4148 = vadd.f32 %v3920, %v3924
        %v4149 = vadd.f32 %v3921, %v3925
        %v4150 = vadd.f32 %v3926, %v3930
        %v4151 = vadd.f32 %v3927, %v3931
        %v4152 = vadd.f32 %v3928, %v3932
        %v4153 = vadd.f32 %v3929, %v3933
        %v4154 = vadd.f32 %v3934, %v3938
        %v4155 = vadd.f32 %v3935, %v3939
        %v4156 = vadd.f32 %v3936, %v3940
        %v4157 = vadd.f32 %v3937, %v3941
        %v4158 = vadd.f32 %v3942, %v3946
        %v4159 = vadd.f32 %v3943, %v3947
        %v4160 = vadd.f32 %v3944, %v3948
        %v4161 = vadd.f32 %v3945, %v3949
        %v4162 = vadd.f32 %v3950, %v3954
        %v4163 = vadd.f32 %v3951, %v3955
        %v4164 = vadd.f32 %v3952, %v3956
        %v4165 = vadd.f32 %v3953, %v3957
        %v4166 = vadd.f32 %v3958, %v3962
        %v4167 = vadd.f32 %v3959, %v3963
        %v4168 = vadd.f32 %v3960, %v3964
        %v4169 = vadd.f32 %v3961, %v3965
        %v4170 = vadd.f32 %v3966, %v3970
        %v4171 = vadd.f32 %v3967, %v3971
        %v4172 = vadd.f32 %v3968, %v3972
        %v4173 = vadd.f32 %v3969, %v3973
        %v4174 = vadd.f32 %v3974, %v3978
        %v4175 = vadd.f32 %v3975, %v3979
        %v4176 = vadd.f32 %v3976, %v3980
        %v4177 = vadd.f32 %v3977, %v3981
        %v4178 = vadd.f32 %v3982, %v3986
        %v4179 = vadd.f32 %v3983, %v3987
        %v4180 = vadd.f32 %v3984, %v3988
        %v4181 = vadd.f32 %v3985, %v3989
        %v4182 = vadd.f32 %v3990, %v3994
        %v4183 = vadd.f32 %v3991, %v3995
        %v4184 = vadd.f32 %v3992, %v3996
        %v4185 = vadd.f32 %v3993, %v3997
        %v4186 = vadd.f32 %v3998, %v4002
        %v4187 = vadd.f32 %v3999, %v4003
        %v4188 = vadd.f32 %v4000, %v4004
        %v4189 = vadd.f32 %v4001, %v4005
        %v4190 = vadd.f32 %v4006, %v4010
        %v4191 = vadd.f32 %v4007, %v4011
        %v4192 = vadd.f32 %v4008, %v4012
        %v4193 = vadd.f32 %v4009, %v4013
        %v4194 = vadd.f32 %v4014, %v4018
        %v4195 = vadd.f32 %v4015, %v4019
        %v4196 = vadd.f32 %v4016, %v4020
        %v4197 = vadd.f32 %v4017, %v4021
        %v4198 = vadd.f32 %v4022, %v4026
        %v4199 = vadd.f32 %v4023, %v4027
        %v4200 = vadd.f32 %v4024, %v4028
        %v4201 = vadd.f32 %v4025, %v4029
        %v4202 = vadd.f32 %v4030, %v4034
        %v4203 = vadd.f32 %v4031, %v4035
        %v4204 = vadd.f32 %v4032, %v4036
        %v4205 = vadd.f32 %v4033, %v4037
        %v4206 = vadd.f32 %v4038, %v4042
        %v4207 = vadd.f32 %v4039, %v4043
        %v4208 = vadd.f32 %v4040, %v4044
        %v4209 = vadd.f32 %v4041, %v4045
        %v4210 = vadd.f32 %v4046, %v4050
        %v4211 = vadd.f32 %v4047, %v4051
        %v4212 = vadd.f32 %v4048, %v4052
        %v4213 = vadd.f32 %v4049, %v4053
        %v4214 = vadd.f32 %v4054, %v4058
        %v4215 = vadd.f32 %v4055, %v4059
        %v4216 = vadd.f32 %v4056, %v4060
        %v4217 = vadd.f32 %v4057, %v4061
        %v4218 = vadd.f32 %v4062, %v4066
        %v4219 = vadd.f32 %v4063, %v4067
        %v4220 = vadd.f32 %v4064, %v4068
        %v4221 = vadd.f32 %v4065, %v4069
        %v4222 = vadd.f32 %v4070, %v4074
        %v4223 = vadd.f32 %v4071, %v4075
        %v4224 = vadd.f32 %v4072, %v4076
        %v4225 = vadd.f32 %v4073, %v4077
        %v4226 = vadd.f32 %v4078, %v4082
        %v4227 = vadd.f32 %v4079, %v4083
        %v4228 = vadd.f32 %v4080, %v4084
        %v4229 = vadd.f32 %v4081, %v4085
        %v4230 = vadd.f32 %v4086, %v4090
        %v4231 = vadd.f32 %v4087, %v4091
        %v4232 = vadd.f32 %v4088, %v4092
        %v4233 = vadd.f32 %v4089, %v4093
        %v4234 = vadd.f32 %v4094, %v4098
        %v4235 = vadd.f32 %v4095, %v4099
        %v4236 = vadd.f32 %v4096, %v4100
        %v4237 = vadd.f32 %v4097, %v4101
        %v4238 = vadd.f32 %v4102, %v4106
        %v4239 = vadd.f32 %v4103, %v4107
        %v4240 = vadd.f32 %v4104, %v4108
        %v4241 = vadd.f32 %v4105, %v4109
        %v4242 = vadd.f32 %v4110, %v4114
        %v4243 = vadd.f32 %v4111, %v4115
        %v4244 = vadd.f32 %v4112, %v4116
        %v4245 = vadd.f32 %v4113, %v4117
        %v4246 = vadd.f32 %v4118, %v4120
        %v4247 = vadd.f32 %v4119, %v4121
        %v4248 = vadd.f32 %v4122, %v4124
        %v4249 = vadd.f32 %v4123, %v4125
        %v4250 = vadd.f32 %v4126, %v4128
        %v4251 = vadd.f32 %v4127, %v4129
        %v4252 = vadd.f32 %v4130, %v4132
        %v4253 = vadd.f32 %v4131, %v4133
        %v4254 = vadd.f32 %v4134, %v4136
        %v4255 = vadd.f32 %v4135, %v4137
        %v4256 = vadd.f32 %v4138, %v4140
        %v4257 = vadd.f32 %v4139, %v4141
        %v4258 = vadd.f32 %v4142, %v4144
        %v4259 = vadd.f32 %v4143, %v4145
        %v4260 = vadd.f32 %v4146, %v4148
        %v4261 = vadd.f32 %v4147, %v4149
        %v4262 = vadd.f32 %v4150, %v4152
        %v4263 = vadd.f32 %v4151, %v4153
        %v4264 = vadd.f32 %v4154, %v4156
        %v4265 = vadd.f32 %v4155, %v4157
        %v4266 = vadd.f32 %v4158, %v4160
        %v4267 = vadd.f32 %v4159, %v4161
        %v4268 = vadd.f32 %v4162, %v4164
        %v4269 = vadd.f32 %v4163, %v4165
        %v4270 = vadd.f32 %v4166, %v4168
        %v4271 = vadd.f32 %v4167, %v4169
        %v4272 = vadd.f32 %v4170, %v4172
        %v4273 = vadd.f32 %v4171, %v4173
        %v4274 = vadd.f32 %v4174, %v4176
        %v4275 = vadd.f32 %v4175, %v4177
        %v4276 = vadd.f32 %v4178, %v4180
        %v4277 = vadd.f32 %v4179, %v4181
        %v4278 = vadd.f32 %v4182, %v4184
        %v4279 = vadd.f32 %v4183, %v4185
        %v4280 = vadd.f32 %v4186, %v4188
        %v4281 = vadd.f32 %v4187, %v4189
        %v4282 = vadd.f32 %v4190, %v4192
        %v4283 = vadd.f32 %v4191, %v4193
        %v4284 = vadd.f32 %v4194, %v4196
        %v4285 = vadd.f32 %v4195, %v4197
        %v4286 = vadd.f32 %v4198, %v4200
        %v4287 = vadd.f32 %v4199, %v4201
        %v4288 = vadd.f32 %v4202, %v4204
        %v4289 = vadd.f32 %v4203, %v4205
        %v4290 = vadd.f32 %v4206, %v4208
        %v4291 = vadd.f32 %v4207, %v4209
        %v4292 = vadd.f32 %v4210, %v4212
        %v4293 = vadd.f32 %v4211, %v4213
        %v4294 = vadd.f32 %v4214, %v4216
        %v4295 = vadd.f32 %v4215, %v4217
        %v4296 = vadd.f32 %v4218, %v4220
        %v4297 = vadd.f32 %v4219, %v4221
        %v4298 = vadd.f32 %v4222, %v4224
        %v4299 = vadd.f32 %v4223, %v4225
        %v4300 = vadd.f32 %v4226, %v4228
        %v4301 = vadd.f32 %v4227, %v4229
        %v4302 = vadd.f32 %v4230, %v4232
        %v4303 = vadd.f32 %v4231, %v4233
        %v4304 = vadd.f32 %v4234, %v4236
        %v4305 = vadd.f32 %v4235, %v4237
        %v4306 = vadd.f32 %v4238, %v4240
        %v4307 = vadd.f32 %v4239, %v4241
        %v4308 = vadd.f32 %v4242, %v4244
        %v4309 = vadd.f32 %v4243, %v4245
        %v4310 = vadd.f32 %v4246, %v4247
        %v4311 = vadd.f32 %v4248, %v4249
        %v4312 = vadd.f32 %v4250, %v4251
        %v4313 = vadd.f32 %v4252, %v4253
        %v4314 = vadd.f32 %v4254, %v4255
        %v4315 = vadd.f32 %v4256, %v4257
        %v4316 = vadd.f32 %v4258, %v4259
        %v4317 = vadd.f32 %v4260, %v4261
        %v4318 = vadd.f32 %v4262, %v4263
        %v4319 = vadd.f32 %v4264, %v4265
        %v4320 = vadd.f32 %v4266, %v4267
        %v4321 = vadd.f32 %v4268, %v4269
        %v4322 = vadd.f32 %v4270, %v4271
        %v4323 = vadd.f32 %v4272, %v4273
        %v4324 = vadd.f32 %v4274, %v4275
        %v4325 = vadd.f32 %v4276, %v4277
        %v4326 = vadd.f32 %v4278, %v4279
        %v4327 = vadd.f32 %v4280, %v4281
        %v4328 = vadd.f32 %v4282, %v4283
        %v4329 = vadd.f32 %v4284, %v4285
        %v4330 = vadd.f32 %v4286, %v4287
        %v4331 = vadd.f32 %v4288, %v4289
        %v4332 = vadd.f32 %v4290, %v4291
        %v4333 = vadd.f32 %v4292, %v4293
        %v4334 = vadd.f32 %v4294, %v4295
        %v4335 = vadd.f32 %v4296, %v4297
        %v4336 = vadd.f32 %v4298, %v4299
        %v4337 = vadd.f32 %v4300, %v4301
        %v4338 = vadd.f32 %v4302, %v4303
        %v4339 = vadd.f32 %v4304, %v4305
        %v4340 = vadd.f32 %v4306, %v4307
        %v4341 = vadd.f32 %v4308, %v4309
        %v4342 = vlaneseq
        %v4343 = vand.u32 %v4342, 127
        %4344 = vset.pattern.permute.xlu0 0
        %4345 = vperm.xlu0 %4344, %v275
        %v4346 = vpop.permute.xlu0 %4345
        %4347 = vset.pattern.permute.xlu0 0
        %4348 = vperm.xlu0 %4347, %v276
        %v4349 = vpop.permute.xlu0 %4348
        %4350 = vset.pattern.permute.xlu0 0
        %4351 = vperm.xlu0 %4350, %v277
        %v4352 = vpop.permute.xlu0 %4351
        %4353 = vset.pattern.permute.xlu0 0
        %4354 = vperm.xlu0 %4353, %v278
        %v4355 = vpop.permute.xlu0 %4354
        %4356 = vset.pattern.permute.xlu0 0
        %4357 = vperm.xlu0 %4356, %v279
        %v4358 = vpop.permute.xlu0 %4357
        %4359 = vset.pattern.permute.xlu0 0
        %4360 = vperm.xlu0 %4359, %v280
        %v4361 = vpop.permute.xlu0 %4360
        %4362 = vset.pattern.permute.xlu0 0
        %4363 = vperm.xlu0 %4362, %v281
        %v4364 = vpop.permute.xlu0 %4363
        %4365 = vset.pattern.permute.xlu0 0
        %4366 = vperm.xlu0 %4365, %v282
        %v4367 = vpop.permute.xlu0 %4366
        %4368 = vset.pattern.permute.xlu0 0
        %4369 = vperm.xlu0 %4368, %v283
        %v4370 = vpop.permute.xlu0 %4369
        %4371 = vset.pattern.permute.xlu0 0
        %4372 = vperm.xlu0 %4371, %v284
        %v4373 = vpop.permute.xlu0 %4372
        %4374 = vset.pattern.permute.xlu0 0
        %4375 = vperm.xlu0 %4374, %v285
        %v4376 = vpop.permute.xlu0 %4375
        %4377 = vset.pattern.permute.xlu0 0
        %4378 = vperm.xlu0 %4377, %v286
        %v4379 = vpop.permute.xlu0 %4378
        %4380 = vset.pattern.permute.xlu0 0
        %4381 = vperm.xlu0 %4380, %v287
        %v4382 = vpop.permute.xlu0 %4381
        %4383 = vset.pattern.permute.xlu0 0
        %4384 = vperm.xlu0 %4383, %v288
        %v4385 = vpop.permute.xlu0 %4384
        %4386 = vset.pattern.permute.xlu0 0
        %4387 = vperm.xlu0 %4386, %v289
        %v4388 = vpop.permute.xlu0 %4387
        %4389 = vset.pattern.permute.xlu0 0
        %4390 = vperm.xlu0 %4389, %v290
        %v4391 = vpop.permute.xlu0 %4390
        %4392 = vset.pattern.permute.xlu0 0
        %4393 = vperm.xlu0 %4392, %v291
        %v4394 = vpop.permute.xlu0 %4393
        %4395 = vset.pattern.permute.xlu0 0
        %4396 = vperm.xlu0 %4395, %v292
        %v4397 = vpop.permute.xlu0 %4396
        %4398 = vset.pattern.permute.xlu0 0
        %4399 = vperm.xlu0 %4398, %v293
        %v4400 = vpop.permute.xlu0 %4399
        %4401 = vset.pattern.permute.xlu0 0
        %4402 = vperm.xlu0 %4401, %v294
        %v4403 = vpop.permute.xlu0 %4402
        %4404 = vset.pattern.permute.xlu0 0
        %4405 = vperm.xlu0 %4404, %v295
        %v4406 = vpop.permute.xlu0 %4405
        %4407 = vset.pattern.permute.xlu0 0
        %4408 = vperm.xlu0 %4407, %v296
        %v4409 = vpop.permute.xlu0 %4408
        %4410 = vset.pattern.permute.xlu0 0
        %4411 = vperm.xlu0 %4410, %v297
        %v4412 = vpop.permute.xlu0 %4411
        %4413 = vset.pattern.permute.xlu0 0
        %4414 = vperm.xlu0 %4413, %v298
        %v4415 = vpop.permute.xlu0 %4414
        %4416 = vset.pattern.permute.xlu0 0
        %4417 = vperm.xlu0 %4416, %v299
        %v4418 = vpop.permute.xlu0 %4417
        %4419 = vset.pattern.permute.xlu0 0
        %4420 = vperm.xlu0 %4419, %v300
        %v4421 = vpop.permute.xlu0 %4420
        %4422 = vset.pattern.permute.xlu0 0
        %4423 = vperm.xlu0 %4422, %v301
        %v4424 = vpop.permute.xlu0 %4423
        %4425 = vset.pattern.permute.xlu0 0
        %4426 = vperm.xlu0 %4425, %v302
        %v4427 = vpop.permute.xlu0 %4426
        %4428 = vset.pattern.permute.xlu0 0
        %4429 = vperm.xlu0 %4428, %v303
        %v4430 = vpop.permute.xlu0 %4429
        %4431 = vset.pattern.permute.xlu0 0
        %4432 = vperm.xlu0 %4431, %v304
        %v4433 = vpop.permute.xlu0 %4432
        %4434 = vset.pattern.permute.xlu0 0
        %4435 = vperm.xlu0 %4434, %v305
        %v4436 = vpop.permute.xlu0 %4435
        %4437 = vset.pattern.permute.xlu0 0
        %4438 = vperm.xlu0 %4437, %v306
        %v4439 = vpop.permute.xlu0 %4438
        %vm4440 = vcmp.eq.s32.totalorder %v4346, %v4343
        %vm4441 = vcmp.eq.s32.totalorder %v4349, %v4343
        %vm4442 = vcmp.eq.s32.totalorder %v4352, %v4343
        %vm4443 = vcmp.eq.s32.totalorder %v4355, %v4343
        %vm4444 = vcmp.eq.s32.totalorder %v4358, %v4343
        %vm4445 = vcmp.eq.s32.totalorder %v4361, %v4343
        %vm4446 = vcmp.eq.s32.totalorder %v4364, %v4343
        %vm4447 = vcmp.eq.s32.totalorder %v4367, %v4343
        %vm4448 = vcmp.eq.s32.totalorder %v4370, %v4343
        %vm4449 = vcmp.eq.s32.totalorder %v4373, %v4343
        %vm4450 = vcmp.eq.s32.totalorder %v4376, %v4343
        %vm4451 = vcmp.eq.s32.totalorder %v4379, %v4343
        %vm4452 = vcmp.eq.s32.totalorder %v4382, %v4343
        %vm4453 = vcmp.eq.s32.totalorder %v4385, %v4343
        %vm4454 = vcmp.eq.s32.totalorder %v4388, %v4343
        %vm4455 = vcmp.eq.s32.totalorder %v4391, %v4343
        %vm4456 = vcmp.eq.s32.totalorder %v4394, %v4343
        %vm4457 = vcmp.eq.s32.totalorder %v4397, %v4343
        %vm4458 = vcmp.eq.s32.totalorder %v4400, %v4343
        %vm4459 = vcmp.eq.s32.totalorder %v4403, %v4343
        %vm4460 = vcmp.eq.s32.totalorder %v4406, %v4343
        %vm4461 = vcmp.eq.s32.totalorder %v4409, %v4343
        %vm4462 = vcmp.eq.s32.totalorder %v4412, %v4343
        %vm4463 = vcmp.eq.s32.totalorder %v4415, %v4343
        %vm4464 = vcmp.eq.s32.totalorder %v4418, %v4343
        %vm4465 = vcmp.eq.s32.totalorder %v4421, %v4343
        %vm4466 = vcmp.eq.s32.totalorder %v4424, %v4343
        %vm4467 = vcmp.eq.s32.totalorder %v4427, %v4343
        %vm4468 = vcmp.eq.s32.totalorder %v4430, %v4343
        %vm4469 = vcmp.eq.s32.totalorder %v4433, %v4343
        %vm4470 = vcmp.eq.s32.totalorder %v4436, %v4343
        %vm4471 = vcmp.eq.s32.totalorder %v4439, %v4343
        %v4472 = vsel %vm4440, 1, 0
        %v4473 = vsel %vm4441, 1, 0
        %v4474 = vsel %vm4442, 1, 0
        %v4475 = vsel %vm4443, 1, 0
        %v4476 = vsel %vm4444, 1, 0
        %v4477 = vsel %vm4445, 1, 0
        %v4478 = vsel %vm4446, 1, 0
        %v4479 = vsel %vm4447, 1, 0
        %v4480 = vsel %vm4448, 1, 0
        %v4481 = vsel %vm4449, 1, 0
        %v4482 = vsel %vm4450, 1, 0
        %v4483 = vsel %vm4451, 1, 0
        %v4484 = vsel %vm4452, 1, 0
        %v4485 = vsel %vm4453, 1, 0
        %v4486 = vsel %vm4454, 1, 0
        %v4487 = vsel %vm4455, 1, 0
        %v4488 = vsel %vm4456, 1, 0
        %v4489 = vsel %vm4457, 1, 0
        %v4490 = vsel %vm4458, 1, 0
        %v4491 = vsel %vm4459, 1, 0
        %v4492 = vsel %vm4460, 1, 0
        %v4493 = vsel %vm4461, 1, 0
        %v4494 = vsel %vm4462, 1, 0
        %v4495 = vsel %vm4463, 1, 0
        %v4496 = vsel %vm4464, 1, 0
        %v4497 = vsel %vm4465, 1, 0
        %v4498 = vsel %vm4466, 1, 0
        %v4499 = vsel %vm4467, 1, 0
        %v4500 = vsel %vm4468, 1, 0
        %v4501 = vsel %vm4469, 1, 0
        %v4502 = vsel %vm4470, 1, 0
        %v4503 = vsel %vm4471, 1, 0
        %v4504 = vcvt.s32.f32 %v4472
        %v4505 = vcvt.s32.f32 %v4473
        %v4506 = vcvt.s32.f32 %v4474
        %v4507 = vcvt.s32.f32 %v4475
        %v4508 = vcvt.s32.f32 %v4476
        %v4509 = vcvt.s32.f32 %v4477
        %v4510 = vcvt.s32.f32 %v4478
        %v4511 = vcvt.s32.f32 %v4479
        %v4512 = vcvt.s32.f32 %v4480
        %v4513 = vcvt.s32.f32 %v4481
        %v4514 = vcvt.s32.f32 %v4482
        %v4515 = vcvt.s32.f32 %v4483
        %v4516 = vcvt.s32.f32 %v4484
        %v4517 = vcvt.s32.f32 %v4485
        %v4518 = vcvt.s32.f32 %v4486
        %v4519 = vcvt.s32.f32 %v4487
        %v4520 = vcvt.s32.f32 %v4488
        %v4521 = vcvt.s32.f32 %v4489
        %v4522 = vcvt.s32.f32 %v4490
        %v4523 = vcvt.s32.f32 %v4491
        %v4524 = vcvt.s32.f32 %v4492
        %v4525 = vcvt.s32.f32 %v4493
        %v4526 = vcvt.s32.f32 %v4494
        %v4527 = vcvt.s32.f32 %v4495
        %v4528 = vcvt.s32.f32 %v4496
        %v4529 = vcvt.s32.f32 %v4497
        %v4530 = vcvt.s32.f32 %v4498
        %v4531 = vcvt.s32.f32 %v4499
        %v4532 = vcvt.s32.f32 %v4500
        %v4533 = vcvt.s32.f32 %v4501
        %v4534 = vcvt.s32.f32 %v4502
        %v4535 = vcvt.s32.f32 %v4503
        %v4536 = vld [vmem:[#allocation2] sm:$0xff]
        %4537 = vxpose.xlu0.b32.start [1/16] %v4504, 128
        %4538 = vxpose.xlu0.b32.cont [2/16] %v4505, 128
        %4539 = vxpose.xlu0.b32.cont [3/16] %v4506, 128
        %4540 = vxpose.xlu0.b32.cont [4/16] %v4507, 128
        %4541 = vxpose.xlu0.b32.cont [5/16] %v4508, 128
        %4542 = vxpose.xlu0.b32.cont [6/16] %v4509, 128
        %4543 = vxpose.xlu0.b32.cont [7/16] %v4510, 128
        %4544 = vxpose.xlu0.b32.cont [8/16] %v4511, 128
        %4545 = vxpose.xlu0.b32.cont [9/16] %v4512, 128
        %4546 = vxpose.xlu0.b32.cont [10/16] %v4513, 128
        %4547 = vxpose.xlu0.b32.cont [11/16] %v4514, 128
        %4548 = vxpose.xlu0.b32.cont [12/16] %v4515, 128
        %4549 = vxpose.xlu0.b32.cont [13/16] %v4516, 128
        %4550 = vxpose.xlu0.b32.cont [14/16] %v4517, 128
        %4551 = vxpose.xlu0.b32.cont [15/16] %v4518, 128
        %4552 = vxpose.xlu0.b32.end [16/16] %v4519, 128
        %v4553 = vpop.trf.xlu0
        %v4554 = vpop.trf.xlu0
        %v4555 = vpop.trf.xlu0
        %v4556 = vpop.trf.xlu0
        %v4557 = vpop.trf.xlu0
        %v4558 = vpop.trf.xlu0
        %v4559 = vpop.trf.xlu0
        %v4560 = vpop.trf.xlu0
        %v4561 = vpop.trf.xlu0
        %v4562 = vpop.trf.xlu0
        %v4563 = vpop.trf.xlu0
        %v4564 = vpop.trf.xlu0
        %v4565 = vpop.trf.xlu0
        %v4566 = vpop.trf.xlu0
        %v4567 = vpop.trf.xlu0
        %v4568 = vpop.trf.xlu0
        %4569 = vxpose.xlu0.b32.start [1/16] %v4520, 128
        %4570 = vxpose.xlu0.b32.cont [2/16] %v4521, 128
        %4571 = vxpose.xlu0.b32.cont [3/16] %v4522, 128
        %4572 = vxpose.xlu0.b32.cont [4/16] %v4523, 128
        %4573 = vxpose.xlu0.b32.cont [5/16] %v4524, 128
        %4574 = vxpose.xlu0.b32.cont [6/16] %v4525, 128
        %4575 = vxpose.xlu0.b32.cont [7/16] %v4526, 128
        %4576 = vxpose.xlu0.b32.cont [8/16] %v4527, 128
        %4577 = vxpose.xlu0.b32.cont [9/16] %v4528, 128
        %4578 = vxpose.xlu0.b32.cont [10/16] %v4529, 128
        %4579 = vxpose.xlu0.b32.cont [11/16] %v4530, 128
        %4580 = vxpose.xlu0.b32.cont [12/16] %v4531, 128
        %4581 = vxpose.xlu0.b32.cont [13/16] %v4532, 128
        %4582 = vxpose.xlu0.b32.cont [14/16] %v4533, 128
        %4583 = vxpose.xlu0.b32.cont [15/16] %v4534, 128
        %4584 = vxpose.xlu0.b32.end [16/16] %v4535, 128
        %v4585 = vpop.trf.xlu0
        %v4586 = vpop.trf.xlu0
        %v4587 = vpop.trf.xlu0
        %v4588 = vpop.trf.xlu0
        %v4589 = vpop.trf.xlu0
        %v4590 = vpop.trf.xlu0
        %v4591 = vpop.trf.xlu0
        %v4592 = vpop.trf.xlu0
        %v4593 = vpop.trf.xlu0
        %v4594 = vpop.trf.xlu0
        %v4595 = vpop.trf.xlu0
        %v4596 = vpop.trf.xlu0
        %v4597 = vpop.trf.xlu0
        %v4598 = vpop.trf.xlu0
        %v4599 = vpop.trf.xlu0
        %v4600 = vpop.trf.xlu0
        %4601 = vmatprep.subr.mxu0 0.0
        %4602 = vmatpush1.msra.mxu0 %v4310
        %4603 = vmatprep.subr.mxu0 0.0
        %4604 = vmatpush1.msra.mxu0 %v4311
        %4605 = vmatprep.subr.mxu0 0.0
        %4606 = vmatpush1.msra.mxu0 %v4312
        %4607 = vmatprep.subr.mxu0 0.0
        %4608 = vmatpush1.msra.mxu0 %v4313
        %4609 = vmatprep.subr.mxu0 0.0
        %4610 = vmatpush1.msra.mxu0 %v4314
        %4611 = vmatprep.subr.mxu0 0.0
        %4612 = vmatpush1.msra.mxu0 %v4315
        %4613 = vmatprep.subr.mxu0 0.0
        %4614 = vmatpush1.msra.mxu0 %v4316
        %4615 = vmatprep.subr.mxu0 0.0
        %4616 = vmatpush1.msra.mxu0 %v4317
        %4617 = vmatprep.subr.mxu0 0.0
        %4618 = vmatpush1.msra.mxu0 %v4318
        %4619 = vmatprep.subr.mxu0 0.0
        %4620 = vmatpush1.msra.mxu0 %v4319
        %4621 = vmatprep.subr.mxu0 0.0
        %4622 = vmatpush1.msra.mxu0 %v4320
        %4623 = vmatprep.subr.mxu0 0.0
        %4624 = vmatpush1.msra.mxu0 %v4321
        %4625 = vmatprep.subr.mxu0 0.0
        %4626 = vmatpush1.msra.mxu0 %v4322
        %4627 = vmatprep.subr.mxu0 0.0
        %4628 = vmatpush1.msra.mxu0 %v4323
        %4629 = vmatprep.subr.mxu0 0.0
        %4630 = vmatpush1.msra.mxu0 %v4324
        %4631 = vmatprep.subr.mxu0 0.0
        %4632 = vmatpush1.msra.mxu0 %v4325
        %4633 = vmatprep.subr.mxu0 0.0
        %4634 = vmatpush1.msra.mxu0 %v4326
        %4635 = vmatprep.subr.mxu0 0.0
        %4636 = vmatpush1.msra.mxu0 %v4327
        %4637 = vmatprep.subr.mxu0 0.0
        %4638 = vmatpush1.msra.mxu0 %v4328
        %4639 = vmatprep.subr.mxu0 0.0
        %4640 = vmatpush1.msra.mxu0 %v4329
        %4641 = vmatprep.subr.mxu0 0.0
        %4642 = vmatpush1.msra.mxu0 %v4330
        %4643 = vmatprep.subr.mxu0 0.0
        %4644 = vmatpush1.msra.mxu0 %v4331
        %4645 = vmatprep.subr.mxu0 0.0
        %4646 = vmatpush1.msra.mxu0 %v4332
        %4647 = vmatprep.subr.mxu0 0.0
        %4648 = vmatpush1.msra.mxu0 %v4333
        %4649 = vmatprep.subr.mxu0 0.0
        %4650 = vmatpush1.msra.mxu0 %v4334
        %4651 = vmatprep.subr.mxu0 0.0
        %4652 = vmatpush1.msra.mxu0 %v4335
        %4653 = vmatprep.subr.mxu0 0.0
        %4654 = vmatpush1.msra.mxu0 %v4336
        %4655 = vmatprep.subr.mxu0 0.0
        %4656 = vmatpush1.msra.mxu0 %v4337
        %4657 = vmatprep.subr.mxu0 0.0
        %4658 = vmatpush1.msra.mxu0 %v4338
        %4659 = vmatprep.subr.mxu0 0.0
        %4660 = vmatpush1.msra.mxu0 %v4339
        %4661 = vmatprep.subr.mxu0 0.0
        %4662 = vmatpush1.msra.mxu0 %v4340
        %4663 = vmatprep.subr.mxu0 0.0
        %4664 = vmatpush1.msra.mxu0 %v4341
        %4665 = vmatprep.mubr.f32.mxu0 %v4585
        %4666 = vmatmul.mubr.f32.gmra.mrb[0].mxu0 %v4553
        %v4667 = vpop.f32.mrb[0].mxu0
        %v4668 = vadd.f32 0.0, %v4667
        %v4669 = vpop.f32.mrb[0].mxu0
        %4670 = vdwg.mxu0
        %v4671 = vadd.f32 %v4536, %v4668
        %4672 = vst [vmem:[#allocation2] sm:$0xff] %v4671
        %p4673 = scmp.eq.s32.totalorder %s17, 1
        // Predicated region
        $region45: #{tpu_custom_call.1} parent=39 // pred_check
          %p4674 = pneg %p4673
        $region46: #{tpu_custom_call.1} parent=39 // pred_check_branch
          %4676 = sbr.rel (%p4674) target = $region48
        $region47: #{tpu_custom_call.1} parent=39 // pred_region
          %v4677 = vld [vmem:[#allocation2] sm:$0xff]
          %4679 = vrot.lane.b32.xlu0 %v4677, 64
          %v4680 = vpop.permute.xlu0 %4679
          %v4682 = vadd.f32 %v4677, %v4680
          %4684 = vrot.lane.b32.xlu0 %v4682, 96
          %v4685 = vpop.permute.xlu0 %4684
          %v4687 = vadd.f32 %v4682, %v4685
          %4689 = vrot.lane.b32.xlu0 %v4687, 112
          %v4690 = vpop.permute.xlu0 %4689
          %v4692 = vadd.f32 %v4687, %v4690
          %4693 = vst.msk [vmem:[#allocation3] sm:$0xff] %vm586, %v4692
        $region48: #{tpu_custom_call.1} parent=39 // pred_fallthru
          _
        // Predicated region
        $region49: #{tpu_custom_call.1} parent=39 // pred_check
          %p4694 = pneg %p145
        $region50: #{tpu_custom_call.1} parent=39 // pred_check_branch
          %4696 = sbr.rel (%p4694) target = $region52
        $region51: #{tpu_custom_call.1} parent=39 // pred_region
          %s4698 = ssub.s32 128, 128
          %4699 = vsyncadd [#allocation4], %s4698
          %s4701 = sshll.u32 [#allocation3], 4
          %s4702 = int_to_ptr.vmem [resolvable:$true] %s4701
          %4704 = dma.vmem_to_hbm [thread:$0]  %s4702, 128, %s5, [#allocation4]
        $region52: #{tpu_custom_call.1} parent=39 // pred_fallthru
          _
        // Predicated region
        $region53: #{tpu_custom_call.1} parent=39 // pred_check
          %p4705 = pneg %p145
        $region54: #{tpu_custom_call.1} parent=39 // pred_check_branch
          %4707 = sbr.rel (%p4705) target = $region56
        $region55: #{tpu_custom_call.1} parent=39 // pred_region
          %4708 = dma.done [#allocation4], 128
        $region56: #{tpu_custom_call.1} parent=39 // pred_fallthru
          _
      $region40: #{tpu_custom_call.1} parent=5 // pred_fallthru
        _
      %p4709 = scmp.le.s32.totalorder 2, %s12
      // Predicated region
      $region57: #{tpu_custom_call.1} parent=5 // pred_check
        %p4710 = pneg %p4709
      $region58: #{tpu_custom_call.1} parent=5 // pred_check_branch
        %4712 = sbr.rel (%p4710) target = $region60
      $region59: #{tpu_custom_call.1} parent=5 // pred_region
        %s4713 = ssub.s32 %s12, 2
      $region60: #{tpu_custom_call.1} parent=5 // pred_fallthru
        _
    $region6: #{tpu_custom_call.1} parent=1 // loop_footer
      %s16 = sadd.s32 1, %s12
    $region7: #{tpu_custom_call.1} parent=1 // loop_footer_branch
      %11 = sbr.rel target = $region3
    $region8: #{tpu_custom_call.1} parent=1 // loop_exit
      _
    %4714 = vsyncpa [#allocation4], 1
    %s4715 = scalar_lea.sflag [#allocation4], 1
    %4716 = vsyncpa %s4715, 1

</llo_original>
